<compile_context>
chip_gen: v5e
topology: v5e:2x2
jax: 0.10.0
libtpu: 0.0.40
codegen_flags: <defaults>
</compile_context>

<pallas_src>
import functools

import jax
import jax.numpy as jnp
from jax.experimental import pallas as pl
from jax.experimental.pallas import tpu as pltpu


# ----------------------------------------------------------------------------
# Row-tile selection
# ----------------------------------------------------------------------------
def _choose_tm(M):
    """Largest sublane-aligned row tile that divides M, preferring >=2 tiles."""
    for t in (512, 256, 128, 64, 32, 16, 8):
        if M % t == 0 and M // t >= 2:
            return t
    for t in (512, 256, 128, 64, 32, 16, 8):
        if M % t == 0:
            return t
    return M  # tiny / ragged M: single full-size block


# ----------------------------------------------------------------------------
# Pallas kernel 1: Y = act( X @ Wfolded + shift [+ residual] )
#   X, W, residual are bf16; accumulation and epilogue in f32.
# ----------------------------------------------------------------------------
def _fused_layer_kernel(x_ref, w_ref, shift_ref, *rest, activation, has_res):
    if has_res:
        res_ref, o_ref = rest
    else:
        (o_ref,) = rest

    acc = jnp.dot(x_ref[...], w_ref[...], preferred_element_type=jnp.float32)
    acc = acc + shift_ref[...]                       # folded BN shift (scale is in W)
    if has_res:
        acc = acc + res_ref[...].astype(jnp.float32)
    if activation == "relu":
        acc = jnp.maximum(acc, 0.0)
    elif activation == "sigmoid":
        acc = jax.nn.sigmoid(acc)
    o_ref[...] = acc.astype(o_ref.dtype)


def fused_conv_layer(x2d, w2d, shift, residual=None, activation="none",
                     out_dtype=jnp.bfloat16):
    """x2d: [M, K] patch matrix, w2d: [K, Cout] (scale-folded).  Returns [M, Cout]."""
    M, K = x2d.shape
    Kw, Cout = w2d.shape
    assert K == Kw
    TM = _choose_tm(M)
    grid = (M // TM,)

    shift2 = shift.reshape(1, Cout).astype(jnp.float32)
    has_res = residual is not None

    in_specs = [
        pl.BlockSpec((TM, K), lambda i: (i, 0)),
        pl.BlockSpec((K, Cout), lambda i: (0, 0)),     # resident across row tiles
        pl.BlockSpec((1, Cout), lambda i: (0, 0)),
    ]
    args = [x2d.astype(jnp.bfloat16), w2d.astype(jnp.bfloat16), shift2]
    if has_res:
        in_specs.append(pl.BlockSpec((TM, Cout), lambda i: (i, 0)))
        args.append(residual.astype(jnp.bfloat16))

    kernel = functools.partial(_fused_layer_kernel,
                               activation=activation, has_res=has_res)

    return pl.pallas_call(
        kernel,
        out_shape=jax.ShapeDtypeStruct((M, Cout), out_dtype),
        grid=grid,
        in_specs=in_specs,
        out_specs=pl.BlockSpec((TM, Cout), lambda i: (i, 0)),
        compiler_params=pltpu.CompilerParams(
            dimension_semantics=("parallel",)),
    )(*args)


# ----------------------------------------------------------------------------
# Pallas kernel 2: fused tail
#   h1 = relu( X5b @ W5b + b5b + residual(c4) )      # relu(conv4 + conv5)
#   h2 = relu( h1 @ W6 + b6 )                        # conv6: 1x1 + BN + ReLU
#   y  = sigmoid( h2 @ W7 + b7 )                     # conv7: 1x1 + BN + Sigmoid
# ----------------------------------------------------------------------------
def _tail_kernel(x_ref, r_ref, w5_ref, b5_ref, w6_ref, b6_ref, w7_ref, b7_ref,
                 o_ref):
    h = jnp.dot(x_ref[...], w5_ref[...], preferred_element_type=jnp.float32)
    h = h + b5_ref[...] + r_ref[...].astype(jnp.float32)
    h = jnp.maximum(h, 0.0)

    h = jnp.dot(h.astype(jnp.bfloat16), w6_ref[...],
                preferred_element_type=jnp.float32)
    h = jnp.maximum(h + b6_ref[...], 0.0)

    h = jnp.dot(h.astype(jnp.bfloat16), w7_ref[...],
                preferred_element_type=jnp.float32)
    o_ref[...] = jax.nn.sigmoid(h + b7_ref[...]).astype(o_ref.dtype)


def fused_tail(x2d, residual, w5, b5, w6, b6, w7, b7):
    M, K5 = x2d.shape
    hdim = w5.shape[1]
    Cout = w7.shape[1]
    TM = _choose_tm(M)
    grid = (M // TM,)

    in_specs = [
        pl.BlockSpec((TM, K5), lambda i: (i, 0)),
        pl.BlockSpec((TM, hdim), lambda i: (i, 0)),
        pl.BlockSpec((K5, hdim), lambda i: (0, 0)),
        pl.BlockSpec((1, hdim), lambda i: (0, 0)),
        pl.BlockSpec((hdim, hdim), lambda i: (0, 0)),
        pl.BlockSpec((1, hdim), lambda i: (0, 0)),
        pl.BlockSpec((hdim, Cout), lambda i: (0, 0)),
        pl.BlockSpec((1, Cout), lambda i: (0, 0)),
    ]
    args = [
        x2d.astype(jnp.bfloat16),
        residual.astype(jnp.bfloat16),
        w5.astype(jnp.bfloat16), b5.reshape(1, -1).astype(jnp.float32),
        w6.astype(jnp.bfloat16), b6.reshape(1, -1).astype(jnp.float32),
        w7.astype(jnp.bfloat16), b7.reshape(1, -1).astype(jnp.float32),
    ]

    return pl.pallas_call(
        _tail_kernel,
        out_shape=jax.ShapeDtypeStruct((M, Cout), jnp.float32),
        grid=grid,
        in_specs=in_specs,
        out_specs=pl.BlockSpec((TM, Cout), lambda i: (i, 0)),
        compiler_params=pltpu.CompilerParams(
            dimension_semantics=("parallel",)),
    )(*args)


# ----------------------------------------------------------------------------
# im2col glue (data movement only, plain JAX under jit, bf16)
# ----------------------------------------------------------------------------
def space_to_depth2(x):
    """k=2, s=2 conv patches. x: [N,H,W,C] -> [N*(H/2)*(W/2), 4C] (kh,kw,C)."""
    N, H, W, C = x.shape
    x = x.reshape(N, H // 2, 2, W // 2, 2, C)
    x = x.transpose(0, 1, 3, 2, 4, 5)
    return x.reshape(N * (H // 2) * (W // 2), 4 * C)


def im2col3x3(x):
    """k=3, s=1, p=1 conv patches. x: [N,H,W,C] -> [N*H*W, 9C] (kh,kw,C)."""
    N, H, W, C = x.shape
    xp = jnp.pad(x, ((0, 0), (1, 1), (1, 1), (0, 0)))
    cols = [xp[:, dh:dh + H, dw:dw + W, :] for dh in range(3) for dw in range(3)]
    patches = jnp.stack(cols, axis=3)            # [N,H,W,9,C]
    return patches.reshape(N * H * W, 9 * C)


# ----------------------------------------------------------------------------
# Parameter construction (deterministic, synthetic; BN folded to weight/shift)
# ----------------------------------------------------------------------------
def make_conv_bn(key, cin, cout, k, eps=1e-5):
    kw_, kg, kb, km, kv = jax.random.split(key, 5)
    fan_in = cin * k * k
    w = jax.random.normal(kw_, (k, k, cin, cout), jnp.float32) / jnp.sqrt(fan_in)
    w2d = w.reshape(k * k * cin, cout)
    gamma = 1.0 + 0.1 * jax.random.normal(kg, (cout,), jnp.float32)
    beta = 0.1 * jax.random.normal(kb, (cout,), jnp.float32)
    mean = 0.1 * jax.random.normal(km, (cout,), jnp.float32)
    var = jax.random.uniform(kv, (cout,), jnp.float32, 0.5, 1.5)
    scale = gamma / jnp.sqrt(var + eps)
    shift = beta - mean * scale
    # Fold BN scale into the weight columns: (X@W)*s == X@(W*s).
    w_folded = (w2d * scale[None, :]).astype(jnp.bfloat16)
    return {"w": w_folded, "shift": shift.astype(jnp.float32)}


def init_params(key, d, hdim, zdim):
    ks = jax.random.split(key, 10)
    return {
        "conv1":  make_conv_bn(ks[0], d,         hdim,       2),
        "conv2":  make_conv_bn(ks[1], hdim,      hdim,       2),
        "conv3a": make_conv_bn(ks[2], hdim,      hdim // 2,  3),
        "conv3b": make_conv_bn(ks[3], hdim // 2, hdim,       2),
        "conv4":  make_conv_bn(ks[4], hdim,      hdim,       3),
        "conv5a": make_conv_bn(ks[5], hdim,      hdim // 2,  3),
        "conv5b": make_conv_bn(ks[6], hdim // 2, hdim,       3),
        "conv6":  make_conv_bn(ks[7], hdim,      hdim,       1),
        "conv7":  make_conv_bn(ks[8], hdim,      zdim * 2,   1),
    }


# ----------------------------------------------------------------------------
# Forward pass (mirrors TowerEncoder.forward = gaussian(stem(x)))
# ----------------------------------------------------------------------------
@functools.partial(jax.jit, static_argnums=(2, 3))
def tower_encoder_forward(x_nchw, params, hdim, zdim):
    x = jnp.transpose(x_nchw, (0, 2, 3, 1)).astype(jnp.bfloat16)  # NCHW -> NHWC
    N, H, W, _ = x.shape
    H2, W2, H4, W4 = H // 2, W // 2, H // 4, W // 4

    # conv1: k2 s2 + BN + ReLU
    p = params["conv1"]
    skip_in = fused_conv_layer(space_to_depth2(x), p["w"], p["shift"],
                               activation="relu")
    skip_in = skip_in.reshape(N, H2, W2, hdim)

    # conv2: k2 s2 + BN
    p = params["conv2"]
    skip_out = fused_conv_layer(space_to_depth2(skip_in), p["w"], p["shift"],
                                activation="none")         # [N*H4*W4, hdim] bf16

    # conv3: (k3 + BN + ReLU) -> (k2 s2 + BN); then out = relu(skip_out + conv3)
    p = params["conv3a"]
    c3a = fused_conv_layer(im2col3x3(skip_in), p["w"], p["shift"],
                           activation="relu").reshape(N, H2, W2, hdim // 2)
    p = params["conv3b"]
    out = fused_conv_layer(space_to_depth2(c3a), p["w"], p["shift"],
                           residual=skip_out, activation="relu")
    out4d = out.reshape(N, H4, W4, hdim)

    # conv4: k3 + BN on skip_out
    p = params["conv4"]
    c4 = fused_conv_layer(im2col3x3(skip_out.reshape(N, H4, W4, hdim)),
                          p["w"], p["shift"], activation="none")

    # conv5a: k3 + BN + ReLU
    p = params["conv5a"]
    c5a = fused_conv_layer(im2col3x3(out4d), p["w"], p["shift"],
                           activation="relu").reshape(N, H4, W4, hdim // 2)

    # Fused tail: conv5b(+BN) + residual(c4) + ReLU -> conv6(1x1+BN+ReLU)
    #             -> conv7(1x1+BN+Sigmoid), one pallas_call.
    g = fused_tail(im2col3x3(c5a), c4,
                   params["conv5b"]["w"], params["conv5b"]["shift"],
                   params["conv6"]["w"],  params["conv6"]["shift"],
                   params["conv7"]["w"],  params["conv7"]["shift"])

    g = g.reshape(N, H4, W4, zdim * 2)
    return jnp.transpose(g, (0, 3, 1, 2))                   # back to NCHW, f32


# ----------------------------------------------------------------------------
if __name__ == "__main__":
    # Small shapes consistent with the module: conv7's BN requires
    # zdim*2 == hdim (true for the defaults 64/128), so keep that invariant.
    N, D, H, W = 2, 4, 16, 16
    HDIM, ZDIM = 32, 16

    key = jax.random.PRNGKey(0)
    kx, kp = jax.random.split(key)
    x = jax.random.normal(kx, (N, D, H, W), jnp.float32)
    params = init_params(kp, D, HDIM, ZDIM)

    out = tower_encoder_forward(x, params, HDIM, ZDIM)
    out = jax.block_until_ready(out)

    assert out.shape == (N, ZDIM * 2, H // 4, W // 4), out.shape
    assert bool(jnp.all((out >= 0.0) & (out <= 1.0)))  # sigmoid range
    assert bool(jnp.all(jnp.isfinite(out)))
    print("KERNEL_OK")
</pallas_src>

<mosaic_0001>
module attributes {stable_mosaic.version = 11 : i64} {
  func.func @_fused_layer_kernel(%arg0: i32, %arg1: memref<64x16xbf16, #tpu.memory_space<vmem>>, %arg2: memref<16x32xbf16, #tpu.memory_space<vmem>>, %arg3: memref<1x32xf32, #tpu.memory_space<vmem>>, %arg4: memref<64x32xbf16, #tpu.memory_space<vmem>>) attributes {dimension_semantics = [#tpu.dimension_semantics<parallel>], iteration_bounds = array<i64: 2>, scalar_prefetch = 0 : i64, scratch_operands = 0 : i64, tpu.core_type = #tpu.core_type<tc>, window_params = [{transform_indices = @transform_0, window_bounds = array<i64: 64, 16>}, {pipeline_mode = #tpu.pipeline_mode<synchronous>, transform_indices = @transform_1, window_bounds = array<i64: 16, 32>}, {pipeline_mode = #tpu.pipeline_mode<synchronous>, transform_indices = @transform_2, window_bounds = array<i64: 1, 32>}, {transform_indices = @transform_3, window_bounds = array<i64: 64, 32>}]} {
    %c0 = arith.constant 0 : index
    %c0_0 = arith.constant 0 : index
    %0 = vector.load %arg1[%c0, %c0_0] : memref<64x16xbf16, #tpu.memory_space<vmem>>, vector<64x16xbf16>
    %c0_1 = arith.constant 0 : index
    %c0_2 = arith.constant 0 : index
    %1 = vector.load %arg2[%c0_1, %c0_2] : memref<16x32xbf16, #tpu.memory_space<vmem>>, vector<16x32xbf16>
    %cst = arith.constant dense<0.000000e+00> : vector<64x32xf32>
    %2 = tpu.matmul %0, %1, %cst {dimension_numbers = #tpu.dot_dimension_numbers<[1], [0], [0], [1], [0, 0, 1, 1], [], []>} : vector<64x16xbf16>, vector<16x32xbf16>, vector<64x32xf32> -> vector<64x32xf32>
    %c0_3 = arith.constant 0 : index
    %c0_4 = arith.constant 0 : index
    %3 = vector.load %arg3[%c0_3, %c0_4] : memref<1x32xf32, #tpu.memory_space<vmem>>, vector<1x32xf32>
    %4 = vector.broadcast %3 : vector<1x32xf32> to vector<64x32xf32>
    %5 = arith.addf %2, %4 : vector<64x32xf32>
    %cst_5 = arith.constant 0.000000e+00 : f32
    %6 = vector.broadcast %cst_5 : f32 to vector<64x32xf32>
    %7 = arith.maximumf %5, %6 : vector<64x32xf32>
    %8 = arith.truncf %7 : vector<64x32xf32> to vector<64x32xbf16>
    %c0_6 = arith.constant 0 : index
    %c0_7 = arith.constant 0 : index
    %9 = vector.load %arg4[%c0_6, %c0_7] : memref<64x32xbf16, #tpu.memory_space<vmem>>, vector<64x32xbf16>
    tpu.vector_store %arg4[%c0_6, %c0_7], %8 {strides = array<i32>} : memref<64x32xbf16, #tpu.memory_space<vmem>>, vector<64x32xbf16>,
    return
  }
  func.func @transform_0(%arg0: i32) -> (i32, i32) {
    %c0_i32 = arith.constant 0 : i32
    %c0_i32_0 = arith.constant 0 : i32
    return %arg0, %c0_i32 : i32, i32
  }
  func.func @transform_1(%arg0: i32) -> (i32, i32) {
    %c0_i32 = arith.constant 0 : i32
    %c0_i32_0 = arith.constant 0 : i32
    %c0_i32_1 = arith.constant 0 : i32
    return %c0_i32, %c0_i32_0 : i32, i32
  }
  func.func @transform_2(%arg0: i32) -> (i32, i32) {
    %c0_i32 = arith.constant 0 : i32
    %c0_i32_0 = arith.constant 0 : i32
    %c0_i32_1 = arith.constant 0 : i32
    return %c0_i32, %c0_i32_0 : i32, i32
  }
  func.func @transform_3(%arg0: i32) -> (i32, i32) {
    %c0_i32 = arith.constant 0 : i32
    %c0_i32_0 = arith.constant 0 : i32
    return %arg0, %c0_i32 : i32, i32
  }
}

module attributes {stable_mosaic.version = 11 : i64} {
  func.func @_fused_layer_kernel(%arg0: i32, %arg1: memref<64x288xbf16, #tpu.memory_space<vmem>>, %arg2: memref<288x16xbf16, #tpu.memory_space<vmem>>, %arg3: memref<1x16xf32, #tpu.memory_space<vmem>>, %arg4: memref<64x16xbf16, #tpu.memory_space<vmem>>) attributes {dimension_semantics = [#tpu.dimension_semantics<parallel>], iteration_bounds = array<i64: 2>, scalar_prefetch = 0 : i64, scratch_operands = 0 : i64, tpu.core_type = #tpu.core_type<tc>, window_params = [{transform_indices = @transform_0, window_bounds = array<i64: 64, 288>}, {pipeline_mode = #tpu.pipeline_mode<synchronous>, transform_indices = @transform_1, window_bounds = array<i64: 288, 16>}, {pipeline_mode = #tpu.pipeline_mode<synchronous>, transform_indices = @transform_2, window_bounds = array<i64: 1, 16>}, {transform_indices = @transform_3, window_bounds = array<i64: 64, 16>}]} {
    %c0 = arith.constant 0 : index
    %c0_0 = arith.constant 0 : index
    %0 = vector.load %arg1[%c0, %c0_0] : memref<64x288xbf16, #tpu.memory_space<vmem>>, vector<64x288xbf16>
    %c0_1 = arith.constant 0 : index
    %c0_2 = arith.constant 0 : index
    %1 = vector.load %arg2[%c0_1, %c0_2] : memref<288x16xbf16, #tpu.memory_space<vmem>>, vector<288x16xbf16>
    %cst = arith.constant dense<0.000000e+00> : vector<64x16xf32>
    %2 = tpu.matmul %0, %1, %cst {dimension_numbers = #tpu.dot_dimension_numbers<[1], [0], [0], [1], [0, 0, 1, 1], [], []>} : vector<64x288xbf16>, vector<288x16xbf16>, vector<64x16xf32> -> vector<64x16xf32>
    %c0_3 = arith.constant 0 : index
    %c0_4 = arith.constant 0 : index
    %3 = vector.load %arg3[%c0_3, %c0_4] : memref<1x16xf32, #tpu.memory_space<vmem>>, vector<1x16xf32>
    %4 = vector.broadcast %3 : vector<1x16xf32> to vector<64x16xf32>
    %5 = arith.addf %2, %4 : vector<64x16xf32>
    %cst_5 = arith.constant 0.000000e+00 : f32
    %6 = vector.broadcast %cst_5 : f32 to vector<64x16xf32>
    %7 = arith.maximumf %5, %6 : vector<64x16xf32>
    %8 = arith.truncf %7 : vector<64x16xf32> to vector<64x16xbf16>
    %c0_6 = arith.constant 0 : index
    %c0_7 = arith.constant 0 : index
    %9 = vector.load %arg4[%c0_6, %c0_7] : memref<64x16xbf16, #tpu.memory_space<vmem>>, vector<64x16xbf16>
    tpu.vector_store %arg4[%c0_6, %c0_7], %8 {strides = array<i32>} : memref<64x16xbf16, #tpu.memory_space<vmem>>, vector<64x16xbf16>,
    return
  }
  func.func @transform_0(%arg0: i32) -> (i32, i32) {
    %c0_i32 = arith.constant 0 : i32
    %c0_i32_0 = arith.constant 0 : i32
    return %arg0, %c0_i32 : i32, i32
  }
  func.func @transform_1(%arg0: i32) -> (i32, i32) {
    %c0_i32 = arith.constant 0 : i32
    %c0_i32_0 = arith.constant 0 : i32
    %c0_i32_1 = arith.constant 0 : i32
    return %c0_i32, %c0_i32_0 : i32, i32
  }
  func.func @transform_2(%arg0: i32) -> (i32, i32) {
    %c0_i32 = arith.constant 0 : i32
    %c0_i32_0 = arith.constant 0 : i32
    %c0_i32_1 = arith.constant 0 : i32
    return %c0_i32, %c0_i32_0 : i32, i32
  }
  func.func @transform_3(%arg0: i32) -> (i32, i32) {
    %c0_i32 = arith.constant 0 : i32
    %c0_i32_0 = arith.constant 0 : i32
    return %arg0, %c0_i32 : i32, i32
  }
}

module attributes {stable_mosaic.version = 11 : i64} {
  func.func @_fused_layer_kernel(%arg0: i32, %arg1: memref<16x128xbf16, #tpu.memory_space<vmem>>, %arg2: memref<128x32xbf16, #tpu.memory_space<vmem>>, %arg3: memref<1x32xf32, #tpu.memory_space<vmem>>, %arg4: memref<16x32xbf16, #tpu.memory_space<vmem>>) attributes {dimension_semantics = [#tpu.dimension_semantics<parallel>], iteration_bounds = array<i64: 2>, scalar_prefetch = 0 : i64, scratch_operands = 0 : i64, tpu.core_type = #tpu.core_type<tc>, window_params = [{transform_indices = @transform_0, window_bounds = array<i64: 16, 128>}, {pipeline_mode = #tpu.pipeline_mode<synchronous>, transform_indices = @transform_1, window_bounds = array<i64: 128, 32>}, {pipeline_mode = #tpu.pipeline_mode<synchronous>, transform_indices = @transform_2, window_bounds = array<i64: 1, 32>}, {transform_indices = @transform_3, window_bounds = array<i64: 16, 32>}]} {
    %c0 = arith.constant 0 : index
    %c0_0 = arith.constant 0 : index
    %0 = vector.load %arg1[%c0, %c0_0] : memref<16x128xbf16, #tpu.memory_space<vmem>>, vector<16x128xbf16>
    %c0_1 = arith.constant 0 : index
    %c0_2 = arith.constant 0 : index
    %1 = vector.load %arg2[%c0_1, %c0_2] : memref<128x32xbf16, #tpu.memory_space<vmem>>, vector<128x32xbf16>
    %cst = arith.constant dense<0.000000e+00> : vector<16x32xf32>
    %2 = tpu.matmul %0, %1, %cst {dimension_numbers = #tpu.dot_dimension_numbers<[1], [0], [0], [1], [0, 0, 1, 1], [], []>} : vector<16x128xbf16>, vector<128x32xbf16>, vector<16x32xf32> -> vector<16x32xf32>
    %c0_3 = arith.constant 0 : index
    %c0_4 = arith.constant 0 : index
    %3 = vector.load %arg3[%c0_3, %c0_4] : memref<1x32xf32, #tpu.memory_space<vmem>>, vector<1x32xf32>
    %4 = vector.broadcast %3 : vector<1x32xf32> to vector<16x32xf32>
    %5 = arith.addf %2, %4 : vector<16x32xf32>
    %6 = arith.truncf %5 : vector<16x32xf32> to vector<16x32xbf16>
    %c0_5 = arith.constant 0 : index
    %c0_6 = arith.constant 0 : index
    %7 = vector.load %arg4[%c0_5, %c0_6] : memref<16x32xbf16, #tpu.memory_space<vmem>>, vector<16x32xbf16>
    tpu.vector_store %arg4[%c0_5, %c0_6], %6 {strides = array<i32>} : memref<16x32xbf16, #tpu.memory_space<vmem>>, vector<16x32xbf16>,
    return
  }
  func.func @transform_0(%arg0: i32) -> (i32, i32) {
    %c0_i32 = arith.constant 0 : i32
    %c0_i32_0 = arith.constant 0 : i32
    return %arg0, %c0_i32 : i32, i32
  }
  func.func @transform_1(%arg0: i32) -> (i32, i32) {
    %c0_i32 = arith.constant 0 : i32
    %c0_i32_0 = arith.constant 0 : i32
    %c0_i32_1 = arith.constant 0 : i32
    return %c0_i32, %c0_i32_0 : i32, i32
  }
  func.func @transform_2(%arg0: i32) -> (i32, i32) {
    %c0_i32 = arith.constant 0 : i32
    %c0_i32_0 = arith.constant 0 : i32
    %c0_i32_1 = arith.constant 0 : i32
    return %c0_i32, %c0_i32_0 : i32, i32
  }
  func.func @transform_3(%arg0: i32) -> (i32, i32) {
    %c0_i32 = arith.constant 0 : i32
    %c0_i32_0 = arith.constant 0 : i32
    return %arg0, %c0_i32 : i32, i32
  }
}

module attributes {stable_mosaic.version = 11 : i64} {
  func.func @_fused_layer_kernel(%arg0: i32, %arg1: memref<16x64xbf16, #tpu.memory_space<vmem>>, %arg2: memref<64x32xbf16, #tpu.memory_space<vmem>>, %arg3: memref<1x32xf32, #tpu.memory_space<vmem>>, %arg4: memref<16x32xbf16, #tpu.memory_space<vmem>>, %arg5: memref<16x32xbf16, #tpu.memory_space<vmem>>) attributes {dimension_semantics = [#tpu.dimension_semantics<parallel>], iteration_bounds = array<i64: 2>, scalar_prefetch = 0 : i64, scratch_operands = 0 : i64, tpu.core_type = #tpu.core_type<tc>, window_params = [{transform_indices = @transform_0, window_bounds = array<i64: 16, 64>}, {pipeline_mode = #tpu.pipeline_mode<synchronous>, transform_indices = @transform_1, window_bounds = array<i64: 64, 32>}, {pipeline_mode = #tpu.pipeline_mode<synchronous>, transform_indices = @transform_2, window_bounds = array<i64: 1, 32>}, {transform_indices = @transform_3, window_bounds = array<i64: 16, 32>}, {transform_indices = @transform_4, window_bounds = array<i64: 16, 32>}]} {
    %c0 = arith.constant 0 : index
    %c0_0 = arith.constant 0 : index
    %0 = vector.load %arg1[%c0, %c0_0] : memref<16x64xbf16, #tpu.memory_space<vmem>>, vector<16x64xbf16>
    %c0_1 = arith.constant 0 : index
    %c0_2 = arith.constant 0 : index
    %1 = vector.load %arg2[%c0_1, %c0_2] : memref<64x32xbf16, #tpu.memory_space<vmem>>, vector<64x32xbf16>
    %cst = arith.constant dense<0.000000e+00> : vector<16x32xf32>
    %2 = tpu.matmul %0, %1, %cst {dimension_numbers = #tpu.dot_dimension_numbers<[1], [0], [0], [1], [0, 0, 1, 1], [], []>} : vector<16x64xbf16>, vector<64x32xbf16>, vector<16x32xf32> -> vector<16x32xf32>
    %c0_3 = arith.constant 0 : index
    %c0_4 = arith.constant 0 : index
    %3 = vector.load %arg3[%c0_3, %c0_4] : memref<1x32xf32, #tpu.memory_space<vmem>>, vector<1x32xf32>
    %4 = vector.broadcast %3 : vector<1x32xf32> to vector<16x32xf32>
    %5 = arith.addf %2, %4 : vector<16x32xf32>
    %c0_5 = arith.constant 0 : index
    %c0_6 = arith.constant 0 : index
    %6 = vector.load %arg4[%c0_5, %c0_6] : memref<16x32xbf16, #tpu.memory_space<vmem>>, vector<16x32xbf16>
    %7 = arith.extf %6 : vector<16x32xbf16> to vector<16x32xf32>
    %8 = arith.addf %5, %7 : vector<16x32xf32>
    %cst_7 = arith.constant 0.000000e+00 : f32
    %9 = vector.broadcast %cst_7 : f32 to vector<16x32xf32>
    %10 = arith.maximumf %8, %9 : vector<16x32xf32>
    %11 = arith.truncf %10 : vector<16x32xf32> to vector<16x32xbf16>
    %c0_8 = arith.constant 0 : index
    %c0_9 = arith.constant 0 : index
    %12 = vector.load %arg5[%c0_8, %c0_9] : memref<16x32xbf16, #tpu.memory_space<vmem>>, vector<16x32xbf16>
    tpu.vector_store %arg5[%c0_8, %c0_9], %11 {strides = array<i32>} : memref<16x32xbf16, #tpu.memory_space<vmem>>, vector<16x32xbf16>,
    return
  }
  func.func @transform_0(%arg0: i32) -> (i32, i32) {
    %c0_i32 = arith.constant 0 : i32
    %c0_i32_0 = arith.constant 0 : i32
    return %arg0, %c0_i32 : i32, i32
  }
  func.func @transform_1(%arg0: i32) -> (i32, i32) {
    %c0_i32 = arith.constant 0 : i32
    %c0_i32_0 = arith.constant 0 : i32
    %c0_i32_1 = arith.constant 0 : i32
    return %c0_i32, %c0_i32_0 : i32, i32
  }
  func.func @transform_2(%arg0: i32) -> (i32, i32) {
    %c0_i32 = arith.constant 0 : i32
    %c0_i32_0 = arith.constant 0 : i32
    %c0_i32_1 = arith.constant 0 : i32
    return %c0_i32, %c0_i32_0 : i32, i32
  }
  func.func @transform_3(%arg0: i32) -> (i32, i32) {
    %c0_i32 = arith.constant 0 : i32
    %c0_i32_0 = arith.constant 0 : i32
    return %arg0, %c0_i32 : i32, i32
  }
  func.func @transform_4(%arg0: i32) -> (i32, i32) {
    %c0_i32 = arith.constant 0 : i32
    %c0_i32_0 = arith.constant 0 : i32
    return %arg0, %c0_i32 : i32, i32
  }
}

module attributes {stable_mosaic.version = 11 : i64} {
  func.func @_fused_layer_kernel(%arg0: i32, %arg1: memref<16x288xbf16, #tpu.memory_space<vmem>>, %arg2: memref<288x16xbf16, #tpu.memory_space<vmem>>, %arg3: memref<1x16xf32, #tpu.memory_space<vmem>>, %arg4: memref<16x16xbf16, #tpu.memory_space<vmem>>) attributes {dimension_semantics = [#tpu.dimension_semantics<parallel>], iteration_bounds = array<i64: 2>, scalar_prefetch = 0 : i64, scratch_operands = 0 : i64, tpu.core_type = #tpu.core_type<tc>, window_params = [{transform_indices = @transform_0, window_bounds = array<i64: 16, 288>}, {pipeline_mode = #tpu.pipeline_mode<synchronous>, transform_indices = @transform_1, window_bounds = array<i64: 288, 16>}, {pipeline_mode = #tpu.pipeline_mode<synchronous>, transform_indices = @transform_2, window_bounds = array<i64: 1, 16>}, {transform_indices = @transform_3, window_bounds = array<i64: 16, 16>}]} {
    %c0 = arith.constant 0 : index
    %c0_0 = arith.constant 0 : index
    %0 = vector.load %arg1[%c0, %c0_0] : memref<16x288xbf16, #tpu.memory_space<vmem>>, vector<16x288xbf16>
    %c0_1 = arith.constant 0 : index
    %c0_2 = arith.constant 0 : index
    %1 = vector.load %arg2[%c0_1, %c0_2] : memref<288x16xbf16, #tpu.memory_space<vmem>>, vector<288x16xbf16>
    %cst = arith.constant dense<0.000000e+00> : vector<16x16xf32>
    %2 = tpu.matmul %0, %1, %cst {dimension_numbers = #tpu.dot_dimension_numbers<[1], [0], [0], [1], [0, 0, 1, 1], [], []>} : vector<16x288xbf16>, vector<288x16xbf16>, vector<16x16xf32> -> vector<16x16xf32>
    %c0_3 = arith.constant 0 : index
    %c0_4 = arith.constant 0 : index
    %3 = vector.load %arg3[%c0_3, %c0_4] : memref<1x16xf32, #tpu.memory_space<vmem>>, vector<1x16xf32>
    %4 = vector.broadcast %3 : vector<1x16xf32> to vector<16x16xf32>
    %5 = arith.addf %2, %4 : vector<16x16xf32>
    %cst_5 = arith.constant 0.000000e+00 : f32
    %6 = vector.broadcast %cst_5 : f32 to vector<16x16xf32>
    %7 = arith.maximumf %5, %6 : vector<16x16xf32>
    %8 = arith.truncf %7 : vector<16x16xf32> to vector<16x16xbf16>
    %c0_6 = arith.constant 0 : index
    %c0_7 = arith.constant 0 : index
    %9 = vector.load %arg4[%c0_6, %c0_7] : memref<16x16xbf16, #tpu.memory_space<vmem>>, vector<16x16xbf16>
    tpu.vector_store %arg4[%c0_6, %c0_7], %8 {strides = array<i32>} : memref<16x16xbf16, #tpu.memory_space<vmem>>, vector<16x16xbf16>,
    return
  }
  func.func @transform_0(%arg0: i32) -> (i32, i32) {
    %c0_i32 = arith.constant 0 : i32
    %c0_i32_0 = arith.constant 0 : i32
    return %arg0, %c0_i32 : i32, i32
  }
  func.func @transform_1(%arg0: i32) -> (i32, i32) {
    %c0_i32 = arith.constant 0 : i32
    %c0_i32_0 = arith.constant 0 : i32
    %c0_i32_1 = arith.constant 0 : i32
    return %c0_i32, %c0_i32_0 : i32, i32
  }
  func.func @transform_2(%arg0: i32) -> (i32, i32) {
    %c0_i32 = arith.constant 0 : i32
    %c0_i32_0 = arith.constant 0 : i32
    %c0_i32_1 = arith.constant 0 : i32
    return %c0_i32, %c0_i32_0 : i32, i32
  }
  func.func @transform_3(%arg0: i32) -> (i32, i32) {
    %c0_i32 = arith.constant 0 : i32
    %c0_i32_0 = arith.constant 0 : i32
    return %arg0, %c0_i32 : i32, i32
  }
}

module attributes {stable_mosaic.version = 11 : i64} {
  func.func @_fused_layer_kernel(%arg0: i32, %arg1: memref<16x288xbf16, #tpu.memory_space<vmem>>, %arg2: memref<288x32xbf16, #tpu.memory_space<vmem>>, %arg3: memref<1x32xf32, #tpu.memory_space<vmem>>, %arg4: memref<16x32xbf16, #tpu.memory_space<vmem>>) attributes {dimension_semantics = [#tpu.dimension_semantics<parallel>], iteration_bounds = array<i64: 2>, scalar_prefetch = 0 : i64, scratch_operands = 0 : i64, tpu.core_type = #tpu.core_type<tc>, window_params = [{transform_indices = @transform_0, window_bounds = array<i64: 16, 288>}, {pipeline_mode = #tpu.pipeline_mode<synchronous>, transform_indices = @transform_1, window_bounds = array<i64: 288, 32>}, {pipeline_mode = #tpu.pipeline_mode<synchronous>, transform_indices = @transform_2, window_bounds = array<i64: 1, 32>}, {transform_indices = @transform_3, window_bounds = array<i64: 16, 32>}]} {
    %c0 = arith.constant 0 : index
    %c0_0 = arith.constant 0 : index
    %0 = vector.load %arg1[%c0, %c0_0] : memref<16x288xbf16, #tpu.memory_space<vmem>>, vector<16x288xbf16>
    %c0_1 = arith.constant 0 : index
    %c0_2 = arith.constant 0 : index
    %1 = vector.load %arg2[%c0_1, %c0_2] : memref<288x32xbf16, #tpu.memory_space<vmem>>, vector<288x32xbf16>
    %cst = arith.constant dense<0.000000e+00> : vector<16x32xf32>
    %2 = tpu.matmul %0, %1, %cst {dimension_numbers = #tpu.dot_dimension_numbers<[1], [0], [0], [1], [0, 0, 1, 1], [], []>} : vector<16x288xbf16>, vector<288x32xbf16>, vector<16x32xf32> -> vector<16x32xf32>
    %c0_3 = arith.constant 0 : index
    %c0_4 = arith.constant 0 : index
    %3 = vector.load %arg3[%c0_3, %c0_4] : memref<1x32xf32, #tpu.memory_space<vmem>>, vector<1x32xf32>
    %4 = vector.broadcast %3 : vector<1x32xf32> to vector<16x32xf32>
    %5 = arith.addf %2, %4 : vector<16x32xf32>
    %6 = arith.truncf %5 : vector<16x32xf32> to vector<16x32xbf16>
    %c0_5 = arith.constant 0 : index
    %c0_6 = arith.constant 0 : index
    %7 = vector.load %arg4[%c0_5, %c0_6] : memref<16x32xbf16, #tpu.memory_space<vmem>>, vector<16x32xbf16>
    tpu.vector_store %arg4[%c0_5, %c0_6], %6 {strides = array<i32>} : memref<16x32xbf16, #tpu.memory_space<vmem>>, vector<16x32xbf16>,
    return
  }
  func.func @transform_0(%arg0: i32) -> (i32, i32) {
    %c0_i32 = arith.constant 0 : i32
    %c0_i32_0 = arith.constant 0 : i32
    return %arg0, %c0_i32 : i32, i32
  }
  func.func @transform_1(%arg0: i32) -> (i32, i32) {
    %c0_i32 = arith.constant 0 : i32
    %c0_i32_0 = arith.constant 0 : i32
    %c0_i32_1 = arith.constant 0 : i32
    return %c0_i32, %c0_i32_0 : i32, i32
  }
  func.func @transform_2(%arg0: i32) -> (i32, i32) {
    %c0_i32 = arith.constant 0 : i32
    %c0_i32_0 = arith.constant 0 : i32
    %c0_i32_1 = arith.constant 0 : i32
    return %c0_i32, %c0_i32_0 : i32, i32
  }
  func.func @transform_3(%arg0: i32) -> (i32, i32) {
    %c0_i32 = arith.constant 0 : i32
    %c0_i32_0 = arith.constant 0 : i32
    return %arg0, %c0_i32 : i32, i32
  }
}

module attributes {stable_mosaic.version = 11 : i64} {
  func.func @_tail_kernel(%arg0: i32, %arg1: memref<16x144xbf16, #tpu.memory_space<vmem>>, %arg2: memref<16x32xbf16, #tpu.memory_space<vmem>>, %arg3: memref<144x32xbf16, #tpu.memory_space<vmem>>, %arg4: memref<1x32xf32, #tpu.memory_space<vmem>>, %arg5: memref<32x32xbf16, #tpu.memory_space<vmem>>, %arg6: memref<1x32xf32, #tpu.memory_space<vmem>>, %arg7: memref<32x32xbf16, #tpu.memory_space<vmem>>, %arg8: memref<1x32xf32, #tpu.memory_space<vmem>>, %arg9: memref<16x32xf32, #tpu.memory_space<vmem>>) attributes {dimension_semantics = [#tpu.dimension_semantics<parallel>], iteration_bounds = array<i64: 2>, scalar_prefetch = 0 : i64, scratch_operands = 0 : i64, tpu.core_type = #tpu.core_type<tc>, window_params = [{transform_indices = @transform_0, window_bounds = array<i64: 16, 144>}, {transform_indices = @transform_1, window_bounds = array<i64: 16, 32>}, {pipeline_mode = #tpu.pipeline_mode<synchronous>, transform_indices = @transform_2, window_bounds = array<i64: 144, 32>}, {pipeline_mode = #tpu.pipeline_mode<synchronous>, transform_indices = @transform_3, window_bounds = array<i64: 1, 32>}, {pipeline_mode = #tpu.pipeline_mode<synchronous>, transform_indices = @transform_4, window_bounds = array<i64: 32, 32>}, {pipeline_mode = #tpu.pipeline_mode<synchronous>, transform_indices = @transform_5, window_bounds = array<i64: 1, 32>}, {pipeline_mode = #tpu.pipeline_mode<synchronous>, transform_indices = @transform_6, window_bounds = array<i64: 32, 32>}, {pipeline_mode = #tpu.pipeline_mode<synchronous>, transform_indices = @transform_7, window_bounds = array<i64: 1, 32>}, {transform_indices = @transform_8, window_bounds = array<i64: 16, 32>}]} {
    %c0 = arith.constant 0 : index
    %c0_0 = arith.constant 0 : index
    %0 = vector.load %arg1[%c0, %c0_0] : memref<16x144xbf16, #tpu.memory_space<vmem>>, vector<16x144xbf16>
    %c0_1 = arith.constant 0 : index
    %c0_2 = arith.constant 0 : index
    %1 = vector.load %arg3[%c0_1, %c0_2] : memref<144x32xbf16, #tpu.memory_space<vmem>>, vector<144x32xbf16>
    %cst = arith.constant dense<0.000000e+00> : vector<16x32xf32>
    %2 = tpu.matmul %0, %1, %cst {dimension_numbers = #tpu.dot_dimension_numbers<[1], [0], [0], [1], [0, 0, 1, 1], [], []>} : vector<16x144xbf16>, vector<144x32xbf16>, vector<16x32xf32> -> vector<16x32xf32>
    %c0_3 = arith.constant 0 : index
    %c0_4 = arith.constant 0 : index
    %3 = vector.load %arg4[%c0_3, %c0_4] : memref<1x32xf32, #tpu.memory_space<vmem>>, vector<1x32xf32>
    %4 = vector.broadcast %3 : vector<1x32xf32> to vector<16x32xf32>
    %5 = arith.addf %2, %4 : vector<16x32xf32>
    %c0_5 = arith.constant 0 : index
    %c0_6 = arith.constant 0 : index
    %6 = vector.load %arg2[%c0_5, %c0_6] : memref<16x32xbf16, #tpu.memory_space<vmem>>, vector<16x32xbf16>
    %7 = arith.extf %6 : vector<16x32xbf16> to vector<16x32xf32>
    %8 = arith.addf %5, %7 : vector<16x32xf32>
    %cst_7 = arith.constant 0.000000e+00 : f32
    %9 = vector.broadcast %cst_7 : f32 to vector<16x32xf32>
    %10 = arith.maximumf %8, %9 : vector<16x32xf32>
    %11 = arith.truncf %10 : vector<16x32xf32> to vector<16x32xbf16>
    %c0_8 = arith.constant 0 : index
    %c0_9 = arith.constant 0 : index
    %12 = vector.load %arg5[%c0_8, %c0_9] : memref<32x32xbf16, #tpu.memory_space<vmem>>, vector<32x32xbf16>
    %cst_10 = arith.constant dense<0.000000e+00> : vector<16x32xf32>
    %13 = tpu.matmul %11, %12, %cst_10 {dimension_numbers = #tpu.dot_dimension_numbers<[1], [0], [0], [1], [0, 0, 1, 1], [], []>} : vector<16x32xbf16>, vector<32x32xbf16>, vector<16x32xf32> -> vector<16x32xf32>
    %c0_11 = arith.constant 0 : index
    %c0_12 = arith.constant 0 : index
    %14 = vector.load %arg6[%c0_11, %c0_12] : memref<1x32xf32, #tpu.memory_space<vmem>>, vector<1x32xf32>
    %15 = vector.broadcast %14 : vector<1x32xf32> to vector<16x32xf32>
    %16 = arith.addf %13, %15 : vector<16x32xf32>
    %cst_13 = arith.constant 0.000000e+00 : f32
    %17 = vector.broadcast %cst_13 : f32 to vector<16x32xf32>
    %18 = arith.maximumf %16, %17 : vector<16x32xf32>
    %19 = arith.truncf %18 : vector<16x32xf32> to vector<16x32xbf16>
    %c0_14 = arith.constant 0 : index
    %c0_15 = arith.constant 0 : index
    %20 = vector.load %arg7[%c0_14, %c0_15] : memref<32x32xbf16, #tpu.memory_space<vmem>>, vector<32x32xbf16>
    %cst_16 = arith.constant dense<0.000000e+00> : vector<16x32xf32>
    %21 = tpu.matmul %19, %20, %cst_16 {dimension_numbers = #tpu.dot_dimension_numbers<[1], [0], [0], [1], [0, 0, 1, 1], [], []>} : vector<16x32xbf16>, vector<32x32xbf16>, vector<16x32xf32> -> vector<16x32xf32>
    %c0_17 = arith.constant 0 : index
    %c0_18 = arith.constant 0 : index
    %22 = vector.load %arg8[%c0_17, %c0_18] : memref<1x32xf32, #tpu.memory_space<vmem>>, vector<1x32xf32>
    %23 = vector.broadcast %22 : vector<1x32xf32> to vector<16x32xf32>
    %24 = arith.addf %21, %23 : vector<16x32xf32>
    %25 = arith.negf %24 : vector<16x32xf32>
    %26 = math.exp %25 : vector<16x32xf32>
    %cst_19 = arith.constant 1.000000e+00 : f32
    %27 = vector.broadcast %cst_19 : f32 to vector<16x32xf32>
    %28 = arith.addf %27, %26 : vector<16x32xf32>
    %29 = arith.divf %27, %28 : vector<16x32xf32>
    %c0_20 = arith.constant 0 : index
    %c0_21 = arith.constant 0 : index
    %30 = vector.load %arg9[%c0_20, %c0_21] : memref<16x32xf32, #tpu.memory_space<vmem>>, vector<16x32xf32>
    tpu.vector_store %arg9[%c0_20, %c0_21], %29 {strides = array<i32>} : memref<16x32xf32, #tpu.memory_space<vmem>>, vector<16x32xf32>,
    return
  }
  func.func @transform_0(%arg0: i32) -> (i32, i32) {
    %c0_i32 = arith.constant 0 : i32
    %c0_i32_0 = arith.constant 0 : i32
    return %arg0, %c0_i32 : i32, i32
  }
  func.func @transform_1(%arg0: i32) -> (i32, i32) {
    %c0_i32 = arith.constant 0 : i32
    %c0_i32_0 = arith.constant 0 : i32
    return %arg0, %c0_i32 : i32, i32
  }
  func.func @transform_2(%arg0: i32) -> (i32, i32) {
    %c0_i32 = arith.constant 0 : i32
    %c0_i32_0 = arith.constant 0 : i32
    %c0_i32_1 = arith.constant 0 : i32
    return %c0_i32, %c0_i32_0 : i32, i32
  }
  func.func @transform_3(%arg0: i32) -> (i32, i32) {
    %c0_i32 = arith.constant 0 : i32
    %c0_i32_0 = arith.constant 0 : i32
    %c0_i32_1 = arith.constant 0 : i32
    return %c0_i32, %c0_i32_0 : i32, i32
  }
  func.func @transform_4(%arg0: i32) -> (i32, i32) {
    %c0_i32 = arith.constant 0 : i32
    %c0_i32_0 = arith.constant 0 : i32
    %c0_i32_1 = arith.constant 0 : i32
    return %c0_i32, %c0_i32_0 : i32, i32
  }
  func.func @transform_5(%arg0: i32) -> (i32, i32) {
    %c0_i32 = arith.constant 0 : i32
    %c0_i32_0 = arith.constant 0 : i32
    %c0_i32_1 = arith.constant 0 : i32
    return %c0_i32, %c0_i32_0 : i32, i32
  }
  func.func @transform_6(%arg0: i32) -> (i32, i32) {
    %c0_i32 = arith.constant 0 : i32
    %c0_i32_0 = arith.constant 0 : i32
    %c0_i32_1 = arith.constant 0 : i32
    return %c0_i32, %c0_i32_0 : i32, i32
  }
  func.func @transform_7(%arg0: i32) -> (i32, i32) {
    %c0_i32 = arith.constant 0 : i32
    %c0_i32_0 = arith.constant 0 : i32
    %c0_i32_1 = arith.constant 0 : i32
    return %c0_i32, %c0_i32_0 : i32, i32
  }
  func.func @transform_8(%arg0: i32) -> (i32, i32) {
    %c0_i32 = arith.constant 0 : i32
    %c0_i32_0 = arith.constant 0 : i32
    return %arg0, %c0_i32 : i32, i32
  }
}

</mosaic_0001>

<llo_original>
// kernel: tower_encoder_forward.7
$region0: #{tower_encoder_forward.7}
  #allocation0 [shape = 'u32[]', space=smem, size = 0x4, offset = 0x4, fixed_abs, tag = 'smem constant byte address 0x4 - core index']
  #allocation1 [shape = 'u32[72,128]{1,0:T(1,128)}', space=vmem, size = 0x9000, scoped, tag = 'internal scratch']
  %s0 = inlined_call_operand.vmem [shape: bf16[128,16], index: 0, kind: input, shape index: {}]
  %s1 = inlined_call_operand.vmem [shape: bf16[16,32], index: 1, kind: input, shape index: {}]
  %s2 = inlined_call_operand.vmem [shape: f32[1,32], index: 2, kind: input, shape index: {}]
  %s3 = inlined_call_operand.vmem [shape: bf16[128,32], index: 3, kind: output, shape index: {}]
  %s4 = sld [smem:[#allocation0]]
  $region45: #{tower_encoder_forward.7} parent=0
    _
  %s6 = ssub.s32 1, %s4
  %s7 = scalar_select 0, %s6, %s4
  loop: start=0, step=1, limit=4
  $region2: #{tower_encoder_forward.7} parent=0 // loop_pre_header
    _
  $region3: #{tower_encoder_forward.7} parent=0 // loop_header
    %s9 = sphi 0, %s13
    %p10 = scmp.ge.s32.totalorder %s9, 4
    %s19 = sphi 0, %s21
    %s22 = sphi 0, %s19
    %s23 = sphi 0, %s22
    %s39 = sphi 0, %s23
    %s43 = sphi 0, %s43
    %s45 = sphi 0, %s43
    %s46 = sphi 0, %s45
    %s60 = sphi 0, %s46
    %s64 = sphi 0, %s64
    %s66 = sphi 0, %s64
    %s67 = sphi 0, %s66
    %s81 = sphi 0, %s67
    %s87 = sphi 0, %s89
    %s90 = sphi 0, %s87
    %s91 = sphi 0, %s90
    %s107 = sphi 0, %s91
  $region4: #{tower_encoder_forward.7} parent=0 // loop_header_branch
    %12 = sbr.rel (%p10) target = $region8
  $region5: #{tower_encoder_forward.7} parent=0 // loop_body
    %s14 = ssub.s32 %s9, 1
    %s15 = ssub.s32 %s9, 2
    %s16 = sadd.s32 %s9, 1
    %s17 = ssub.s32 %s9, %s16
    %p18 = scmp.eq.s32.totalorder %s17, 0
    %s20 = sadd.s32 %s19, 1
    %s21 = scalar_select %p18, %s19, %s20
    %p24 = pneg %p18
    %p25 = scmp.eq.s32.totalorder %s9, 1
    %p26 = por %p24, %p25
    %p27 = scmp.ne.s32.totalorder %s19, %s22
    %p28 = scmp.eq.s32.totalorder %s9, 0
    %p29 = por %p27, %p28
    %p30 = scmp.ne.s32.totalorder %s19, %s22
    %p31 = scmp.eq.s32.totalorder %s14, 1
    %p32 = por %p30, %p31
    %p33 = scmp.ne.s32.totalorder %s22, %s23
    %p34 = scmp.eq.s32.totalorder %s14, 0
    %p35 = por %p33, %p34
    %p36 = scmp.ne.s32.totalorder %s22, %s23
    %p37 = scmp.eq.s32.totalorder %s15, 1
    %p38 = por %p36, %p37
    %p40 = scmp.ne.s32.totalorder %s23, %s39
    %p41 = scmp.eq.s32.totalorder %s15, 0
    %p42 = por %p40, %p41
    %s44 = sadd.s32 %s43, 1
    %p47 = scmp.eq.s32.totalorder %s9, 1
    %p48 = scmp.ne.s32.totalorder %s43, %s45
    %p49 = scmp.eq.s32.totalorder %s9, 0
    %p50 = por %p48, %p49
    %p51 = scmp.ne.s32.totalorder %s43, %s45
    %p52 = scmp.eq.s32.totalorder %s14, 1
    %p53 = por %p51, %p52
    %p54 = scmp.ne.s32.totalorder %s45, %s46
    %p55 = scmp.eq.s32.totalorder %s14, 0
    %p56 = por %p54, %p55
    %p57 = scmp.ne.s32.totalorder %s45, %s46
    %p58 = scmp.eq.s32.totalorder %s15, 1
    %p59 = por %p57, %p58
    %p61 = scmp.ne.s32.totalorder %s46, %s60
    %p62 = scmp.eq.s32.totalorder %s15, 0
    %p63 = por %p61, %p62
    %s65 = sadd.s32 %s64, 1
    %p68 = scmp.eq.s32.totalorder %s9, 1
    %p69 = scmp.ne.s32.totalorder %s64, %s66
    %p70 = scmp.eq.s32.totalorder %s9, 0
    %p71 = por %p69, %p70
    %p72 = scmp.ne.s32.totalorder %s64, %s66
    %p73 = scmp.eq.s32.totalorder %s14, 1
    %p74 = por %p72, %p73
    %p75 = scmp.ne.s32.totalorder %s66, %s67
    %p76 = scmp.eq.s32.totalorder %s14, 0
    %p77 = por %p75, %p76
    %p78 = scmp.ne.s32.totalorder %s66, %s67
    %p79 = scmp.eq.s32.totalorder %s15, 1
    %p80 = por %p78, %p79
    %p82 = scmp.ne.s32.totalorder %s67, %s81
    %p83 = scmp.eq.s32.totalorder %s15, 0
    %p84 = por %p82, %p83
    %s85 = ssub.s32 %s9, %s16
    %p86 = scmp.eq.s32.totalorder %s85, 0
    %s88 = sadd.s32 %s87, 1
    %s89 = scalar_select %p86, %s87, %s88
    %p92 = pneg %p86
    %p93 = scmp.eq.s32.totalorder %s9, 1
    %p94 = por %p92, %p93
    %p95 = scmp.ne.s32.totalorder %s87, %s90
    %p96 = scmp.eq.s32.totalorder %s9, 0
    %p97 = por %p95, %p96
    %p98 = scmp.ne.s32.totalorder %s87, %s90
    %p99 = scmp.eq.s32.totalorder %s14, 1
    %p100 = por %p98, %p99
    %p101 = scmp.ne.s32.totalorder %s90, %s91
    %p102 = scmp.eq.s32.totalorder %s14, 0
    %p103 = por %p101, %p102
    %p104 = scmp.ne.s32.totalorder %s90, %s91
    %p105 = scmp.eq.s32.totalorder %s15, 1
    %p106 = por %p104, %p105
    %p108 = scmp.ne.s32.totalorder %s91, %s107
    %p109 = scmp.eq.s32.totalorder %s15, 0
    %p110 = por %p108, %p109
    %p111 = scmp.le.s32.totalorder 1, %s9
    %p112 = scmp.lt.s32.totalorder %s9, 3
    %p113 = pnand %p111, %p112
    %p114 = pneg %p113
    // Predicated region
    $region9: #{tower_encoder_forward.7} parent=5 // pred_check
      _
    $region10: #{tower_encoder_forward.7} parent=5 // pred_check_branch
      %116 = sbr.rel (%p113) target = $region12
    $region11: #{tower_encoder_forward.7} parent=5 // pred_region
      %s117 = ssub.s32 %s9, 1
      // Predicated region
      $region13: #{tower_encoder_forward.7} parent=11 // pred_check
        %p118 = pneg %p56
      $region14: #{tower_encoder_forward.7} parent=11 // pred_check_branch
        %120 = sbr.rel (%p118) target = $region16
      $region15: #{tower_encoder_forward.7} parent=11 // pred_region
        _
      $region16: #{tower_encoder_forward.7} parent=11 // pred_fallthru
        _
      // Predicated region
      $region17: #{tower_encoder_forward.7} parent=11 // pred_check
        %p121 = pneg %p77
      $region18: #{tower_encoder_forward.7} parent=11 // pred_check_branch
        %123 = sbr.rel (%p121) target = $region20
      $region19: #{tower_encoder_forward.7} parent=11 // pred_region
        _
      $region20: #{tower_encoder_forward.7} parent=11 // pred_fallthru
        _
    $region12: #{tower_encoder_forward.7} parent=5 // pred_fallthru
      _
    %p124 = scmp.lt.s32.totalorder %s9, 2
    // Predicated region
    $region21: #{tower_encoder_forward.7} parent=5 // pred_check
      %p125 = pneg %p124
    $region22: #{tower_encoder_forward.7} parent=5 // pred_check_branch
      %127 = sbr.rel (%p125) target = $region24
    $region23: #{tower_encoder_forward.7} parent=5 // pred_region
      // Predicated region
      $region25: #{tower_encoder_forward.7} parent=23 // pred_check
        %p128 = pneg %p29
      $region26: #{tower_encoder_forward.7} parent=23 // pred_check_branch
        %130 = sbr.rel (%p128) target = $region28
      $region27: #{tower_encoder_forward.7} parent=23 // pred_region
        %s131 = smul.u32 8, %s9
        %p132 = scmp.lt.s32.totalorder %s131, 15
        %s133 = scalar_select %p132, %s131, 15
        %s134 = smul.addr %s133, 4
        %s135 = scalar_lea.vmem %s0, %s134
        %s136 = smul.u32 8, %s9
      $region28: #{tower_encoder_forward.7} parent=23 // pred_fallthru
        _
    $region24: #{tower_encoder_forward.7} parent=5 // pred_fallthru
      _
    %p137 = scmp.le.s32.totalorder 1, %s9
    %p138 = scmp.lt.s32.totalorder %s9, 3
    %p139 = pnand %p137, %p138
    %p140 = pneg %p139
    // Predicated region
    $region29: #{tower_encoder_forward.7} parent=5 // pred_check
      _
    $region30: #{tower_encoder_forward.7} parent=5 // pred_check_branch
      %142 = sbr.rel (%p139) target = $region32
    $region31: #{tower_encoder_forward.7} parent=5 // pred_region
      %s143 = ssub.s32 %s9, 1
      %s144 = smul.u32 8, %s14
      %p145 = scmp.lt.s32.totalorder %s144, 15
      %s146 = scalar_select %p145, %s144, 15
      %s147 = smul.addr %s146, 4
      %s148 = scalar_lea.vmem %s0, %s147
      %p149 = pneg %p35
      %p150 = pneg %p32
      %p151 = pneg %p56
      %p152 = pneg %p53
      %p153 = pneg %p77
      %p154 = pneg %p74
      %p155 = pneg %p103
      %p156 = pneg %p100
      %s157 = smul.u32 8, %s14
      %p158 = scmp.lt.s32.totalorder %s157, 15
      %s159 = scalar_select %p158, %s157, 15
      %s160 = smul.addr %s159, 4
      %s161 = scalar_lea.vmem %s3, %s160
      %s162 = smul.u32 8, %s14
      %p163 = scmp.lt.s32.totalorder %s162, 15
      %s164 = scalar_select %p163, %s162, 15
      %s165 = smul.addr %s164, 4
      %s166 = scalar_lea.vmem %s0, %s165
      %s167 = smul.u32 8, %s14
      %s168 = smul.u32 8, %s14
      %p169 = scmp.lt.s32.totalorder %s168, 15
      %s170 = scalar_select %p169, %s168, 15
      %s171 = smul.addr %s170, 4
      %s172 = scalar_lea.vmem %s3, %s171
      %s173 = smul.u32 8, %s14
      %v175 = vld [vmem:[%s166] sm:$0xf]
      %v176 = vld [vmem:[%s166 + $0x4] sm:$0xf]
      %v177 = vld [vmem:[%s166 + $0x8] sm:$0xf]
      %v178 = vld [vmem:[%s166 + $0xc] sm:$0xf]
      %v179 = vld [vmem:[%s166 + $0x10] sm:$0xf]
      %v180 = vld [vmem:[%s166 + $0x14] sm:$0xf]
      %v181 = vld [vmem:[%s166 + $0x18] sm:$0xf]
      %v182 = vld [vmem:[%s166 + $0x1c] sm:$0xf]
      %v183 = vld [vmem:[%s1] sm:$0xf]
      %v184 = vld [vmem:[%s1 + $0x4] sm:$0xf]
      %v185 = vld [vmem:[%s2] sm:$0x1]
      %v187 = vperm.slane %v185, 0
      %v197 = vunpack.c.l.b16 %v175
      %v198 = vunpack.c.l.b16 %v176
      %v199 = vunpack.c.l.b16 %v177
      %v200 = vunpack.c.l.b16 %v178
      %v201 = vunpack.c.l.b16 %v179
      %v202 = vunpack.c.l.b16 %v180
      %v203 = vunpack.c.l.b16 %v181
      %v204 = vunpack.c.l.b16 %v182
      %v205 = vpack.c.b16 %v198, %v197
      %v206 = vpack.c.b16 %v200, %v199
      %v207 = vpack.c.b16 %v202, %v201
      %v208 = vpack.c.b16 %v204, %v203
      %v211 = vunpack.c.l.b16 %v183
      %v212 = vunpack.c.l.b16 %v184
      %v213 = vpack.c.b16 %v212, %v211
      %vm215 = vcmask 130048
      %v217 = vsel %vm215, %v205, 0
      %v220 = vsel %vm215, %v206, 0
      %v223 = vsel %vm215, %v207, 0
      %v226 = vsel %vm215, %v208, 0
      %228 = vmatpush.bf16.msra.mxu0 0
      %229 = vmatpush.bf16.msra.mxu0 0
      %230 = vmatpush.bf16.msra.mxu0 0
      %231 = vmatpush.bf16.msra.mxu0 0
      %232 = vmatpush.bf16.msra.mxu0 0
      %233 = vmatpush.bf16.msra.mxu0 0
      %234 = vmatpush.bf16.msra.mxu0 0
      %235 = vmatpush.bf16.msra.mxu0 %v213
      %236 = vmatmul.bf16.gmra.mxu0 %v217
      %v237 = vpop.f32.mrf.mxu0
      %v238 = vadd.f32 %v187, %v237
      %v239 = vpop.f32.mrf.mxu0
      %v240 = vadd.f32 %v187, %v239
      %241 = vmatmul.bf16.gmra.mxu0 %v220
      %v242 = vpop.f32.mrf.mxu0
      %v243 = vadd.f32 %v187, %v242
      %v244 = vpop.f32.mrf.mxu0
      %v245 = vadd.f32 %v187, %v244
      %246 = vmatmul.bf16.gmra.mxu0 %v223
      %v247 = vpop.f32.mrf.mxu0
      %v248 = vadd.f32 %v187, %v247
      %v249 = vpop.f32.mrf.mxu0
      %v250 = vadd.f32 %v187, %v249
      %251 = vmatmul.bf16.gmra.mxu0 %v226
      %v252 = vpop.f32.mrf.mxu0
      %v253 = vadd.f32 %v187, %v252
      %v254 = vpop.f32.mrf.mxu0
      %v255 = vadd.f32 %v187, %v254
      %256 = vdwg.mxu0
      %v257 = vmax.f32 %v238, 0.0
      %v258 = vmax.f32 %v240, 0.0
      %v259 = vmax.f32 %v243, 0.0
      %v260 = vmax.f32 %v245, 0.0
      %v261 = vmax.f32 %v248, 0.0
      %v262 = vmax.f32 %v250, 0.0
      %v263 = vmax.f32 %v253, 0.0
      %v264 = vmax.f32 %v255, 0.0
      %v265 = vpack.c.bf16 %v257, %v257
      %v266 = vpack.c.bf16 %v258, %v258
      %v267 = vpack.c.bf16 %v259, %v259
      %v268 = vpack.c.bf16 %v260, %v260
      %v269 = vpack.c.bf16 %v261, %v261
      %v270 = vpack.c.bf16 %v262, %v262
      %v271 = vpack.c.bf16 %v263, %v263
      %v272 = vpack.c.bf16 %v264, %v264
      %vm273 = vcmask 257024
      %274 = vst.msk [vmem:[%s172] sm:$0xf] %vm273, %v265
      %275 = vst.msk [vmem:[%s172 + $0x4] sm:$0xf] %vm273, %v266
      %276 = vst.msk [vmem:[%s172 + $0x8] sm:$0xf] %vm273, %v267
      %277 = vst.msk [vmem:[%s172 + $0xc] sm:$0xf] %vm273, %v268
      %278 = vst.msk [vmem:[%s172 + $0x10] sm:$0xf] %vm273, %v269
      %279 = vst.msk [vmem:[%s172 + $0x14] sm:$0xf] %vm273, %v270
      %280 = vst.msk [vmem:[%s172 + $0x18] sm:$0xf] %vm273, %v271
      %281 = vst.msk [vmem:[%s172 + $0x1c] sm:$0xf] %vm273, %v272
      %s282 = smul.u32 8, %s14
      %p283 = scmp.lt.s32.totalorder %s282, 15
      %s284 = scalar_select %p283, %s282, 15
      %s285 = smul.addr %s284, 4
      %s286 = scalar_lea.vmem %s3, %s285
      // Predicated region
      $region33: #{tower_encoder_forward.7} parent=31 // pred_check
        %p287 = pneg %p100
      $region34: #{tower_encoder_forward.7} parent=31 // pred_check_branch
        %289 = sbr.rel (%p287) target = $region36
      $region35: #{tower_encoder_forward.7} parent=31 // pred_region
        %s290 = smul.u32 8, %s14
      $region36: #{tower_encoder_forward.7} parent=31 // pred_fallthru
        _
    $region32: #{tower_encoder_forward.7} parent=5 // pred_fallthru
      _
    %p291 = scmp.le.s32.totalorder 2, %s9
    // Predicated region
    $region37: #{tower_encoder_forward.7} parent=5 // pred_check
      %p292 = pneg %p291
    $region38: #{tower_encoder_forward.7} parent=5 // pred_check_branch
      %294 = sbr.rel (%p292) target = $region40
    $region39: #{tower_encoder_forward.7} parent=5 // pred_region
      %s295 = ssub.s32 %s9, 2
      // Predicated region
      $region41: #{tower_encoder_forward.7} parent=39 // pred_check
        %p296 = pneg %p106
      $region42: #{tower_encoder_forward.7} parent=39 // pred_check_branch
        %298 = sbr.rel (%p296) target = $region44
      $region43: #{tower_encoder_forward.7} parent=39 // pred_region
        %s299 = smul.u32 8, %s15
        %p300 = scmp.lt.s32.totalorder %s299, 15
        %s301 = scalar_select %p300, %s299, 15
        %s302 = smul.addr %s301, 4
        %s303 = scalar_lea.vmem %s3, %s302
      $region44: #{tower_encoder_forward.7} parent=39 // pred_fallthru
        _
    $region40: #{tower_encoder_forward.7} parent=5 // pred_fallthru
      _
  $region6: #{tower_encoder_forward.7} parent=0 // loop_footer
    %s13 = sadd.s32 1, %s9
  $region7: #{tower_encoder_forward.7} parent=0 // loop_footer_branch
    %8 = sbr.rel target = $region3
  $region8: #{tower_encoder_forward.7} parent=0 // loop_exit
    _

// kernel: tower_encoder_forward.9
$region0: #{tower_encoder_forward.9}
  #allocation0 [shape = 'u32[]', space=smem, size = 0x4, offset = 0x4, fixed_abs, tag = 'smem constant byte address 0x4 - core index']
  #allocation1 [shape = 'u32[72,128]{1,0:T(1,128)}', space=vmem, size = 0x9000, scoped, tag = 'internal scratch']
  %s0 = inlined_call_operand.vmem [shape: bf16[128,288], index: 0, kind: input, shape index: {}]
  %s1 = inlined_call_operand.vmem [shape: bf16[288,16], index: 1, kind: input, shape index: {}]
  %s2 = inlined_call_operand.vmem [shape: f32[1,16], index: 2, kind: input, shape index: {}]
  %s3 = inlined_call_operand.vmem [shape: bf16[128,16], index: 3, kind: output, shape index: {}]
  %s4 = sld [smem:[#allocation0]]
  $region45: #{tower_encoder_forward.9} parent=0
    _
  %s6 = ssub.s32 1, %s4
  %s7 = scalar_select 0, %s6, %s4
  loop: start=0, step=1, limit=4
  $region2: #{tower_encoder_forward.9} parent=0 // loop_pre_header
    _
  $region3: #{tower_encoder_forward.9} parent=0 // loop_header
    %s9 = sphi 0, %s13
    %p10 = scmp.ge.s32.totalorder %s9, 4
    %s19 = sphi 0, %s21
    %s22 = sphi 0, %s19
    %s23 = sphi 0, %s22
    %s39 = sphi 0, %s23
    %s43 = sphi 0, %s43
    %s45 = sphi 0, %s43
    %s46 = sphi 0, %s45
    %s60 = sphi 0, %s46
    %s64 = sphi 0, %s64
    %s66 = sphi 0, %s64
    %s67 = sphi 0, %s66
    %s81 = sphi 0, %s67
    %s87 = sphi 0, %s89
    %s90 = sphi 0, %s87
    %s91 = sphi 0, %s90
    %s107 = sphi 0, %s91
  $region4: #{tower_encoder_forward.9} parent=0 // loop_header_branch
    %12 = sbr.rel (%p10) target = $region8
  $region5: #{tower_encoder_forward.9} parent=0 // loop_body
    %s14 = ssub.s32 %s9, 1
    %s15 = ssub.s32 %s9, 2
    %s16 = sadd.s32 %s9, 1
    %s17 = ssub.s32 %s9, %s16
    %p18 = scmp.eq.s32.totalorder %s17, 0
    %s20 = sadd.s32 %s19, 1
    %s21 = scalar_select %p18, %s19, %s20
    %p24 = pneg %p18
    %p25 = scmp.eq.s32.totalorder %s9, 1
    %p26 = por %p24, %p25
    %p27 = scmp.ne.s32.totalorder %s19, %s22
    %p28 = scmp.eq.s32.totalorder %s9, 0
    %p29 = por %p27, %p28
    %p30 = scmp.ne.s32.totalorder %s19, %s22
    %p31 = scmp.eq.s32.totalorder %s14, 1
    %p32 = por %p30, %p31
    %p33 = scmp.ne.s32.totalorder %s22, %s23
    %p34 = scmp.eq.s32.totalorder %s14, 0
    %p35 = por %p33, %p34
    %p36 = scmp.ne.s32.totalorder %s22, %s23
    %p37 = scmp.eq.s32.totalorder %s15, 1
    %p38 = por %p36, %p37
    %p40 = scmp.ne.s32.totalorder %s23, %s39
    %p41 = scmp.eq.s32.totalorder %s15, 0
    %p42 = por %p40, %p41
    %s44 = sadd.s32 %s43, 1
    %p47 = scmp.eq.s32.totalorder %s9, 1
    %p48 = scmp.ne.s32.totalorder %s43, %s45
    %p49 = scmp.eq.s32.totalorder %s9, 0
    %p50 = por %p48, %p49
    %p51 = scmp.ne.s32.totalorder %s43, %s45
    %p52 = scmp.eq.s32.totalorder %s14, 1
    %p53 = por %p51, %p52
    %p54 = scmp.ne.s32.totalorder %s45, %s46
    %p55 = scmp.eq.s32.totalorder %s14, 0
    %p56 = por %p54, %p55
    %p57 = scmp.ne.s32.totalorder %s45, %s46
    %p58 = scmp.eq.s32.totalorder %s15, 1
    %p59 = por %p57, %p58
    %p61 = scmp.ne.s32.totalorder %s46, %s60
    %p62 = scmp.eq.s32.totalorder %s15, 0
    %p63 = por %p61, %p62
    %s65 = sadd.s32 %s64, 1
    %p68 = scmp.eq.s32.totalorder %s9, 1
    %p69 = scmp.ne.s32.totalorder %s64, %s66
    %p70 = scmp.eq.s32.totalorder %s9, 0
    %p71 = por %p69, %p70
    %p72 = scmp.ne.s32.totalorder %s64, %s66
    %p73 = scmp.eq.s32.totalorder %s14, 1
    %p74 = por %p72, %p73
    %p75 = scmp.ne.s32.totalorder %s66, %s67
    %p76 = scmp.eq.s32.totalorder %s14, 0
    %p77 = por %p75, %p76
    %p78 = scmp.ne.s32.totalorder %s66, %s67
    %p79 = scmp.eq.s32.totalorder %s15, 1
    %p80 = por %p78, %p79
    %p82 = scmp.ne.s32.totalorder %s67, %s81
    %p83 = scmp.eq.s32.totalorder %s15, 0
    %p84 = por %p82, %p83
    %s85 = ssub.s32 %s9, %s16
    %p86 = scmp.eq.s32.totalorder %s85, 0
    %s88 = sadd.s32 %s87, 1
    %s89 = scalar_select %p86, %s87, %s88
    %p92 = pneg %p86
    %p93 = scmp.eq.s32.totalorder %s9, 1
    %p94 = por %p92, %p93
    %p95 = scmp.ne.s32.totalorder %s87, %s90
    %p96 = scmp.eq.s32.totalorder %s9, 0
    %p97 = por %p95, %p96
    %p98 = scmp.ne.s32.totalorder %s87, %s90
    %p99 = scmp.eq.s32.totalorder %s14, 1
    %p100 = por %p98, %p99
    %p101 = scmp.ne.s32.totalorder %s90, %s91
    %p102 = scmp.eq.s32.totalorder %s14, 0
    %p103 = por %p101, %p102
    %p104 = scmp.ne.s32.totalorder %s90, %s91
    %p105 = scmp.eq.s32.totalorder %s15, 1
    %p106 = por %p104, %p105
    %p108 = scmp.ne.s32.totalorder %s91, %s107
    %p109 = scmp.eq.s32.totalorder %s15, 0
    %p110 = por %p108, %p109
    %p111 = scmp.le.s32.totalorder 1, %s9
    %p112 = scmp.lt.s32.totalorder %s9, 3
    %p113 = pnand %p111, %p112
    %p114 = pneg %p113
    // Predicated region
    $region9: #{tower_encoder_forward.9} parent=5 // pred_check
      _
    $region10: #{tower_encoder_forward.9} parent=5 // pred_check_branch
      %116 = sbr.rel (%p113) target = $region12
    $region11: #{tower_encoder_forward.9} parent=5 // pred_region
      %s117 = ssub.s32 %s9, 1
      // Predicated region
      $region13: #{tower_encoder_forward.9} parent=11 // pred_check
        %p118 = pneg %p56
      $region14: #{tower_encoder_forward.9} parent=11 // pred_check_branch
        %120 = sbr.rel (%p118) target = $region16
      $region15: #{tower_encoder_forward.9} parent=11 // pred_region
        _
      $region16: #{tower_encoder_forward.9} parent=11 // pred_fallthru
        _
      // Predicated region
      $region17: #{tower_encoder_forward.9} parent=11 // pred_check
        %p121 = pneg %p77
      $region18: #{tower_encoder_forward.9} parent=11 // pred_check_branch
        %123 = sbr.rel (%p121) target = $region20
      $region19: #{tower_encoder_forward.9} parent=11 // pred_region
        _
      $region20: #{tower_encoder_forward.9} parent=11 // pred_fallthru
        _
    $region12: #{tower_encoder_forward.9} parent=5 // pred_fallthru
      _
    %p124 = scmp.lt.s32.totalorder %s9, 2
    // Predicated region
    $region21: #{tower_encoder_forward.9} parent=5 // pred_check
      %p125 = pneg %p124
    $region22: #{tower_encoder_forward.9} parent=5 // pred_check_branch
      %127 = sbr.rel (%p125) target = $region24
    $region23: #{tower_encoder_forward.9} parent=5 // pred_region
      // Predicated region
      $region25: #{tower_encoder_forward.9} parent=23 // pred_check
        %p128 = pneg %p29
      $region26: #{tower_encoder_forward.9} parent=23 // pred_check_branch
        %130 = sbr.rel (%p128) target = $region28
      $region27: #{tower_encoder_forward.9} parent=23 // pred_region
        %s131 = smul.u32 8, %s9
        %p132 = scmp.lt.s32.totalorder %s131, 15
        %s133 = scalar_select %p132, %s131, 15
        %s134 = smul.addr %s133, 3
        %s135 = smul.addr %s134, 4
        %s136 = scalar_lea.vmem %s0, %s135
        %s137 = smul.u32 8, %s9
      $region28: #{tower_encoder_forward.9} parent=23 // pred_fallthru
        _
    $region24: #{tower_encoder_forward.9} parent=5 // pred_fallthru
      _
    %p138 = scmp.le.s32.totalorder 1, %s9
    %p139 = scmp.lt.s32.totalorder %s9, 3
    %p140 = pnand %p138, %p139
    %p141 = pneg %p140
    // Predicated region
    $region29: #{tower_encoder_forward.9} parent=5 // pred_check
      _
    $region30: #{tower_encoder_forward.9} parent=5 // pred_check_branch
      %143 = sbr.rel (%p140) target = $region32
    $region31: #{tower_encoder_forward.9} parent=5 // pred_region
      %s144 = ssub.s32 %s9, 1
      %s145 = smul.u32 8, %s14
      %p146 = scmp.lt.s32.totalorder %s145, 15
      %s147 = scalar_select %p146, %s145, 15
      %s148 = smul.addr %s147, 3
      %s149 = smul.addr %s148, 4
      %s150 = scalar_lea.vmem %s0, %s149
      %p151 = pneg %p35
      %p152 = pneg %p32
      %p153 = pneg %p56
      %p154 = pneg %p53
      %p155 = pneg %p77
      %p156 = pneg %p74
      %p157 = pneg %p103
      %p158 = pneg %p100
      %s159 = smul.u32 8, %s14
      %p160 = scmp.lt.s32.totalorder %s159, 15
      %s161 = scalar_select %p160, %s159, 15
      %s162 = smul.addr %s161, 4
      %s163 = scalar_lea.vmem %s3, %s162
      %s164 = smul.u32 8, %s14
      %p165 = scmp.lt.s32.totalorder %s164, 15
      %s166 = scalar_select %p165, %s164, 15
      %s167 = smul.addr %s166, 3
      %s168 = smul.addr %s167, 4
      %s169 = scalar_lea.vmem %s0, %s168
      %s170 = smul.u32 8, %s14
      %s171 = smul.u32 8, %s14
      %p172 = scmp.lt.s32.totalorder %s171, 15
      %s173 = scalar_select %p172, %s171, 15
      %s174 = smul.addr %s173, 4
      %s175 = scalar_lea.vmem %s3, %s174
      %s176 = smul.u32 8, %s14
      %v178 = vld [vmem:[%s169] sm:$0xff]
      %v179 = vld [vmem:[%s169 + $0x8] sm:$0xf]
      %v180 = vld [vmem:[%s169 + $0xc] sm:$0xff]
      %v181 = vld [vmem:[%s169 + $0x14] sm:$0xf]
      %v182 = vld [vmem:[%s169 + $0x18] sm:$0xff]
      %v183 = vld [vmem:[%s169 + $0x20] sm:$0xf]
      %v184 = vld [vmem:[%s169 + $0x24] sm:$0xff]
      %v185 = vld [vmem:[%s169 + $0x2c] sm:$0xf]
      %v186 = vld [vmem:[%s169 + $0x30] sm:$0xff]
      %v187 = vld [vmem:[%s169 + $0x38] sm:$0xf]
      %v188 = vld [vmem:[%s169 + $0x3c] sm:$0xff]
      %v189 = vld [vmem:[%s169 + $0x44] sm:$0xf]
      %v190 = vld [vmem:[%s169 + $0x48] sm:$0xff]
      %v191 = vld [vmem:[%s169 + $0x50] sm:$0xf]
      %v192 = vld [vmem:[%s169 + $0x54] sm:$0xff]
      %v193 = vld [vmem:[%s169 + $0x5c] sm:$0xf]
      %v194 = vld [vmem:[%s1] sm:$0xf]
      %v195 = vld [vmem:[%s1 + $0x4] sm:$0xf]
      %v196 = vld [vmem:[%s1 + $0x8] sm:$0xf]
      %v197 = vld [vmem:[%s1 + $0xc] sm:$0xf]
      %v198 = vld [vmem:[%s1 + $0x10] sm:$0xf]
      %v199 = vld [vmem:[%s1 + $0x14] sm:$0xf]
      %v200 = vld [vmem:[%s1 + $0x18] sm:$0xf]
      %v201 = vld [vmem:[%s1 + $0x1c] sm:$0xf]
      %v202 = vld [vmem:[%s1 + $0x20] sm:$0xf]
      %v203 = vld [vmem:[%s1 + $0x24] sm:$0xf]
      %v204 = vld [vmem:[%s1 + $0x28] sm:$0xf]
      %v205 = vld [vmem:[%s1 + $0x2c] sm:$0xf]
      %v206 = vld [vmem:[%s1 + $0x30] sm:$0xf]
      %v207 = vld [vmem:[%s1 + $0x34] sm:$0xf]
      %v208 = vld [vmem:[%s1 + $0x38] sm:$0xf]
      %v209 = vld [vmem:[%s1 + $0x3c] sm:$0xf]
      %v210 = vld [vmem:[%s1 + $0x40] sm:$0xf]
      %v211 = vld [vmem:[%s1 + $0x44] sm:$0xf]
      %v212 = vld [vmem:[%s1 + $0x48] sm:$0xf]
      %v213 = vld [vmem:[%s1 + $0x4c] sm:$0xf]
      %v214 = vld [vmem:[%s1 + $0x50] sm:$0xf]
      %v215 = vld [vmem:[%s1 + $0x54] sm:$0xf]
      %v216 = vld [vmem:[%s1 + $0x58] sm:$0xf]
      %v217 = vld [vmem:[%s1 + $0x5c] sm:$0xf]
      %v218 = vld [vmem:[%s1 + $0x60] sm:$0xf]
      %v219 = vld [vmem:[%s1 + $0x64] sm:$0xf]
      %v220 = vld [vmem:[%s1 + $0x68] sm:$0xf]
      %v221 = vld [vmem:[%s1 + $0x6c] sm:$0xf]
      %v222 = vld [vmem:[%s1 + $0x70] sm:$0xf]
      %v223 = vld [vmem:[%s1 + $0x74] sm:$0xf]
      %v224 = vld [vmem:[%s1 + $0x78] sm:$0xf]
      %v225 = vld [vmem:[%s1 + $0x7c] sm:$0xf]
      %v226 = vld [vmem:[%s1 + $0x80] sm:$0xf]
      %v227 = vld [vmem:[%s1 + $0x84] sm:$0xf]
      %v228 = vld [vmem:[%s1 + $0x88] sm:$0xf]
      %v229 = vld [vmem:[%s1 + $0x8c] sm:$0xf]
      %v230 = vld [vmem:[%s2] sm:$0x1]
      %v232 = vperm.slane %v230, 0
      %v250 = vunpack.c.l.b16 %v178
      %v251 = vunpack.c.h.b16 %v178
      %v252 = vunpack.c.l.b16 %v179
      %v253 = vunpack.c.l.b16 %v180
      %v254 = vunpack.c.h.b16 %v180
      %v255 = vunpack.c.l.b16 %v181
      %v256 = vunpack.c.l.b16 %v182
      %v257 = vunpack.c.h.b16 %v182
      %v258 = vunpack.c.l.b16 %v183
      %v259 = vunpack.c.l.b16 %v184
      %v260 = vunpack.c.h.b16 %v184
      %v261 = vunpack.c.l.b16 %v185
      %v262 = vunpack.c.l.b16 %v186
      %v263 = vunpack.c.h.b16 %v186
      %v264 = vunpack.c.l.b16 %v187
      %v265 = vunpack.c.l.b16 %v188
      %v266 = vunpack.c.h.b16 %v188
      %v267 = vunpack.c.l.b16 %v189
      %v268 = vunpack.c.l.b16 %v190
      %v269 = vunpack.c.h.b16 %v190
      %v270 = vunpack.c.l.b16 %v191
      %v271 = vunpack.c.l.b16 %v192
      %v272 = vunpack.c.h.b16 %v192
      %v273 = vunpack.c.l.b16 %v193
      %v274 = vpack.c.b16 %v253, %v250
      %v275 = vpack.c.b16 %v254, %v251
      %v276 = vpack.c.b16 %v255, %v252
      %v277 = vpack.c.b16 %v259, %v256
      %v278 = vpack.c.b16 %v260, %v257
      %v279 = vpack.c.b16 %v261, %v258
      %v280 = vpack.c.b16 %v265, %v262
      %v281 = vpack.c.b16 %v266, %v263
      %v282 = vpack.c.b16 %v267, %v264
      %v283 = vpack.c.b16 %v271, %v268
      %v284 = vpack.c.b16 %v272, %v269
      %v285 = vpack.c.b16 %v273, %v270
      %v330 = vunpack.c.l.b16 %v194
      %v331 = vunpack.c.l.b16 %v195
      %v332 = vunpack.c.l.b16 %v196
      %v333 = vunpack.c.l.b16 %v197
      %v334 = vunpack.c.l.b16 %v198
      %v335 = vunpack.c.l.b16 %v199
      %v336 = vunpack.c.l.b16 %v200
      %v337 = vunpack.c.l.b16 %v201
      %v338 = vunpack.c.l.b16 %v202
      %v339 = vunpack.c.l.b16 %v203
      %v340 = vunpack.c.l.b16 %v204
      %v341 = vunpack.c.l.b16 %v205
      %v342 = vunpack.c.l.b16 %v206
      %v343 = vunpack.c.l.b16 %v207
      %v344 = vunpack.c.l.b16 %v208
      %v345 = vunpack.c.l.b16 %v209
      %v346 = vunpack.c.l.b16 %v210
      %v347 = vunpack.c.l.b16 %v211
      %v348 = vunpack.c.l.b16 %v212
      %v349 = vunpack.c.l.b16 %v213
      %v350 = vunpack.c.l.b16 %v214
      %v351 = vunpack.c.l.b16 %v215
      %v352 = vunpack.c.l.b16 %v216
      %v353 = vunpack.c.l.b16 %v217
      %v354 = vunpack.c.l.b16 %v218
      %v355 = vunpack.c.l.b16 %v219
      %v356 = vunpack.c.l.b16 %v220
      %v357 = vunpack.c.l.b16 %v221
      %v358 = vunpack.c.l.b16 %v222
      %v359 = vunpack.c.l.b16 %v223
      %v360 = vunpack.c.l.b16 %v224
      %v361 = vunpack.c.l.b16 %v225
      %v362 = vunpack.c.l.b16 %v226
      %v363 = vunpack.c.l.b16 %v227
      %v364 = vunpack.c.l.b16 %v228
      %v365 = vunpack.c.l.b16 %v229
      %v366 = vpack.c.b16 %v331, %v330
      %v367 = vpack.c.b16 %v333, %v332
      %v368 = vpack.c.b16 %v335, %v334
      %v369 = vpack.c.b16 %v337, %v336
      %v370 = vpack.c.b16 %v339, %v338
      %v371 = vpack.c.b16 %v341, %v340
      %v372 = vpack.c.b16 %v343, %v342
      %v373 = vpack.c.b16 %v345, %v344
      %v374 = vpack.c.b16 %v347, %v346
      %v375 = vpack.c.b16 %v349, %v348
      %v376 = vpack.c.b16 %v351, %v350
      %v377 = vpack.c.b16 %v353, %v352
      %v378 = vpack.c.b16 %v355, %v354
      %v379 = vpack.c.b16 %v357, %v356
      %v380 = vpack.c.b16 %v359, %v358
      %v381 = vpack.c.b16 %v361, %v360
      %v382 = vpack.c.b16 %v363, %v362
      %v383 = vpack.c.b16 %v365, %v364
      %vm402 = vcmask 261120
      %v404 = vsel %vm402, %v276, 0
      %v407 = vsel %vm402, %v279, 0
      %v410 = vsel %vm402, %v282, 0
      %v413 = vsel %vm402, %v285, 0
      %415 = vmatpush.bf16.msra.mxu0 %v373
      %416 = vmatpush.bf16.msra.mxu0 %v372
      %417 = vmatpush.bf16.msra.mxu0 %v371
      %418 = vmatpush.bf16.msra.mxu0 %v370
      %419 = vmatpush.bf16.msra.mxu0 %v369
      %420 = vmatpush.bf16.msra.mxu0 %v368
      %421 = vmatpush.bf16.msra.mxu0 %v367
      %422 = vmatpush.bf16.msra.mxu0 %v366
      %423 = vmatmul.bf16.gmra.mxu0 %v274
      %v424 = vpop.f32.mrf.mxu0
      %v425 = vadd.f32 %v232, %v424
      %v426 = vpop.f32.mrf.mxu0
      %v427 = vadd.f32 %v232, %v426
      %428 = vmatmul.bf16.gmra.mxu0 %v277
      %v429 = vpop.f32.mrf.mxu0
      %v430 = vadd.f32 %v232, %v429
      %v431 = vpop.f32.mrf.mxu0
      %v432 = vadd.f32 %v232, %v431
      %433 = vmatmul.bf16.gmra.mxu0 %v280
      %v434 = vpop.f32.mrf.mxu0
      %v435 = vadd.f32 %v232, %v434
      %v436 = vpop.f32.mrf.mxu0
      %v437 = vadd.f32 %v232, %v436
      %438 = vmatmul.bf16.gmra.mxu0 %v283
      %v439 = vpop.f32.mrf.mxu0
      %v440 = vadd.f32 %v232, %v439
      %v441 = vpop.f32.mrf.mxu0
      %v442 = vadd.f32 %v232, %v441
      %443 = vdwg.mxu0
      %444 = vmatpush.bf16.msra.mxu0 %v381
      %445 = vmatpush.bf16.msra.mxu0 %v380
      %446 = vmatpush.bf16.msra.mxu0 %v379
      %447 = vmatpush.bf16.msra.mxu0 %v378
      %448 = vmatpush.bf16.msra.mxu0 %v377
      %449 = vmatpush.bf16.msra.mxu0 %v376
      %450 = vmatpush.bf16.msra.mxu0 %v375
      %451 = vmatpush.bf16.msra.mxu0 %v374
      %452 = vmatmul.bf16.gmra.mxu0 %v275
      %v453 = vpop.f32.mrf.mxu0
      %v454 = vadd.f32 %v425, %v453
      %v455 = vpop.f32.mrf.mxu0
      %v456 = vadd.f32 %v427, %v455
      %457 = vmatmul.bf16.gmra.mxu0 %v278
      %v458 = vpop.f32.mrf.mxu0
      %v459 = vadd.f32 %v430, %v458
      %v460 = vpop.f32.mrf.mxu0
      %v461 = vadd.f32 %v432, %v460
      %462 = vmatmul.bf16.gmra.mxu0 %v281
      %v463 = vpop.f32.mrf.mxu0
      %v464 = vadd.f32 %v435, %v463
      %v465 = vpop.f32.mrf.mxu0
      %v466 = vadd.f32 %v437, %v465
      %467 = vmatmul.bf16.gmra.mxu0 %v284
      %v468 = vpop.f32.mrf.mxu0
      %v469 = vadd.f32 %v440, %v468
      %v470 = vpop.f32.mrf.mxu0
      %v471 = vadd.f32 %v442, %v470
      %472 = vdwg.mxu0
      %473 = vmatpush.bf16.msra.mxu0 0
      %474 = vmatpush.bf16.msra.mxu0 0
      %475 = vmatpush.bf16.msra.mxu0 0
      %476 = vmatpush.bf16.msra.mxu0 0
      %477 = vmatpush.bf16.msra.mxu0 0
      %478 = vmatpush.bf16.msra.mxu0 0
      %479 = vmatpush.bf16.msra.mxu0 %v383
      %480 = vmatpush.bf16.msra.mxu0 %v382
      %481 = vmatmul.bf16.gmra.mxu0 %v404
      %v482 = vpop.f32.mrf.mxu0
      %v483 = vadd.f32 %v454, %v482
      %v484 = vpop.f32.mrf.mxu0
      %v485 = vadd.f32 %v456, %v484
      %486 = vmatmul.bf16.gmra.mxu0 %v407
      %v487 = vpop.f32.mrf.mxu0
      %v488 = vadd.f32 %v459, %v487
      %v489 = vpop.f32.mrf.mxu0
      %v490 = vadd.f32 %v461, %v489
      %491 = vmatmul.bf16.gmra.mxu0 %v410
      %v492 = vpop.f32.mrf.mxu0
      %v493 = vadd.f32 %v464, %v492
      %v494 = vpop.f32.mrf.mxu0
      %v495 = vadd.f32 %v466, %v494
      %496 = vmatmul.bf16.gmra.mxu0 %v413
      %v497 = vpop.f32.mrf.mxu0
      %v498 = vadd.f32 %v469, %v497
      %v499 = vpop.f32.mrf.mxu0
      %v500 = vadd.f32 %v471, %v499
      %501 = vdwg.mxu0
      %v502 = vmax.f32 %v483, 0.0
      %v503 = vmax.f32 %v485, 0.0
      %v504 = vmax.f32 %v488, 0.0
      %v505 = vmax.f32 %v490, 0.0
      %v506 = vmax.f32 %v493, 0.0
      %v507 = vmax.f32 %v495, 0.0
      %v508 = vmax.f32 %v498, 0.0
      %v509 = vmax.f32 %v500, 0.0
      %v510 = vpack.c.bf16 %v502, %v502
      %v511 = vpack.c.bf16 %v503, %v503
      %v512 = vpack.c.bf16 %v504, %v504
      %v513 = vpack.c.bf16 %v505, %v505
      %v514 = vpack.c.bf16 %v506, %v506
      %v515 = vpack.c.bf16 %v507, %v507
      %v516 = vpack.c.bf16 %v508, %v508
      %v517 = vpack.c.bf16 %v509, %v509
      %vm518 = vcmask 125952
      %519 = vst.msk [vmem:[%s175] sm:$0xf] %vm518, %v510
      %520 = vst.msk [vmem:[%s175 + $0x4] sm:$0xf] %vm518, %v511
      %521 = vst.msk [vmem:[%s175 + $0x8] sm:$0xf] %vm518, %v512
      %522 = vst.msk [vmem:[%s175 + $0xc] sm:$0xf] %vm518, %v513
      %523 = vst.msk [vmem:[%s175 + $0x10] sm:$0xf] %vm518, %v514
      %524 = vst.msk [vmem:[%s175 + $0x14] sm:$0xf] %vm518, %v515
      %525 = vst.msk [vmem:[%s175 + $0x18] sm:$0xf] %vm518, %v516
      %526 = vst.msk [vmem:[%s175 + $0x1c] sm:$0xf] %vm518, %v517
      %s527 = smul.u32 8, %s14
      %p528 = scmp.lt.s32.totalorder %s527, 15
      %s529 = scalar_select %p528, %s527, 15
      %s530 = smul.addr %s529, 4
      %s531 = scalar_lea.vmem %s3, %s530
      // Predicated region
      $region33: #{tower_encoder_forward.9} parent=31 // pred_check
        %p532 = pneg %p100
      $region34: #{tower_encoder_forward.9} parent=31 // pred_check_branch
        %534 = sbr.rel (%p532) target = $region36
      $region35: #{tower_encoder_forward.9} parent=31 // pred_region
        %s535 = smul.u32 8, %s14
      $region36: #{tower_encoder_forward.9} parent=31 // pred_fallthru
        _
    $region32: #{tower_encoder_forward.9} parent=5 // pred_fallthru
      _
    %p536 = scmp.le.s32.totalorder 2, %s9
    // Predicated region
    $region37: #{tower_encoder_forward.9} parent=5 // pred_check
      %p537 = pneg %p536
    $region38: #{tower_encoder_forward.9} parent=5 // pred_check_branch
      %539 = sbr.rel (%p537) target = $region40
    $region39: #{tower_encoder_forward.9} parent=5 // pred_region
      %s540 = ssub.s32 %s9, 2
      // Predicated region
      $region41: #{tower_encoder_forward.9} parent=39 // pred_check
        %p541 = pneg %p106
      $region42: #{tower_encoder_forward.9} parent=39 // pred_check_branch
        %543 = sbr.rel (%p541) target = $region44
      $region43: #{tower_encoder_forward.9} parent=39 // pred_region
        %s544 = smul.u32 8, %s15
        %p545 = scmp.lt.s32.totalorder %s544, 15
        %s546 = scalar_select %p545, %s544, 15
        %s547 = smul.addr %s546, 4
        %s548 = scalar_lea.vmem %s3, %s547
      $region44: #{tower_encoder_forward.9} parent=39 // pred_fallthru
        _
    $region40: #{tower_encoder_forward.9} parent=5 // pred_fallthru
      _
  $region6: #{tower_encoder_forward.9} parent=0 // loop_footer
    %s13 = sadd.s32 1, %s9
  $region7: #{tower_encoder_forward.9} parent=0 // loop_footer_branch
    %8 = sbr.rel target = $region3
  $region8: #{tower_encoder_forward.9} parent=0 // loop_exit
    _

// kernel: tower_encoder_forward.8
$region0: #{tower_encoder_forward.8}
  #allocation0 [shape = 'u32[]', space=smem, size = 0x4, offset = 0x4, fixed_abs, tag = 'smem constant byte address 0x4 - core index']
  #allocation1 [shape = 'u32[72,128]{1,0:T(1,128)}', space=vmem, size = 0x9000, scoped, tag = 'internal scratch']
  %s0 = inlined_call_operand.vmem [shape: bf16[32,128], index: 0, kind: input, shape index: {}]
  %s1 = inlined_call_operand.vmem [shape: bf16[128,32], index: 1, kind: input, shape index: {}]
  %s2 = inlined_call_operand.vmem [shape: f32[1,32], index: 2, kind: input, shape index: {}]
  %s3 = inlined_call_operand.vmem [shape: bf16[32,32], index: 3, kind: output, shape index: {}]
  %s4 = sld [smem:[#allocation0]]
  $region45: #{tower_encoder_forward.8} parent=0
    _
  %s6 = ssub.s32 1, %s4
  %s7 = scalar_select 0, %s6, %s4
  loop: start=0, step=1, limit=4
  $region2: #{tower_encoder_forward.8} parent=0 // loop_pre_header
    _
  $region3: #{tower_encoder_forward.8} parent=0 // loop_header
    %s9 = sphi 0, %s13
    %p10 = scmp.ge.s32.totalorder %s9, 4
    %s19 = sphi 0, %s21
    %s22 = sphi 0, %s19
    %s23 = sphi 0, %s22
    %s39 = sphi 0, %s23
    %s43 = sphi 0, %s43
    %s45 = sphi 0, %s43
    %s46 = sphi 0, %s45
    %s60 = sphi 0, %s46
    %s64 = sphi 0, %s64
    %s66 = sphi 0, %s64
    %s67 = sphi 0, %s66
    %s81 = sphi 0, %s67
    %s87 = sphi 0, %s89
    %s90 = sphi 0, %s87
    %s91 = sphi 0, %s90
    %s107 = sphi 0, %s91
  $region4: #{tower_encoder_forward.8} parent=0 // loop_header_branch
    %12 = sbr.rel (%p10) target = $region8
  $region5: #{tower_encoder_forward.8} parent=0 // loop_body
    %s14 = ssub.s32 %s9, 1
    %s15 = ssub.s32 %s9, 2
    %s16 = sadd.s32 %s9, 1
    %s17 = ssub.s32 %s9, %s16
    %p18 = scmp.eq.s32.totalorder %s17, 0
    %s20 = sadd.s32 %s19, 1
    %s21 = scalar_select %p18, %s19, %s20
    %p24 = pneg %p18
    %p25 = scmp.eq.s32.totalorder %s9, 1
    %p26 = por %p24, %p25
    %p27 = scmp.ne.s32.totalorder %s19, %s22
    %p28 = scmp.eq.s32.totalorder %s9, 0
    %p29 = por %p27, %p28
    %p30 = scmp.ne.s32.totalorder %s19, %s22
    %p31 = scmp.eq.s32.totalorder %s14, 1
    %p32 = por %p30, %p31
    %p33 = scmp.ne.s32.totalorder %s22, %s23
    %p34 = scmp.eq.s32.totalorder %s14, 0
    %p35 = por %p33, %p34
    %p36 = scmp.ne.s32.totalorder %s22, %s23
    %p37 = scmp.eq.s32.totalorder %s15, 1
    %p38 = por %p36, %p37
    %p40 = scmp.ne.s32.totalorder %s23, %s39
    %p41 = scmp.eq.s32.totalorder %s15, 0
    %p42 = por %p40, %p41
    %s44 = sadd.s32 %s43, 1
    %p47 = scmp.eq.s32.totalorder %s9, 1
    %p48 = scmp.ne.s32.totalorder %s43, %s45
    %p49 = scmp.eq.s32.totalorder %s9, 0
    %p50 = por %p48, %p49
    %p51 = scmp.ne.s32.totalorder %s43, %s45
    %p52 = scmp.eq.s32.totalorder %s14, 1
    %p53 = por %p51, %p52
    %p54 = scmp.ne.s32.totalorder %s45, %s46
    %p55 = scmp.eq.s32.totalorder %s14, 0
    %p56 = por %p54, %p55
    %p57 = scmp.ne.s32.totalorder %s45, %s46
    %p58 = scmp.eq.s32.totalorder %s15, 1
    %p59 = por %p57, %p58
    %p61 = scmp.ne.s32.totalorder %s46, %s60
    %p62 = scmp.eq.s32.totalorder %s15, 0
    %p63 = por %p61, %p62
    %s65 = sadd.s32 %s64, 1
    %p68 = scmp.eq.s32.totalorder %s9, 1
    %p69 = scmp.ne.s32.totalorder %s64, %s66
    %p70 = scmp.eq.s32.totalorder %s9, 0
    %p71 = por %p69, %p70
    %p72 = scmp.ne.s32.totalorder %s64, %s66
    %p73 = scmp.eq.s32.totalorder %s14, 1
    %p74 = por %p72, %p73
    %p75 = scmp.ne.s32.totalorder %s66, %s67
    %p76 = scmp.eq.s32.totalorder %s14, 0
    %p77 = por %p75, %p76
    %p78 = scmp.ne.s32.totalorder %s66, %s67
    %p79 = scmp.eq.s32.totalorder %s15, 1
    %p80 = por %p78, %p79
    %p82 = scmp.ne.s32.totalorder %s67, %s81
    %p83 = scmp.eq.s32.totalorder %s15, 0
    %p84 = por %p82, %p83
    %s85 = ssub.s32 %s9, %s16
    %p86 = scmp.eq.s32.totalorder %s85, 0
    %s88 = sadd.s32 %s87, 1
    %s89 = scalar_select %p86, %s87, %s88
    %p92 = pneg %p86
    %p93 = scmp.eq.s32.totalorder %s9, 1
    %p94 = por %p92, %p93
    %p95 = scmp.ne.s32.totalorder %s87, %s90
    %p96 = scmp.eq.s32.totalorder %s9, 0
    %p97 = por %p95, %p96
    %p98 = scmp.ne.s32.totalorder %s87, %s90
    %p99 = scmp.eq.s32.totalorder %s14, 1
    %p100 = por %p98, %p99
    %p101 = scmp.ne.s32.totalorder %s90, %s91
    %p102 = scmp.eq.s32.totalorder %s14, 0
    %p103 = por %p101, %p102
    %p104 = scmp.ne.s32.totalorder %s90, %s91
    %p105 = scmp.eq.s32.totalorder %s15, 1
    %p106 = por %p104, %p105
    %p108 = scmp.ne.s32.totalorder %s91, %s107
    %p109 = scmp.eq.s32.totalorder %s15, 0
    %p110 = por %p108, %p109
    %p111 = scmp.le.s32.totalorder 1, %s9
    %p112 = scmp.lt.s32.totalorder %s9, 3
    %p113 = pnand %p111, %p112
    %p114 = pneg %p113
    // Predicated region
    $region9: #{tower_encoder_forward.8} parent=5 // pred_check
      _
    $region10: #{tower_encoder_forward.8} parent=5 // pred_check_branch
      %116 = sbr.rel (%p113) target = $region12
    $region11: #{tower_encoder_forward.8} parent=5 // pred_region
      %s117 = ssub.s32 %s9, 1
      // Predicated region
      $region13: #{tower_encoder_forward.8} parent=11 // pred_check
        %p118 = pneg %p56
      $region14: #{tower_encoder_forward.8} parent=11 // pred_check_branch
        %120 = sbr.rel (%p118) target = $region16
      $region15: #{tower_encoder_forward.8} parent=11 // pred_region
        _
      $region16: #{tower_encoder_forward.8} parent=11 // pred_fallthru
        _
      // Predicated region
      $region17: #{tower_encoder_forward.8} parent=11 // pred_check
        %p121 = pneg %p77
      $region18: #{tower_encoder_forward.8} parent=11 // pred_check_branch
        %123 = sbr.rel (%p121) target = $region20
      $region19: #{tower_encoder_forward.8} parent=11 // pred_region
        _
      $region20: #{tower_encoder_forward.8} parent=11 // pred_fallthru
        _
    $region12: #{tower_encoder_forward.8} parent=5 // pred_fallthru
      _
    %p124 = scmp.lt.s32.totalorder %s9, 2
    // Predicated region
    $region21: #{tower_encoder_forward.8} parent=5 // pred_check
      %p125 = pneg %p124
    $region22: #{tower_encoder_forward.8} parent=5 // pred_check_branch
      %127 = sbr.rel (%p125) target = $region24
    $region23: #{tower_encoder_forward.8} parent=5 // pred_region
      // Predicated region
      $region25: #{tower_encoder_forward.8} parent=23 // pred_check
        %p128 = pneg %p29
      $region26: #{tower_encoder_forward.8} parent=23 // pred_check_branch
        %130 = sbr.rel (%p128) target = $region28
      $region27: #{tower_encoder_forward.8} parent=23 // pred_region
        %s131 = smul.u32 2, %s9
        %p132 = scmp.lt.s32.totalorder %s131, 3
        %s133 = scalar_select %p132, %s131, 3
        %s134 = smul.addr %s133, 4
        %s135 = scalar_lea.vmem %s0, %s134
        %s136 = smul.u32 2, %s9
      $region28: #{tower_encoder_forward.8} parent=23 // pred_fallthru
        _
    $region24: #{tower_encoder_forward.8} parent=5 // pred_fallthru
      _
    %p137 = scmp.le.s32.totalorder 1, %s9
    %p138 = scmp.lt.s32.totalorder %s9, 3
    %p139 = pnand %p137, %p138
    %p140 = pneg %p139
    // Predicated region
    $region29: #{tower_encoder_forward.8} parent=5 // pred_check
      _
    $region30: #{tower_encoder_forward.8} parent=5 // pred_check_branch
      %142 = sbr.rel (%p139) target = $region32
    $region31: #{tower_encoder_forward.8} parent=5 // pred_region
      %s143 = ssub.s32 %s9, 1
      %s144 = smul.u32 2, %s14
      %p145 = scmp.lt.s32.totalorder %s144, 3
      %s146 = scalar_select %p145, %s144, 3
      %s147 = smul.addr %s146, 4
      %s148 = scalar_lea.vmem %s0, %s147
      %p149 = pneg %p35
      %p150 = pneg %p32
      %p151 = pneg %p56
      %p152 = pneg %p53
      %p153 = pneg %p77
      %p154 = pneg %p74
      %p155 = pneg %p103
      %p156 = pneg %p100
      %s157 = smul.u32 2, %s14
      %p158 = scmp.lt.s32.totalorder %s157, 3
      %s159 = scalar_select %p158, %s157, 3
      %s160 = smul.addr %s159, 4
      %s161 = scalar_lea.vmem %s3, %s160
      %s162 = smul.u32 2, %s14
      %p163 = scmp.lt.s32.totalorder %s162, 3
      %s164 = scalar_select %p163, %s162, 3
      %s165 = smul.addr %s164, 4
      %s166 = scalar_lea.vmem %s0, %s165
      %s167 = smul.u32 2, %s14
      %s168 = smul.u32 2, %s14
      %p169 = scmp.lt.s32.totalorder %s168, 3
      %s170 = scalar_select %p169, %s168, 3
      %s171 = smul.addr %s170, 4
      %s172 = scalar_lea.vmem %s3, %s171
      %s173 = smul.u32 2, %s14
      %v174 = vld [vmem:[%s166] sm:$0xf]
      %v175 = vld [vmem:[%s166 + $0x4] sm:$0xf]
      %v176 = vld [vmem:[%s1] sm:$0xf]
      %v177 = vld [vmem:[%s1 + $0x4] sm:$0xf]
      %v178 = vld [vmem:[%s1 + $0x8] sm:$0xf]
      %v179 = vld [vmem:[%s1 + $0xc] sm:$0xf]
      %v180 = vld [vmem:[%s1 + $0x10] sm:$0xf]
      %v181 = vld [vmem:[%s1 + $0x14] sm:$0xf]
      %v182 = vld [vmem:[%s1 + $0x18] sm:$0xf]
      %v183 = vld [vmem:[%s1 + $0x1c] sm:$0xf]
      %v184 = vld [vmem:[%s1 + $0x20] sm:$0xf]
      %v185 = vld [vmem:[%s1 + $0x24] sm:$0xf]
      %v186 = vld [vmem:[%s1 + $0x28] sm:$0xf]
      %v187 = vld [vmem:[%s1 + $0x2c] sm:$0xf]
      %v188 = vld [vmem:[%s1 + $0x30] sm:$0xf]
      %v189 = vld [vmem:[%s1 + $0x34] sm:$0xf]
      %v190 = vld [vmem:[%s1 + $0x38] sm:$0xf]
      %v191 = vld [vmem:[%s1 + $0x3c] sm:$0xf]
      %v192 = vld [vmem:[%s2] sm:$0x1]
      %v194 = vperm.slane %v192, 0
      %v198 = vunpack.c.l.b16 %v174
      %v199 = vunpack.c.l.b16 %v175
      %v200 = vpack.c.b16 %v199, %v198
      %v218 = vunpack.c.l.b16 %v176
      %v219 = vunpack.c.l.b16 %v177
      %v220 = vunpack.c.l.b16 %v178
      %v221 = vunpack.c.l.b16 %v179
      %v222 = vunpack.c.l.b16 %v180
      %v223 = vunpack.c.l.b16 %v181
      %v224 = vunpack.c.l.b16 %v182
      %v225 = vunpack.c.l.b16 %v183
      %v226 = vunpack.c.l.b16 %v184
      %v227 = vunpack.c.l.b16 %v185
      %v228 = vunpack.c.l.b16 %v186
      %v229 = vunpack.c.l.b16 %v187
      %v230 = vunpack.c.l.b16 %v188
      %v231 = vunpack.c.l.b16 %v189
      %v232 = vunpack.c.l.b16 %v190
      %v233 = vunpack.c.l.b16 %v191
      %v234 = vpack.c.b16 %v219, %v218
      %v235 = vpack.c.b16 %v221, %v220
      %v236 = vpack.c.b16 %v223, %v222
      %v237 = vpack.c.b16 %v225, %v224
      %v238 = vpack.c.b16 %v227, %v226
      %v239 = vpack.c.b16 %v229, %v228
      %v240 = vpack.c.b16 %v231, %v230
      %v241 = vpack.c.b16 %v233, %v232
      %250 = vmatpush.bf16.msra.mxu0 %v241
      %251 = vmatpush.bf16.msra.mxu0 %v240
      %252 = vmatpush.bf16.msra.mxu0 %v239
      %253 = vmatpush.bf16.msra.mxu0 %v238
      %254 = vmatpush.bf16.msra.mxu0 %v237
      %255 = vmatpush.bf16.msra.mxu0 %v236
      %256 = vmatpush.bf16.msra.mxu0 %v235
      %257 = vmatpush.bf16.msra.mxu0 %v234
      %258 = vmatmul.bf16.gmra.mxu0 %v200
      %v259 = vpop.f32.mrf.mxu0
      %v260 = vadd.f32 %v194, %v259
      %v261 = vpop.f32.mrf.mxu0
      %v262 = vadd.f32 %v194, %v261
      %263 = vdwg.mxu0
      %v264 = vpack.c.bf16 %v260, %v260
      %v265 = vpack.c.bf16 %v262, %v262
      %vm266 = vcmask 257024
      %267 = vst.msk [vmem:[%s172] sm:$0xf] %vm266, %v264
      %268 = vst.msk [vmem:[%s172 + $0x4] sm:$0xf] %vm266, %v265
      %s269 = smul.u32 2, %s14
      %p270 = scmp.lt.s32.totalorder %s269, 3
      %s271 = scalar_select %p270, %s269, 3
      %s272 = smul.addr %s271, 4
      %s273 = scalar_lea.vmem %s3, %s272
      // Predicated region
      $region33: #{tower_encoder_forward.8} parent=31 // pred_check
        %p274 = pneg %p100
      $region34: #{tower_encoder_forward.8} parent=31 // pred_check_branch
        %276 = sbr.rel (%p274) target = $region36
      $region35: #{tower_encoder_forward.8} parent=31 // pred_region
        %s277 = smul.u32 2, %s14
      $region36: #{tower_encoder_forward.8} parent=31 // pred_fallthru
        _
    $region32: #{tower_encoder_forward.8} parent=5 // pred_fallthru
      _
    %p278 = scmp.le.s32.totalorder 2, %s9
    // Predicated region
    $region37: #{tower_encoder_forward.8} parent=5 // pred_check
      %p279 = pneg %p278
    $region38: #{tower_encoder_forward.8} parent=5 // pred_check_branch
      %281 = sbr.rel (%p279) target = $region40
    $region39: #{tower_encoder_forward.8} parent=5 // pred_region
      %s282 = ssub.s32 %s9, 2
      // Predicated region
      $region41: #{tower_encoder_forward.8} parent=39 // pred_check
        %p283 = pneg %p106
      $region42: #{tower_encoder_forward.8} parent=39 // pred_check_branch
        %285 = sbr.rel (%p283) target = $region44
      $region43: #{tower_encoder_forward.8} parent=39 // pred_region
        %s286 = smul.u32 2, %s15
        %p287 = scmp.lt.s32.totalorder %s286, 3
        %s288 = scalar_select %p287, %s286, 3
        %s289 = smul.addr %s288, 4
        %s290 = scalar_lea.vmem %s3, %s289
      $region44: #{tower_encoder_forward.8} parent=39 // pred_fallthru
        _
    $region40: #{tower_encoder_forward.8} parent=5 // pred_fallthru
      _
  $region6: #{tower_encoder_forward.8} parent=0 // loop_footer
    %s13 = sadd.s32 1, %s9
  $region7: #{tower_encoder_forward.8} parent=0 // loop_footer_branch
    %8 = sbr.rel target = $region3
  $region8: #{tower_encoder_forward.8} parent=0 // loop_exit
    _

// kernel: tower_encoder_forward.10
$region0: #{tower_encoder_forward.10}
  #allocation0 [shape = 'u32[]', space=smem, size = 0x4, offset = 0x4, fixed_abs, tag = 'smem constant byte address 0x4 - core index']
  #allocation1 [shape = 'u32[72,128]{1,0:T(1,128)}', space=vmem, size = 0x9000, scoped, tag = 'internal scratch']
  %s0 = inlined_call_operand.vmem [shape: bf16[32,64], index: 0, kind: input, shape index: {}]
  %s1 = inlined_call_operand.vmem [shape: bf16[64,32], index: 1, kind: input, shape index: {}]
  %s2 = inlined_call_operand.vmem [shape: f32[1,32], index: 2, kind: input, shape index: {}]
  %s3 = inlined_call_operand.vmem [shape: bf16[32,32], index: 3, kind: input, shape index: {}]
  %s4 = inlined_call_operand.vmem [shape: bf16[32,32], index: 4, kind: output, shape index: {}]
  %s5 = sld [smem:[#allocation0]]
  $region49: #{tower_encoder_forward.10} parent=0
    _
  %s7 = ssub.s32 1, %s5
  %s8 = scalar_select 0, %s7, %s5
  loop: start=0, step=1, limit=4
  $region2: #{tower_encoder_forward.10} parent=0 // loop_pre_header
    _
  $region3: #{tower_encoder_forward.10} parent=0 // loop_header
    %s10 = sphi 0, %s14
    %p11 = scmp.ge.s32.totalorder %s10, 4
    %s20 = sphi 0, %s22
    %s23 = sphi 0, %s20
    %s24 = sphi 0, %s23
    %s40 = sphi 0, %s24
    %s44 = sphi 0, %s44
    %s46 = sphi 0, %s44
    %s47 = sphi 0, %s46
    %s61 = sphi 0, %s47
    %s65 = sphi 0, %s65
    %s67 = sphi 0, %s65
    %s68 = sphi 0, %s67
    %s82 = sphi 0, %s68
    %s88 = sphi 0, %s90
    %s91 = sphi 0, %s88
    %s92 = sphi 0, %s91
    %s108 = sphi 0, %s92
    %s114 = sphi 0, %s116
    %s117 = sphi 0, %s114
    %s118 = sphi 0, %s117
    %s134 = sphi 0, %s118
  $region4: #{tower_encoder_forward.10} parent=0 // loop_header_branch
    %13 = sbr.rel (%p11) target = $region8
  $region5: #{tower_encoder_forward.10} parent=0 // loop_body
    %s15 = ssub.s32 %s10, 1
    %s16 = ssub.s32 %s10, 2
    %s17 = sadd.s32 %s10, 1
    %s18 = ssub.s32 %s10, %s17
    %p19 = scmp.eq.s32.totalorder %s18, 0
    %s21 = sadd.s32 %s20, 1
    %s22 = scalar_select %p19, %s20, %s21
    %p25 = pneg %p19
    %p26 = scmp.eq.s32.totalorder %s10, 1
    %p27 = por %p25, %p26
    %p28 = scmp.ne.s32.totalorder %s20, %s23
    %p29 = scmp.eq.s32.totalorder %s10, 0
    %p30 = por %p28, %p29
    %p31 = scmp.ne.s32.totalorder %s20, %s23
    %p32 = scmp.eq.s32.totalorder %s15, 1
    %p33 = por %p31, %p32
    %p34 = scmp.ne.s32.totalorder %s23, %s24
    %p35 = scmp.eq.s32.totalorder %s15, 0
    %p36 = por %p34, %p35
    %p37 = scmp.ne.s32.totalorder %s23, %s24
    %p38 = scmp.eq.s32.totalorder %s16, 1
    %p39 = por %p37, %p38
    %p41 = scmp.ne.s32.totalorder %s24, %s40
    %p42 = scmp.eq.s32.totalorder %s16, 0
    %p43 = por %p41, %p42
    %s45 = sadd.s32 %s44, 1
    %p48 = scmp.eq.s32.totalorder %s10, 1
    %p49 = scmp.ne.s32.totalorder %s44, %s46
    %p50 = scmp.eq.s32.totalorder %s10, 0
    %p51 = por %p49, %p50
    %p52 = scmp.ne.s32.totalorder %s44, %s46
    %p53 = scmp.eq.s32.totalorder %s15, 1
    %p54 = por %p52, %p53
    %p55 = scmp.ne.s32.totalorder %s46, %s47
    %p56 = scmp.eq.s32.totalorder %s15, 0
    %p57 = por %p55, %p56
    %p58 = scmp.ne.s32.totalorder %s46, %s47
    %p59 = scmp.eq.s32.totalorder %s16, 1
    %p60 = por %p58, %p59
    %p62 = scmp.ne.s32.totalorder %s47, %s61
    %p63 = scmp.eq.s32.totalorder %s16, 0
    %p64 = por %p62, %p63
    %s66 = sadd.s32 %s65, 1
    %p69 = scmp.eq.s32.totalorder %s10, 1
    %p70 = scmp.ne.s32.totalorder %s65, %s67
    %p71 = scmp.eq.s32.totalorder %s10, 0
    %p72 = por %p70, %p71
    %p73 = scmp.ne.s32.totalorder %s65, %s67
    %p74 = scmp.eq.s32.totalorder %s15, 1
    %p75 = por %p73, %p74
    %p76 = scmp.ne.s32.totalorder %s67, %s68
    %p77 = scmp.eq.s32.totalorder %s15, 0
    %p78 = por %p76, %p77
    %p79 = scmp.ne.s32.totalorder %s67, %s68
    %p80 = scmp.eq.s32.totalorder %s16, 1
    %p81 = por %p79, %p80
    %p83 = scmp.ne.s32.totalorder %s68, %s82
    %p84 = scmp.eq.s32.totalorder %s16, 0
    %p85 = por %p83, %p84
    %s86 = ssub.s32 %s10, %s17
    %p87 = scmp.eq.s32.totalorder %s86, 0
    %s89 = sadd.s32 %s88, 1
    %s90 = scalar_select %p87, %s88, %s89
    %p93 = pneg %p87
    %p94 = scmp.eq.s32.totalorder %s10, 1
    %p95 = por %p93, %p94
    %p96 = scmp.ne.s32.totalorder %s88, %s91
    %p97 = scmp.eq.s32.totalorder %s10, 0
    %p98 = por %p96, %p97
    %p99 = scmp.ne.s32.totalorder %s88, %s91
    %p100 = scmp.eq.s32.totalorder %s15, 1
    %p101 = por %p99, %p100
    %p102 = scmp.ne.s32.totalorder %s91, %s92
    %p103 = scmp.eq.s32.totalorder %s15, 0
    %p104 = por %p102, %p103
    %p105 = scmp.ne.s32.totalorder %s91, %s92
    %p106 = scmp.eq.s32.totalorder %s16, 1
    %p107 = por %p105, %p106
    %p109 = scmp.ne.s32.totalorder %s92, %s108
    %p110 = scmp.eq.s32.totalorder %s16, 0
    %p111 = por %p109, %p110
    %s112 = ssub.s32 %s10, %s17
    %p113 = scmp.eq.s32.totalorder %s112, 0
    %s115 = sadd.s32 %s114, 1
    %s116 = scalar_select %p113, %s114, %s115
    %p119 = pneg %p113
    %p120 = scmp.eq.s32.totalorder %s10, 1
    %p121 = por %p119, %p120
    %p122 = scmp.ne.s32.totalorder %s114, %s117
    %p123 = scmp.eq.s32.totalorder %s10, 0
    %p124 = por %p122, %p123
    %p125 = scmp.ne.s32.totalorder %s114, %s117
    %p126 = scmp.eq.s32.totalorder %s15, 1
    %p127 = por %p125, %p126
    %p128 = scmp.ne.s32.totalorder %s117, %s118
    %p129 = scmp.eq.s32.totalorder %s15, 0
    %p130 = por %p128, %p129
    %p131 = scmp.ne.s32.totalorder %s117, %s118
    %p132 = scmp.eq.s32.totalorder %s16, 1
    %p133 = por %p131, %p132
    %p135 = scmp.ne.s32.totalorder %s118, %s134
    %p136 = scmp.eq.s32.totalorder %s16, 0
    %p137 = por %p135, %p136
    %p138 = scmp.le.s32.totalorder 1, %s10
    %p139 = scmp.lt.s32.totalorder %s10, 3
    %p140 = pnand %p138, %p139
    %p141 = pneg %p140
    // Predicated region
    $region9: #{tower_encoder_forward.10} parent=5 // pred_check
      _
    $region10: #{tower_encoder_forward.10} parent=5 // pred_check_branch
      %143 = sbr.rel (%p140) target = $region12
    $region11: #{tower_encoder_forward.10} parent=5 // pred_region
      %s144 = ssub.s32 %s10, 1
      // Predicated region
      $region13: #{tower_encoder_forward.10} parent=11 // pred_check
        %p145 = pneg %p57
      $region14: #{tower_encoder_forward.10} parent=11 // pred_check_branch
        %147 = sbr.rel (%p145) target = $region16
      $region15: #{tower_encoder_forward.10} parent=11 // pred_region
        _
      $region16: #{tower_encoder_forward.10} parent=11 // pred_fallthru
        _
      // Predicated region
      $region17: #{tower_encoder_forward.10} parent=11 // pred_check
        %p148 = pneg %p78
      $region18: #{tower_encoder_forward.10} parent=11 // pred_check_branch
        %150 = sbr.rel (%p148) target = $region20
      $region19: #{tower_encoder_forward.10} parent=11 // pred_region
        _
      $region20: #{tower_encoder_forward.10} parent=11 // pred_fallthru
        _
    $region12: #{tower_encoder_forward.10} parent=5 // pred_fallthru
      _
    %p151 = scmp.lt.s32.totalorder %s10, 2
    // Predicated region
    $region21: #{tower_encoder_forward.10} parent=5 // pred_check
      %p152 = pneg %p151
    $region22: #{tower_encoder_forward.10} parent=5 // pred_check_branch
      %154 = sbr.rel (%p152) target = $region24
    $region23: #{tower_encoder_forward.10} parent=5 // pred_region
      // Predicated region
      $region25: #{tower_encoder_forward.10} parent=23 // pred_check
        %p155 = pneg %p30
      $region26: #{tower_encoder_forward.10} parent=23 // pred_check_branch
        %157 = sbr.rel (%p155) target = $region28
      $region27: #{tower_encoder_forward.10} parent=23 // pred_region
        %s158 = smul.u32 2, %s10
        %p159 = scmp.lt.s32.totalorder %s158, 3
        %s160 = scalar_select %p159, %s158, 3
        %s161 = smul.addr %s160, 4
        %s162 = scalar_lea.vmem %s0, %s161
        %s163 = smul.u32 2, %s10
      $region28: #{tower_encoder_forward.10} parent=23 // pred_fallthru
        _
      // Predicated region
      $region29: #{tower_encoder_forward.10} parent=23 // pred_check
        %p164 = pneg %p98
      $region30: #{tower_encoder_forward.10} parent=23 // pred_check_branch
        %166 = sbr.rel (%p164) target = $region32
      $region31: #{tower_encoder_forward.10} parent=23 // pred_region
        %s167 = smul.u32 2, %s10
        %p168 = scmp.lt.s32.totalorder %s167, 3
        %s169 = scalar_select %p168, %s167, 3
        %s170 = smul.addr %s169, 4
        %s171 = scalar_lea.vmem %s3, %s170
        %s172 = smul.u32 2, %s10
      $region32: #{tower_encoder_forward.10} parent=23 // pred_fallthru
        _
    $region24: #{tower_encoder_forward.10} parent=5 // pred_fallthru
      _
    %p173 = scmp.le.s32.totalorder 1, %s10
    %p174 = scmp.lt.s32.totalorder %s10, 3
    %p175 = pnand %p173, %p174
    %p176 = pneg %p175
    // Predicated region
    $region33: #{tower_encoder_forward.10} parent=5 // pred_check
      _
    $region34: #{tower_encoder_forward.10} parent=5 // pred_check_branch
      %178 = sbr.rel (%p175) target = $region36
    $region35: #{tower_encoder_forward.10} parent=5 // pred_region
      %s179 = ssub.s32 %s10, 1
      %s180 = smul.u32 2, %s15
      %p181 = scmp.lt.s32.totalorder %s180, 3
      %s182 = scalar_select %p181, %s180, 3
      %s183 = smul.addr %s182, 4
      %s184 = scalar_lea.vmem %s0, %s183
      %p185 = pneg %p36
      %p186 = pneg %p33
      %p187 = pneg %p57
      %p188 = pneg %p54
      %p189 = pneg %p78
      %p190 = pneg %p75
      %s191 = smul.u32 2, %s15
      %p192 = scmp.lt.s32.totalorder %s191, 3
      %s193 = scalar_select %p192, %s191, 3
      %s194 = smul.addr %s193, 4
      %s195 = scalar_lea.vmem %s3, %s194
      %p196 = pneg %p104
      %p197 = pneg %p101
      %p198 = pneg %p130
      %p199 = pneg %p127
      %s200 = smul.u32 2, %s15
      %p201 = scmp.lt.s32.totalorder %s200, 3
      %s202 = scalar_select %p201, %s200, 3
      %s203 = smul.addr %s202, 4
      %s204 = scalar_lea.vmem %s4, %s203
      %s205 = smul.u32 2, %s15
      %p206 = scmp.lt.s32.totalorder %s205, 3
      %s207 = scalar_select %p206, %s205, 3
      %s208 = smul.addr %s207, 4
      %s209 = scalar_lea.vmem %s0, %s208
      %s210 = smul.u32 2, %s15
      %s211 = smul.u32 2, %s15
      %p212 = scmp.lt.s32.totalorder %s211, 3
      %s213 = scalar_select %p212, %s211, 3
      %s214 = smul.addr %s213, 4
      %s215 = scalar_lea.vmem %s3, %s214
      %s216 = smul.u32 2, %s15
      %s217 = smul.u32 2, %s15
      %p218 = scmp.lt.s32.totalorder %s217, 3
      %s219 = scalar_select %p218, %s217, 3
      %s220 = smul.addr %s219, 4
      %s221 = scalar_lea.vmem %s4, %s220
      %s222 = smul.u32 2, %s15
      %v224 = vld [vmem:[%s209] sm:$0xf]
      %v225 = vld [vmem:[%s209 + $0x4] sm:$0xf]
      %v226 = vld [vmem:[%s1] sm:$0xf]
      %v227 = vld [vmem:[%s1 + $0x4] sm:$0xf]
      %v228 = vld [vmem:[%s1 + $0x8] sm:$0xf]
      %v229 = vld [vmem:[%s1 + $0xc] sm:$0xf]
      %v230 = vld [vmem:[%s1 + $0x10] sm:$0xf]
      %v231 = vld [vmem:[%s1 + $0x14] sm:$0xf]
      %v232 = vld [vmem:[%s1 + $0x18] sm:$0xf]
      %v233 = vld [vmem:[%s1 + $0x1c] sm:$0xf]
      %v234 = vld [vmem:[%s2] sm:$0x1]
      %v236 = vperm.slane %v234, 0
      %v240 = vunpack.c.l.b16 %v224
      %v241 = vunpack.c.l.b16 %v225
      %v242 = vpack.c.b16 %v241, %v240
      %v251 = vunpack.c.l.b16 %v226
      %v252 = vunpack.c.l.b16 %v227
      %v253 = vunpack.c.l.b16 %v228
      %v254 = vunpack.c.l.b16 %v229
      %v255 = vunpack.c.l.b16 %v230
      %v256 = vunpack.c.l.b16 %v231
      %v257 = vunpack.c.l.b16 %v232
      %v258 = vunpack.c.l.b16 %v233
      %v259 = vpack.c.b16 %v252, %v251
      %v260 = vpack.c.b16 %v254, %v253
      %v261 = vpack.c.b16 %v256, %v255
      %v262 = vpack.c.b16 %v258, %v257
      %vm267 = vcmask 523264
      %v269 = vsel %vm267, %v242, 0
      %271 = vmatpush.bf16.msra.mxu0 0
      %272 = vmatpush.bf16.msra.mxu0 0
      %273 = vmatpush.bf16.msra.mxu0 0
      %274 = vmatpush.bf16.msra.mxu0 0
      %275 = vmatpush.bf16.msra.mxu0 %v262
      %276 = vmatpush.bf16.msra.mxu0 %v261
      %277 = vmatpush.bf16.msra.mxu0 %v260
      %278 = vmatpush.bf16.msra.mxu0 %v259
      %279 = vmatmul.bf16.gmra.mxu0 %v269
      %v280 = vpop.f32.mrf.mxu0
      %v281 = vadd.f32 %v236, %v280
      %v282 = vpop.f32.mrf.mxu0
      %v283 = vadd.f32 %v236, %v282
      %284 = vdwg.mxu0
      %v285 = vld [vmem:[%s215] sm:$0xf]
      %v286 = vld [vmem:[%s215 + $0x4] sm:$0xf]
      %v287 = vunpack.c.l.bf16 %v285
      %v288 = vunpack.c.l.bf16 %v286
      %v289 = vadd.f32 %v281, %v287
      %v290 = vadd.f32 %v283, %v288
      %v291 = vmax.f32 %v289, 0.0
      %v292 = vmax.f32 %v290, 0.0
      %v293 = vpack.c.bf16 %v291, %v291
      %v294 = vpack.c.bf16 %v292, %v292
      %vm295 = vcmask 257024
      %296 = vst.msk [vmem:[%s221] sm:$0xf] %vm295, %v293
      %297 = vst.msk [vmem:[%s221 + $0x4] sm:$0xf] %vm295, %v294
      %s298 = smul.u32 2, %s15
      %p299 = scmp.lt.s32.totalorder %s298, 3
      %s300 = scalar_select %p299, %s298, 3
      %s301 = smul.addr %s300, 4
      %s302 = scalar_lea.vmem %s4, %s301
      // Predicated region
      $region37: #{tower_encoder_forward.10} parent=35 // pred_check
        %p303 = pneg %p127
      $region38: #{tower_encoder_forward.10} parent=35 // pred_check_branch
        %305 = sbr.rel (%p303) target = $region40
      $region39: #{tower_encoder_forward.10} parent=35 // pred_region
        %s306 = smul.u32 2, %s15
      $region40: #{tower_encoder_forward.10} parent=35 // pred_fallthru
        _
    $region36: #{tower_encoder_forward.10} parent=5 // pred_fallthru
      _
    %p307 = scmp.le.s32.totalorder 2, %s10
    // Predicated region
    $region41: #{tower_encoder_forward.10} parent=5 // pred_check
      %p308 = pneg %p307
    $region42: #{tower_encoder_forward.10} parent=5 // pred_check_branch
      %310 = sbr.rel (%p308) target = $region44
    $region43: #{tower_encoder_forward.10} parent=5 // pred_region
      %s311 = ssub.s32 %s10, 2
      // Predicated region
      $region45: #{tower_encoder_forward.10} parent=43 // pred_check
        %p312 = pneg %p133
      $region46: #{tower_encoder_forward.10} parent=43 // pred_check_branch
        %314 = sbr.rel (%p312) target = $region48
      $region47: #{tower_encoder_forward.10} parent=43 // pred_region
        %s315 = smul.u32 2, %s16
        %p316 = scmp.lt.s32.totalorder %s315, 3
        %s317 = scalar_select %p316, %s315, 3
        %s318 = smul.addr %s317, 4
        %s319 = scalar_lea.vmem %s4, %s318
      $region48: #{tower_encoder_forward.10} parent=43 // pred_fallthru
        _
    $region44: #{tower_encoder_forward.10} parent=5 // pred_fallthru
      _
  $region6: #{tower_encoder_forward.10} parent=0 // loop_footer
    %s14 = sadd.s32 1, %s10
  $region7: #{tower_encoder_forward.10} parent=0 // loop_footer_branch
    %9 = sbr.rel target = $region3
  $region8: #{tower_encoder_forward.10} parent=0 // loop_exit
    _

// kernel: tower_encoder_forward.12
$region0: #{tower_encoder_forward.12}
  #allocation0 [shape = 'u32[]', space=smem, size = 0x4, offset = 0x4, fixed_abs, tag = 'smem constant byte address 0x4 - core index']
  #allocation1 [shape = 'u32[72,128]{1,0:T(1,128)}', space=vmem, size = 0x9000, scoped, tag = 'internal scratch']
  %s0 = inlined_call_operand.vmem [shape: bf16[32,288], index: 0, kind: input, shape index: {}]
  %s1 = inlined_call_operand.vmem [shape: bf16[288,16], index: 1, kind: input, shape index: {}]
  %s2 = inlined_call_operand.vmem [shape: f32[1,16], index: 2, kind: input, shape index: {}]
  %s3 = inlined_call_operand.vmem [shape: bf16[32,16], index: 3, kind: output, shape index: {}]
  %s4 = sld [smem:[#allocation0]]
  $region45: #{tower_encoder_forward.12} parent=0
    _
  %s6 = ssub.s32 1, %s4
  %s7 = scalar_select 0, %s6, %s4
  loop: start=0, step=1, limit=4
  $region2: #{tower_encoder_forward.12} parent=0 // loop_pre_header
    _
  $region3: #{tower_encoder_forward.12} parent=0 // loop_header
    %s9 = sphi 0, %s13
    %p10 = scmp.ge.s32.totalorder %s9, 4
    %s19 = sphi 0, %s21
    %s22 = sphi 0, %s19
    %s23 = sphi 0, %s22
    %s39 = sphi 0, %s23
    %s43 = sphi 0, %s43
    %s45 = sphi 0, %s43
    %s46 = sphi 0, %s45
    %s60 = sphi 0, %s46
    %s64 = sphi 0, %s64
    %s66 = sphi 0, %s64
    %s67 = sphi 0, %s66
    %s81 = sphi 0, %s67
    %s87 = sphi 0, %s89
    %s90 = sphi 0, %s87
    %s91 = sphi 0, %s90
    %s107 = sphi 0, %s91
  $region4: #{tower_encoder_forward.12} parent=0 // loop_header_branch
    %12 = sbr.rel (%p10) target = $region8
  $region5: #{tower_encoder_forward.12} parent=0 // loop_body
    %s14 = ssub.s32 %s9, 1
    %s15 = ssub.s32 %s9, 2
    %s16 = sadd.s32 %s9, 1
    %s17 = ssub.s32 %s9, %s16
    %p18 = scmp.eq.s32.totalorder %s17, 0
    %s20 = sadd.s32 %s19, 1
    %s21 = scalar_select %p18, %s19, %s20
    %p24 = pneg %p18
    %p25 = scmp.eq.s32.totalorder %s9, 1
    %p26 = por %p24, %p25
    %p27 = scmp.ne.s32.totalorder %s19, %s22
    %p28 = scmp.eq.s32.totalorder %s9, 0
    %p29 = por %p27, %p28
    %p30 = scmp.ne.s32.totalorder %s19, %s22
    %p31 = scmp.eq.s32.totalorder %s14, 1
    %p32 = por %p30, %p31
    %p33 = scmp.ne.s32.totalorder %s22, %s23
    %p34 = scmp.eq.s32.totalorder %s14, 0
    %p35 = por %p33, %p34
    %p36 = scmp.ne.s32.totalorder %s22, %s23
    %p37 = scmp.eq.s32.totalorder %s15, 1
    %p38 = por %p36, %p37
    %p40 = scmp.ne.s32.totalorder %s23, %s39
    %p41 = scmp.eq.s32.totalorder %s15, 0
    %p42 = por %p40, %p41
    %s44 = sadd.s32 %s43, 1
    %p47 = scmp.eq.s32.totalorder %s9, 1
    %p48 = scmp.ne.s32.totalorder %s43, %s45
    %p49 = scmp.eq.s32.totalorder %s9, 0
    %p50 = por %p48, %p49
    %p51 = scmp.ne.s32.totalorder %s43, %s45
    %p52 = scmp.eq.s32.totalorder %s14, 1
    %p53 = por %p51, %p52
    %p54 = scmp.ne.s32.totalorder %s45, %s46
    %p55 = scmp.eq.s32.totalorder %s14, 0
    %p56 = por %p54, %p55
    %p57 = scmp.ne.s32.totalorder %s45, %s46
    %p58 = scmp.eq.s32.totalorder %s15, 1
    %p59 = por %p57, %p58
    %p61 = scmp.ne.s32.totalorder %s46, %s60
    %p62 = scmp.eq.s32.totalorder %s15, 0
    %p63 = por %p61, %p62
    %s65 = sadd.s32 %s64, 1
    %p68 = scmp.eq.s32.totalorder %s9, 1
    %p69 = scmp.ne.s32.totalorder %s64, %s66
    %p70 = scmp.eq.s32.totalorder %s9, 0
    %p71 = por %p69, %p70
    %p72 = scmp.ne.s32.totalorder %s64, %s66
    %p73 = scmp.eq.s32.totalorder %s14, 1
    %p74 = por %p72, %p73
    %p75 = scmp.ne.s32.totalorder %s66, %s67
    %p76 = scmp.eq.s32.totalorder %s14, 0
    %p77 = por %p75, %p76
    %p78 = scmp.ne.s32.totalorder %s66, %s67
    %p79 = scmp.eq.s32.totalorder %s15, 1
    %p80 = por %p78, %p79
    %p82 = scmp.ne.s32.totalorder %s67, %s81
    %p83 = scmp.eq.s32.totalorder %s15, 0
    %p84 = por %p82, %p83
    %s85 = ssub.s32 %s9, %s16
    %p86 = scmp.eq.s32.totalorder %s85, 0
    %s88 = sadd.s32 %s87, 1
    %s89 = scalar_select %p86, %s87, %s88
    %p92 = pneg %p86
    %p93 = scmp.eq.s32.totalorder %s9, 1
    %p94 = por %p92, %p93
    %p95 = scmp.ne.s32.totalorder %s87, %s90
    %p96 = scmp.eq.s32.totalorder %s9, 0
    %p97 = por %p95, %p96
    %p98 = scmp.ne.s32.totalorder %s87, %s90
    %p99 = scmp.eq.s32.totalorder %s14, 1
    %p100 = por %p98, %p99
    %p101 = scmp.ne.s32.totalorder %s90, %s91
    %p102 = scmp.eq.s32.totalorder %s14, 0
    %p103 = por %p101, %p102
    %p104 = scmp.ne.s32.totalorder %s90, %s91
    %p105 = scmp.eq.s32.totalorder %s15, 1
    %p106 = por %p104, %p105
    %p108 = scmp.ne.s32.totalorder %s91, %s107
    %p109 = scmp.eq.s32.totalorder %s15, 0
    %p110 = por %p108, %p109
    %p111 = scmp.le.s32.totalorder 1, %s9
    %p112 = scmp.lt.s32.totalorder %s9, 3
    %p113 = pnand %p111, %p112
    %p114 = pneg %p113
    // Predicated region
    $region9: #{tower_encoder_forward.12} parent=5 // pred_check
      _
    $region10: #{tower_encoder_forward.12} parent=5 // pred_check_branch
      %116 = sbr.rel (%p113) target = $region12
    $region11: #{tower_encoder_forward.12} parent=5 // pred_region
      %s117 = ssub.s32 %s9, 1
      // Predicated region
      $region13: #{tower_encoder_forward.12} parent=11 // pred_check
        %p118 = pneg %p56
      $region14: #{tower_encoder_forward.12} parent=11 // pred_check_branch
        %120 = sbr.rel (%p118) target = $region16
      $region15: #{tower_encoder_forward.12} parent=11 // pred_region
        _
      $region16: #{tower_encoder_forward.12} parent=11 // pred_fallthru
        _
      // Predicated region
      $region17: #{tower_encoder_forward.12} parent=11 // pred_check
        %p121 = pneg %p77
      $region18: #{tower_encoder_forward.12} parent=11 // pred_check_branch
        %123 = sbr.rel (%p121) target = $region20
      $region19: #{tower_encoder_forward.12} parent=11 // pred_region
        _
      $region20: #{tower_encoder_forward.12} parent=11 // pred_fallthru
        _
    $region12: #{tower_encoder_forward.12} parent=5 // pred_fallthru
      _
    %p124 = scmp.lt.s32.totalorder %s9, 2
    // Predicated region
    $region21: #{tower_encoder_forward.12} parent=5 // pred_check
      %p125 = pneg %p124
    $region22: #{tower_encoder_forward.12} parent=5 // pred_check_branch
      %127 = sbr.rel (%p125) target = $region24
    $region23: #{tower_encoder_forward.12} parent=5 // pred_region
      // Predicated region
      $region25: #{tower_encoder_forward.12} parent=23 // pred_check
        %p128 = pneg %p29
      $region26: #{tower_encoder_forward.12} parent=23 // pred_check_branch
        %130 = sbr.rel (%p128) target = $region28
      $region27: #{tower_encoder_forward.12} parent=23 // pred_region
        %s131 = smul.u32 2, %s9
        %p132 = scmp.lt.s32.totalorder %s131, 3
        %s133 = scalar_select %p132, %s131, 3
        %s134 = smul.addr %s133, 3
        %s135 = smul.addr %s134, 4
        %s136 = scalar_lea.vmem %s0, %s135
        %s137 = smul.u32 2, %s9
      $region28: #{tower_encoder_forward.12} parent=23 // pred_fallthru
        _
    $region24: #{tower_encoder_forward.12} parent=5 // pred_fallthru
      _
    %p138 = scmp.le.s32.totalorder 1, %s9
    %p139 = scmp.lt.s32.totalorder %s9, 3
    %p140 = pnand %p138, %p139
    %p141 = pneg %p140
    // Predicated region
    $region29: #{tower_encoder_forward.12} parent=5 // pred_check
      _
    $region30: #{tower_encoder_forward.12} parent=5 // pred_check_branch
      %143 = sbr.rel (%p140) target = $region32
    $region31: #{tower_encoder_forward.12} parent=5 // pred_region
      %s144 = ssub.s32 %s9, 1
      %s145 = smul.u32 2, %s14
      %p146 = scmp.lt.s32.totalorder %s145, 3
      %s147 = scalar_select %p146, %s145, 3
      %s148 = smul.addr %s147, 3
      %s149 = smul.addr %s148, 4
      %s150 = scalar_lea.vmem %s0, %s149
      %p151 = pneg %p35
      %p152 = pneg %p32
      %p153 = pneg %p56
      %p154 = pneg %p53
      %p155 = pneg %p77
      %p156 = pneg %p74
      %p157 = pneg %p103
      %p158 = pneg %p100
      %s159 = smul.u32 2, %s14
      %p160 = scmp.lt.s32.totalorder %s159, 3
      %s161 = scalar_select %p160, %s159, 3
      %s162 = smul.addr %s161, 4
      %s163 = scalar_lea.vmem %s3, %s162
      %s164 = smul.u32 2, %s14
      %p165 = scmp.lt.s32.totalorder %s164, 3
      %s166 = scalar_select %p165, %s164, 3
      %s167 = smul.addr %s166, 3
      %s168 = smul.addr %s167, 4
      %s169 = scalar_lea.vmem %s0, %s168
      %s170 = smul.u32 2, %s14
      %s171 = smul.u32 2, %s14
      %p172 = scmp.lt.s32.totalorder %s171, 3
      %s173 = scalar_select %p172, %s171, 3
      %s174 = smul.addr %s173, 4
      %s175 = scalar_lea.vmem %s3, %s174
      %s176 = smul.u32 2, %s14
      %v178 = vld [vmem:[%s169] sm:$0xff]
      %v179 = vld [vmem:[%s169 + $0x8] sm:$0xf]
      %v180 = vld [vmem:[%s169 + $0xc] sm:$0xff]
      %v181 = vld [vmem:[%s169 + $0x14] sm:$0xf]
      %v182 = vld [vmem:[%s1] sm:$0xf]
      %v183 = vld [vmem:[%s1 + $0x4] sm:$0xf]
      %v184 = vld [vmem:[%s1 + $0x8] sm:$0xf]
      %v185 = vld [vmem:[%s1 + $0xc] sm:$0xf]
      %v186 = vld [vmem:[%s1 + $0x10] sm:$0xf]
      %v187 = vld [vmem:[%s1 + $0x14] sm:$0xf]
      %v188 = vld [vmem:[%s1 + $0x18] sm:$0xf]
      %v189 = vld [vmem:[%s1 + $0x1c] sm:$0xf]
      %v190 = vld [vmem:[%s1 + $0x20] sm:$0xf]
      %v191 = vld [vmem:[%s1 + $0x24] sm:$0xf]
      %v192 = vld [vmem:[%s1 + $0x28] sm:$0xf]
      %v193 = vld [vmem:[%s1 + $0x2c] sm:$0xf]
      %v194 = vld [vmem:[%s1 + $0x30] sm:$0xf]
      %v195 = vld [vmem:[%s1 + $0x34] sm:$0xf]
      %v196 = vld [vmem:[%s1 + $0x38] sm:$0xf]
      %v197 = vld [vmem:[%s1 + $0x3c] sm:$0xf]
      %v198 = vld [vmem:[%s1 + $0x40] sm:$0xf]
      %v199 = vld [vmem:[%s1 + $0x44] sm:$0xf]
      %v200 = vld [vmem:[%s1 + $0x48] sm:$0xf]
      %v201 = vld [vmem:[%s1 + $0x4c] sm:$0xf]
      %v202 = vld [vmem:[%s1 + $0x50] sm:$0xf]
      %v203 = vld [vmem:[%s1 + $0x54] sm:$0xf]
      %v204 = vld [vmem:[%s1 + $0x58] sm:$0xf]
      %v205 = vld [vmem:[%s1 + $0x5c] sm:$0xf]
      %v206 = vld [vmem:[%s1 + $0x60] sm:$0xf]
      %v207 = vld [vmem:[%s1 + $0x64] sm:$0xf]
      %v208 = vld [vmem:[%s1 + $0x68] sm:$0xf]
      %v209 = vld [vmem:[%s1 + $0x6c] sm:$0xf]
      %v210 = vld [vmem:[%s1 + $0x70] sm:$0xf]
      %v211 = vld [vmem:[%s1 + $0x74] sm:$0xf]
      %v212 = vld [vmem:[%s1 + $0x78] sm:$0xf]
      %v213 = vld [vmem:[%s1 + $0x7c] sm:$0xf]
      %v214 = vld [vmem:[%s1 + $0x80] sm:$0xf]
      %v215 = vld [vmem:[%s1 + $0x84] sm:$0xf]
      %v216 = vld [vmem:[%s1 + $0x88] sm:$0xf]
      %v217 = vld [vmem:[%s1 + $0x8c] sm:$0xf]
      %v218 = vld [vmem:[%s2] sm:$0x1]
      %v220 = vperm.slane %v218, 0
      %v226 = vunpack.c.l.b16 %v178
      %v227 = vunpack.c.h.b16 %v178
      %v228 = vunpack.c.l.b16 %v179
      %v229 = vunpack.c.l.b16 %v180
      %v230 = vunpack.c.h.b16 %v180
      %v231 = vunpack.c.l.b16 %v181
      %v232 = vpack.c.b16 %v229, %v226
      %v233 = vpack.c.b16 %v230, %v227
      %v234 = vpack.c.b16 %v231, %v228
      %v273 = vunpack.c.l.b16 %v182
      %v274 = vunpack.c.l.b16 %v183
      %v275 = vunpack.c.l.b16 %v184
      %v276 = vunpack.c.l.b16 %v185
      %v277 = vunpack.c.l.b16 %v186
      %v278 = vunpack.c.l.b16 %v187
      %v279 = vunpack.c.l.b16 %v188
      %v280 = vunpack.c.l.b16 %v189
      %v281 = vunpack.c.l.b16 %v190
      %v282 = vunpack.c.l.b16 %v191
      %v283 = vunpack.c.l.b16 %v192
      %v284 = vunpack.c.l.b16 %v193
      %v285 = vunpack.c.l.b16 %v194
      %v286 = vunpack.c.l.b16 %v195
      %v287 = vunpack.c.l.b16 %v196
      %v288 = vunpack.c.l.b16 %v197
      %v289 = vunpack.c.l.b16 %v198
      %v290 = vunpack.c.l.b16 %v199
      %v291 = vunpack.c.l.b16 %v200
      %v292 = vunpack.c.l.b16 %v201
      %v293 = vunpack.c.l.b16 %v202
      %v294 = vunpack.c.l.b16 %v203
      %v295 = vunpack.c.l.b16 %v204
      %v296 = vunpack.c.l.b16 %v205
      %v297 = vunpack.c.l.b16 %v206
      %v298 = vunpack.c.l.b16 %v207
      %v299 = vunpack.c.l.b16 %v208
      %v300 = vunpack.c.l.b16 %v209
      %v301 = vunpack.c.l.b16 %v210
      %v302 = vunpack.c.l.b16 %v211
      %v303 = vunpack.c.l.b16 %v212
      %v304 = vunpack.c.l.b16 %v213
      %v305 = vunpack.c.l.b16 %v214
      %v306 = vunpack.c.l.b16 %v215
      %v307 = vunpack.c.l.b16 %v216
      %v308 = vunpack.c.l.b16 %v217
      %v309 = vpack.c.b16 %v274, %v273
      %v310 = vpack.c.b16 %v276, %v275
      %v311 = vpack.c.b16 %v278, %v277
      %v312 = vpack.c.b16 %v280, %v279
      %v313 = vpack.c.b16 %v282, %v281
      %v314 = vpack.c.b16 %v284, %v283
      %v315 = vpack.c.b16 %v286, %v285
      %v316 = vpack.c.b16 %v288, %v287
      %v317 = vpack.c.b16 %v290, %v289
      %v318 = vpack.c.b16 %v292, %v291
      %v319 = vpack.c.b16 %v294, %v293
      %v320 = vpack.c.b16 %v296, %v295
      %v321 = vpack.c.b16 %v298, %v297
      %v322 = vpack.c.b16 %v300, %v299
      %v323 = vpack.c.b16 %v302, %v301
      %v324 = vpack.c.b16 %v304, %v303
      %v325 = vpack.c.b16 %v306, %v305
      %v326 = vpack.c.b16 %v308, %v307
      %vm345 = vcmask 261120
      %v347 = vsel %vm345, %v234, 0
      %349 = vmatpush.bf16.msra.mxu0 %v316
      %350 = vmatpush.bf16.msra.mxu0 %v315
      %351 = vmatpush.bf16.msra.mxu0 %v314
      %352 = vmatpush.bf16.msra.mxu0 %v313
      %353 = vmatpush.bf16.msra.mxu0 %v312
      %354 = vmatpush.bf16.msra.mxu0 %v311
      %355 = vmatpush.bf16.msra.mxu0 %v310
      %356 = vmatpush.bf16.msra.mxu0 %v309
      %357 = vmatmul.bf16.gmra.mxu0 %v232
      %v358 = vpop.f32.mrf.mxu0
      %v359 = vadd.f32 %v220, %v358
      %v360 = vpop.f32.mrf.mxu0
      %v361 = vadd.f32 %v220, %v360
      %362 = vdwg.mxu0
      %363 = vmatpush.bf16.msra.mxu0 %v324
      %364 = vmatpush.bf16.msra.mxu0 %v323
      %365 = vmatpush.bf16.msra.mxu0 %v322
      %366 = vmatpush.bf16.msra.mxu0 %v321
      %367 = vmatpush.bf16.msra.mxu0 %v320
      %368 = vmatpush.bf16.msra.mxu0 %v319
      %369 = vmatpush.bf16.msra.mxu0 %v318
      %370 = vmatpush.bf16.msra.mxu0 %v317
      %371 = vmatmul.bf16.gmra.mxu0 %v233
      %v372 = vpop.f32.mrf.mxu0
      %v373 = vadd.f32 %v359, %v372
      %v374 = vpop.f32.mrf.mxu0
      %v375 = vadd.f32 %v361, %v374
      %376 = vdwg.mxu0
      %377 = vmatpush.bf16.msra.mxu0 0
      %378 = vmatpush.bf16.msra.mxu0 0
      %379 = vmatpush.bf16.msra.mxu0 0
      %380 = vmatpush.bf16.msra.mxu0 0
      %381 = vmatpush.bf16.msra.mxu0 0
      %382 = vmatpush.bf16.msra.mxu0 0
      %383 = vmatpush.bf16.msra.mxu0 %v326
      %384 = vmatpush.bf16.msra.mxu0 %v325
      %385 = vmatmul.bf16.gmra.mxu0 %v347
      %v386 = vpop.f32.mrf.mxu0
      %v387 = vadd.f32 %v373, %v386
      %v388 = vpop.f32.mrf.mxu0
      %v389 = vadd.f32 %v375, %v388
      %390 = vdwg.mxu0
      %v391 = vmax.f32 %v387, 0.0
      %v392 = vmax.f32 %v389, 0.0
      %v393 = vpack.c.bf16 %v391, %v391
      %v394 = vpack.c.bf16 %v392, %v392
      %vm395 = vcmask 125952
      %396 = vst.msk [vmem:[%s175] sm:$0xf] %vm395, %v393
      %397 = vst.msk [vmem:[%s175 + $0x4] sm:$0xf] %vm395, %v394
      %s398 = smul.u32 2, %s14
      %p399 = scmp.lt.s32.totalorder %s398, 3
      %s400 = scalar_select %p399, %s398, 3
      %s401 = smul.addr %s400, 4
      %s402 = scalar_lea.vmem %s3, %s401
      // Predicated region
      $region33: #{tower_encoder_forward.12} parent=31 // pred_check
        %p403 = pneg %p100
      $region34: #{tower_encoder_forward.12} parent=31 // pred_check_branch
        %405 = sbr.rel (%p403) target = $region36
      $region35: #{tower_encoder_forward.12} parent=31 // pred_region
        %s406 = smul.u32 2, %s14
      $region36: #{tower_encoder_forward.12} parent=31 // pred_fallthru
        _
    $region32: #{tower_encoder_forward.12} parent=5 // pred_fallthru
      _
    %p407 = scmp.le.s32.totalorder 2, %s9
    // Predicated region
    $region37: #{tower_encoder_forward.12} parent=5 // pred_check
      %p408 = pneg %p407
    $region38: #{tower_encoder_forward.12} parent=5 // pred_check_branch
      %410 = sbr.rel (%p408) target = $region40
    $region39: #{tower_encoder_forward.12} parent=5 // pred_region
      %s411 = ssub.s32 %s9, 2
      // Predicated region
      $region41: #{tower_encoder_forward.12} parent=39 // pred_check
        %p412 = pneg %p106
      $region42: #{tower_encoder_forward.12} parent=39 // pred_check_branch
        %414 = sbr.rel (%p412) target = $region44
      $region43: #{tower_encoder_forward.12} parent=39 // pred_region
        %s415 = smul.u32 2, %s15
        %p416 = scmp.lt.s32.totalorder %s415, 3
        %s417 = scalar_select %p416, %s415, 3
        %s418 = smul.addr %s417, 4
        %s419 = scalar_lea.vmem %s3, %s418
      $region44: #{tower_encoder_forward.12} parent=39 // pred_fallthru
        _
    $region40: #{tower_encoder_forward.12} parent=5 // pred_fallthru
      _
  $region6: #{tower_encoder_forward.12} parent=0 // loop_footer
    %s13 = sadd.s32 1, %s9
  $region7: #{tower_encoder_forward.12} parent=0 // loop_footer_branch
    %8 = sbr.rel target = $region3
  $region8: #{tower_encoder_forward.12} parent=0 // loop_exit
    _

// kernel: tower_encoder_forward.11
$region0: #{tower_encoder_forward.11}
  #allocation0 [shape = 'u32[]', space=smem, size = 0x4, offset = 0x4, fixed_abs, tag = 'smem constant byte address 0x4 - core index']
  #allocation1 [shape = 'u32[72,128]{1,0:T(1,128)}', space=vmem, size = 0x9000, scoped, tag = 'internal scratch']
  %s0 = inlined_call_operand.vmem [shape: bf16[32,288], index: 0, kind: input, shape index: {}]
  %s1 = inlined_call_operand.vmem [shape: bf16[288,32], index: 1, kind: input, shape index: {}]
  %s2 = inlined_call_operand.vmem [shape: f32[1,32], index: 2, kind: input, shape index: {}]
  %s3 = inlined_call_operand.vmem [shape: bf16[32,32], index: 3, kind: output, shape index: {}]
  %s4 = sld [smem:[#allocation0]]
  $region45: #{tower_encoder_forward.11} parent=0
    _
  %s6 = ssub.s32 1, %s4
  %s7 = scalar_select 0, %s6, %s4
  loop: start=0, step=1, limit=4
  $region2: #{tower_encoder_forward.11} parent=0 // loop_pre_header
    _
  $region3: #{tower_encoder_forward.11} parent=0 // loop_header
    %s9 = sphi 0, %s13
    %p10 = scmp.ge.s32.totalorder %s9, 4
    %s19 = sphi 0, %s21
    %s22 = sphi 0, %s19
    %s23 = sphi 0, %s22
    %s39 = sphi 0, %s23
    %s43 = sphi 0, %s43
    %s45 = sphi 0, %s43
    %s46 = sphi 0, %s45
    %s60 = sphi 0, %s46
    %s64 = sphi 0, %s64
    %s66 = sphi 0, %s64
    %s67 = sphi 0, %s66
    %s81 = sphi 0, %s67
    %s87 = sphi 0, %s89
    %s90 = sphi 0, %s87
    %s91 = sphi 0, %s90
    %s107 = sphi 0, %s91
  $region4: #{tower_encoder_forward.11} parent=0 // loop_header_branch
    %12 = sbr.rel (%p10) target = $region8
  $region5: #{tower_encoder_forward.11} parent=0 // loop_body
    %s14 = ssub.s32 %s9, 1
    %s15 = ssub.s32 %s9, 2
    %s16 = sadd.s32 %s9, 1
    %s17 = ssub.s32 %s9, %s16
    %p18 = scmp.eq.s32.totalorder %s17, 0
    %s20 = sadd.s32 %s19, 1
    %s21 = scalar_select %p18, %s19, %s20
    %p24 = pneg %p18
    %p25 = scmp.eq.s32.totalorder %s9, 1
    %p26 = por %p24, %p25
    %p27 = scmp.ne.s32.totalorder %s19, %s22
    %p28 = scmp.eq.s32.totalorder %s9, 0
    %p29 = por %p27, %p28
    %p30 = scmp.ne.s32.totalorder %s19, %s22
    %p31 = scmp.eq.s32.totalorder %s14, 1
    %p32 = por %p30, %p31
    %p33 = scmp.ne.s32.totalorder %s22, %s23
    %p34 = scmp.eq.s32.totalorder %s14, 0
    %p35 = por %p33, %p34
    %p36 = scmp.ne.s32.totalorder %s22, %s23
    %p37 = scmp.eq.s32.totalorder %s15, 1
    %p38 = por %p36, %p37
    %p40 = scmp.ne.s32.totalorder %s23, %s39
    %p41 = scmp.eq.s32.totalorder %s15, 0
    %p42 = por %p40, %p41
    %s44 = sadd.s32 %s43, 1
    %p47 = scmp.eq.s32.totalorder %s9, 1
    %p48 = scmp.ne.s32.totalorder %s43, %s45
    %p49 = scmp.eq.s32.totalorder %s9, 0
    %p50 = por %p48, %p49
    %p51 = scmp.ne.s32.totalorder %s43, %s45
    %p52 = scmp.eq.s32.totalorder %s14, 1
    %p53 = por %p51, %p52
    %p54 = scmp.ne.s32.totalorder %s45, %s46
    %p55 = scmp.eq.s32.totalorder %s14, 0
    %p56 = por %p54, %p55
    %p57 = scmp.ne.s32.totalorder %s45, %s46
    %p58 = scmp.eq.s32.totalorder %s15, 1
    %p59 = por %p57, %p58
    %p61 = scmp.ne.s32.totalorder %s46, %s60
    %p62 = scmp.eq.s32.totalorder %s15, 0
    %p63 = por %p61, %p62
    %s65 = sadd.s32 %s64, 1
    %p68 = scmp.eq.s32.totalorder %s9, 1
    %p69 = scmp.ne.s32.totalorder %s64, %s66
    %p70 = scmp.eq.s32.totalorder %s9, 0
    %p71 = por %p69, %p70
    %p72 = scmp.ne.s32.totalorder %s64, %s66
    %p73 = scmp.eq.s32.totalorder %s14, 1
    %p74 = por %p72, %p73
    %p75 = scmp.ne.s32.totalorder %s66, %s67
    %p76 = scmp.eq.s32.totalorder %s14, 0
    %p77 = por %p75, %p76
    %p78 = scmp.ne.s32.totalorder %s66, %s67
    %p79 = scmp.eq.s32.totalorder %s15, 1
    %p80 = por %p78, %p79
    %p82 = scmp.ne.s32.totalorder %s67, %s81
    %p83 = scmp.eq.s32.totalorder %s15, 0
    %p84 = por %p82, %p83
    %s85 = ssub.s32 %s9, %s16
    %p86 = scmp.eq.s32.totalorder %s85, 0
    %s88 = sadd.s32 %s87, 1
    %s89 = scalar_select %p86, %s87, %s88
    %p92 = pneg %p86
    %p93 = scmp.eq.s32.totalorder %s9, 1
    %p94 = por %p92, %p93
    %p95 = scmp.ne.s32.totalorder %s87, %s90
    %p96 = scmp.eq.s32.totalorder %s9, 0
    %p97 = por %p95, %p96
    %p98 = scmp.ne.s32.totalorder %s87, %s90
    %p99 = scmp.eq.s32.totalorder %s14, 1
    %p100 = por %p98, %p99
    %p101 = scmp.ne.s32.totalorder %s90, %s91
    %p102 = scmp.eq.s32.totalorder %s14, 0
    %p103 = por %p101, %p102
    %p104 = scmp.ne.s32.totalorder %s90, %s91
    %p105 = scmp.eq.s32.totalorder %s15, 1
    %p106 = por %p104, %p105
    %p108 = scmp.ne.s32.totalorder %s91, %s107
    %p109 = scmp.eq.s32.totalorder %s15, 0
    %p110 = por %p108, %p109
    %p111 = scmp.le.s32.totalorder 1, %s9
    %p112 = scmp.lt.s32.totalorder %s9, 3
    %p113 = pnand %p111, %p112
    %p114 = pneg %p113
    // Predicated region
    $region9: #{tower_encoder_forward.11} parent=5 // pred_check
      _
    $region10: #{tower_encoder_forward.11} parent=5 // pred_check_branch
      %116 = sbr.rel (%p113) target = $region12
    $region11: #{tower_encoder_forward.11} parent=5 // pred_region
      %s117 = ssub.s32 %s9, 1
      // Predicated region
      $region13: #{tower_encoder_forward.11} parent=11 // pred_check
        %p118 = pneg %p56
      $region14: #{tower_encoder_forward.11} parent=11 // pred_check_branch
        %120 = sbr.rel (%p118) target = $region16
      $region15: #{tower_encoder_forward.11} parent=11 // pred_region
        _
      $region16: #{tower_encoder_forward.11} parent=11 // pred_fallthru
        _
      // Predicated region
      $region17: #{tower_encoder_forward.11} parent=11 // pred_check
        %p121 = pneg %p77
      $region18: #{tower_encoder_forward.11} parent=11 // pred_check_branch
        %123 = sbr.rel (%p121) target = $region20
      $region19: #{tower_encoder_forward.11} parent=11 // pred_region
        _
      $region20: #{tower_encoder_forward.11} parent=11 // pred_fallthru
        _
    $region12: #{tower_encoder_forward.11} parent=5 // pred_fallthru
      _
    %p124 = scmp.lt.s32.totalorder %s9, 2
    // Predicated region
    $region21: #{tower_encoder_forward.11} parent=5 // pred_check
      %p125 = pneg %p124
    $region22: #{tower_encoder_forward.11} parent=5 // pred_check_branch
      %127 = sbr.rel (%p125) target = $region24
    $region23: #{tower_encoder_forward.11} parent=5 // pred_region
      // Predicated region
      $region25: #{tower_encoder_forward.11} parent=23 // pred_check
        %p128 = pneg %p29
      $region26: #{tower_encoder_forward.11} parent=23 // pred_check_branch
        %130 = sbr.rel (%p128) target = $region28
      $region27: #{tower_encoder_forward.11} parent=23 // pred_region
        %s131 = smul.u32 2, %s9
        %p132 = scmp.lt.s32.totalorder %s131, 3
        %s133 = scalar_select %p132, %s131, 3
        %s134 = smul.addr %s133, 3
        %s135 = smul.addr %s134, 4
        %s136 = scalar_lea.vmem %s0, %s135
        %s137 = smul.u32 2, %s9
      $region28: #{tower_encoder_forward.11} parent=23 // pred_fallthru
        _
    $region24: #{tower_encoder_forward.11} parent=5 // pred_fallthru
      _
    %p138 = scmp.le.s32.totalorder 1, %s9
    %p139 = scmp.lt.s32.totalorder %s9, 3
    %p140 = pnand %p138, %p139
    %p141 = pneg %p140
    // Predicated region
    $region29: #{tower_encoder_forward.11} parent=5 // pred_check
      _
    $region30: #{tower_encoder_forward.11} parent=5 // pred_check_branch
      %143 = sbr.rel (%p140) target = $region32
    $region31: #{tower_encoder_forward.11} parent=5 // pred_region
      %s144 = ssub.s32 %s9, 1
      %s145 = smul.u32 2, %s14
      %p146 = scmp.lt.s32.totalorder %s145, 3
      %s147 = scalar_select %p146, %s145, 3
      %s148 = smul.addr %s147, 3
      %s149 = smul.addr %s148, 4
      %s150 = scalar_lea.vmem %s0, %s149
      %p151 = pneg %p35
      %p152 = pneg %p32
      %p153 = pneg %p56
      %p154 = pneg %p53
      %p155 = pneg %p77
      %p156 = pneg %p74
      %p157 = pneg %p103
      %p158 = pneg %p100
      %s159 = smul.u32 2, %s14
      %p160 = scmp.lt.s32.totalorder %s159, 3
      %s161 = scalar_select %p160, %s159, 3
      %s162 = smul.addr %s161, 4
      %s163 = scalar_lea.vmem %s3, %s162
      %s164 = smul.u32 2, %s14
      %p165 = scmp.lt.s32.totalorder %s164, 3
      %s166 = scalar_select %p165, %s164, 3
      %s167 = smul.addr %s166, 3
      %s168 = smul.addr %s167, 4
      %s169 = scalar_lea.vmem %s0, %s168
      %s170 = smul.u32 2, %s14
      %s171 = smul.u32 2, %s14
      %p172 = scmp.lt.s32.totalorder %s171, 3
      %s173 = scalar_select %p172, %s171, 3
      %s174 = smul.addr %s173, 4
      %s175 = scalar_lea.vmem %s3, %s174
      %s176 = smul.u32 2, %s14
      %v178 = vld [vmem:[%s169] sm:$0xff]
      %v179 = vld [vmem:[%s169 + $0x8] sm:$0xf]
      %v180 = vld [vmem:[%s169 + $0xc] sm:$0xff]
      %v181 = vld [vmem:[%s169 + $0x14] sm:$0xf]
      %v182 = vld [vmem:[%s1] sm:$0xf]
      %v183 = vld [vmem:[%s1 + $0x4] sm:$0xf]
      %v184 = vld [vmem:[%s1 + $0x8] sm:$0xf]
      %v185 = vld [vmem:[%s1 + $0xc] sm:$0xf]
      %v186 = vld [vmem:[%s1 + $0x10] sm:$0xf]
      %v187 = vld [vmem:[%s1 + $0x14] sm:$0xf]
      %v188 = vld [vmem:[%s1 + $0x18] sm:$0xf]
      %v189 = vld [vmem:[%s1 + $0x1c] sm:$0xf]
      %v190 = vld [vmem:[%s1 + $0x20] sm:$0xf]
      %v191 = vld [vmem:[%s1 + $0x24] sm:$0xf]
      %v192 = vld [vmem:[%s1 + $0x28] sm:$0xf]
      %v193 = vld [vmem:[%s1 + $0x2c] sm:$0xf]
      %v194 = vld [vmem:[%s1 + $0x30] sm:$0xf]
      %v195 = vld [vmem:[%s1 + $0x34] sm:$0xf]
      %v196 = vld [vmem:[%s1 + $0x38] sm:$0xf]
      %v197 = vld [vmem:[%s1 + $0x3c] sm:$0xf]
      %v198 = vld [vmem:[%s1 + $0x40] sm:$0xf]
      %v199 = vld [vmem:[%s1 + $0x44] sm:$0xf]
      %v200 = vld [vmem:[%s1 + $0x48] sm:$0xf]
      %v201 = vld [vmem:[%s1 + $0x4c] sm:$0xf]
      %v202 = vld [vmem:[%s1 + $0x50] sm:$0xf]
      %v203 = vld [vmem:[%s1 + $0x54] sm:$0xf]
      %v204 = vld [vmem:[%s1 + $0x58] sm:$0xf]
      %v205 = vld [vmem:[%s1 + $0x5c] sm:$0xf]
      %v206 = vld [vmem:[%s1 + $0x60] sm:$0xf]
      %v207 = vld [vmem:[%s1 + $0x64] sm:$0xf]
      %v208 = vld [vmem:[%s1 + $0x68] sm:$0xf]
      %v209 = vld [vmem:[%s1 + $0x6c] sm:$0xf]
      %v210 = vld [vmem:[%s1 + $0x70] sm:$0xf]
      %v211 = vld [vmem:[%s1 + $0x74] sm:$0xf]
      %v212 = vld [vmem:[%s1 + $0x78] sm:$0xf]
      %v213 = vld [vmem:[%s1 + $0x7c] sm:$0xf]
      %v214 = vld [vmem:[%s1 + $0x80] sm:$0xf]
      %v215 = vld [vmem:[%s1 + $0x84] sm:$0xf]
      %v216 = vld [vmem:[%s1 + $0x88] sm:$0xf]
      %v217 = vld [vmem:[%s1 + $0x8c] sm:$0xf]
      %v218 = vld [vmem:[%s2] sm:$0x1]
      %v220 = vperm.slane %v218, 0
      %v226 = vunpack.c.l.b16 %v178
      %v227 = vunpack.c.h.b16 %v178
      %v228 = vunpack.c.l.b16 %v179
      %v229 = vunpack.c.l.b16 %v180
      %v230 = vunpack.c.h.b16 %v180
      %v231 = vunpack.c.l.b16 %v181
      %v232 = vpack.c.b16 %v229, %v226
      %v233 = vpack.c.b16 %v230, %v227
      %v234 = vpack.c.b16 %v231, %v228
      %v273 = vunpack.c.l.b16 %v182
      %v274 = vunpack.c.l.b16 %v183
      %v275 = vunpack.c.l.b16 %v184
      %v276 = vunpack.c.l.b16 %v185
      %v277 = vunpack.c.l.b16 %v186
      %v278 = vunpack.c.l.b16 %v187
      %v279 = vunpack.c.l.b16 %v188
      %v280 = vunpack.c.l.b16 %v189
      %v281 = vunpack.c.l.b16 %v190
      %v282 = vunpack.c.l.b16 %v191
      %v283 = vunpack.c.l.b16 %v192
      %v284 = vunpack.c.l.b16 %v193
      %v285 = vunpack.c.l.b16 %v194
      %v286 = vunpack.c.l.b16 %v195
      %v287 = vunpack.c.l.b16 %v196
      %v288 = vunpack.c.l.b16 %v197
      %v289 = vunpack.c.l.b16 %v198
      %v290 = vunpack.c.l.b16 %v199
      %v291 = vunpack.c.l.b16 %v200
      %v292 = vunpack.c.l.b16 %v201
      %v293 = vunpack.c.l.b16 %v202
      %v294 = vunpack.c.l.b16 %v203
      %v295 = vunpack.c.l.b16 %v204
      %v296 = vunpack.c.l.b16 %v205
      %v297 = vunpack.c.l.b16 %v206
      %v298 = vunpack.c.l.b16 %v207
      %v299 = vunpack.c.l.b16 %v208
      %v300 = vunpack.c.l.b16 %v209
      %v301 = vunpack.c.l.b16 %v210
      %v302 = vunpack.c.l.b16 %v211
      %v303 = vunpack.c.l.b16 %v212
      %v304 = vunpack.c.l.b16 %v213
      %v305 = vunpack.c.l.b16 %v214
      %v306 = vunpack.c.l.b16 %v215
      %v307 = vunpack.c.l.b16 %v216
      %v308 = vunpack.c.l.b16 %v217
      %v309 = vpack.c.b16 %v274, %v273
      %v310 = vpack.c.b16 %v276, %v275
      %v311 = vpack.c.b16 %v278, %v277
      %v312 = vpack.c.b16 %v280, %v279
      %v313 = vpack.c.b16 %v282, %v281
      %v314 = vpack.c.b16 %v284, %v283
      %v315 = vpack.c.b16 %v286, %v285
      %v316 = vpack.c.b16 %v288, %v287
      %v317 = vpack.c.b16 %v290, %v289
      %v318 = vpack.c.b16 %v292, %v291
      %v319 = vpack.c.b16 %v294, %v293
      %v320 = vpack.c.b16 %v296, %v295
      %v321 = vpack.c.b16 %v298, %v297
      %v322 = vpack.c.b16 %v300, %v299
      %v323 = vpack.c.b16 %v302, %v301
      %v324 = vpack.c.b16 %v304, %v303
      %v325 = vpack.c.b16 %v306, %v305
      %v326 = vpack.c.b16 %v308, %v307
      %vm345 = vcmask 261120
      %v347 = vsel %vm345, %v234, 0
      %349 = vmatpush.bf16.msra.mxu0 %v316
      %350 = vmatpush.bf16.msra.mxu0 %v315
      %351 = vmatpush.bf16.msra.mxu0 %v314
      %352 = vmatpush.bf16.msra.mxu0 %v313
      %353 = vmatpush.bf16.msra.mxu0 %v312
      %354 = vmatpush.bf16.msra.mxu0 %v311
      %355 = vmatpush.bf16.msra.mxu0 %v310
      %356 = vmatpush.bf16.msra.mxu0 %v309
      %357 = vmatmul.bf16.gmra.mxu0 %v232
      %v358 = vpop.f32.mrf.mxu0
      %v359 = vadd.f32 %v220, %v358
      %v360 = vpop.f32.mrf.mxu0
      %v361 = vadd.f32 %v220, %v360
      %362 = vdwg.mxu0
      %363 = vmatpush.bf16.msra.mxu0 %v324
      %364 = vmatpush.bf16.msra.mxu0 %v323
      %365 = vmatpush.bf16.msra.mxu0 %v322
      %366 = vmatpush.bf16.msra.mxu0 %v321
      %367 = vmatpush.bf16.msra.mxu0 %v320
      %368 = vmatpush.bf16.msra.mxu0 %v319
      %369 = vmatpush.bf16.msra.mxu0 %v318
      %370 = vmatpush.bf16.msra.mxu0 %v317
      %371 = vmatmul.bf16.gmra.mxu0 %v233
      %v372 = vpop.f32.mrf.mxu0
      %v373 = vadd.f32 %v359, %v372
      %v374 = vpop.f32.mrf.mxu0
      %v375 = vadd.f32 %v361, %v374
      %376 = vdwg.mxu0
      %377 = vmatpush.bf16.msra.mxu0 0
      %378 = vmatpush.bf16.msra.mxu0 0
      %379 = vmatpush.bf16.msra.mxu0 0
      %380 = vmatpush.bf16.msra.mxu0 0
      %381 = vmatpush.bf16.msra.mxu0 0
      %382 = vmatpush.bf16.msra.mxu0 0
      %383 = vmatpush.bf16.msra.mxu0 %v326
      %384 = vmatpush.bf16.msra.mxu0 %v325
      %385 = vmatmul.bf16.gmra.mxu0 %v347
      %v386 = vpop.f32.mrf.mxu0
      %v387 = vadd.f32 %v373, %v386
      %v388 = vpop.f32.mrf.mxu0
      %v389 = vadd.f32 %v375, %v388
      %390 = vdwg.mxu0
      %v391 = vpack.c.bf16 %v387, %v387
      %v392 = vpack.c.bf16 %v389, %v389
      %vm393 = vcmask 257024
      %394 = vst.msk [vmem:[%s175] sm:$0xf] %vm393, %v391
      %395 = vst.msk [vmem:[%s175 + $0x4] sm:$0xf] %vm393, %v392
      %s396 = smul.u32 2, %s14
      %p397 = scmp.lt.s32.totalorder %s396, 3
      %s398 = scalar_select %p397, %s396, 3
      %s399 = smul.addr %s398, 4
      %s400 = scalar_lea.vmem %s3, %s399
      // Predicated region
      $region33: #{tower_encoder_forward.11} parent=31 // pred_check
        %p401 = pneg %p100
      $region34: #{tower_encoder_forward.11} parent=31 // pred_check_branch
        %403 = sbr.rel (%p401) target = $region36
      $region35: #{tower_encoder_forward.11} parent=31 // pred_region
        %s404 = smul.u32 2, %s14
      $region36: #{tower_encoder_forward.11} parent=31 // pred_fallthru
        _
    $region32: #{tower_encoder_forward.11} parent=5 // pred_fallthru
      _
    %p405 = scmp.le.s32.totalorder 2, %s9
    // Predicated region
    $region37: #{tower_encoder_forward.11} parent=5 // pred_check
      %p406 = pneg %p405
    $region38: #{tower_encoder_forward.11} parent=5 // pred_check_branch
      %408 = sbr.rel (%p406) target = $region40
    $region39: #{tower_encoder_forward.11} parent=5 // pred_region
      %s409 = ssub.s32 %s9, 2
      // Predicated region
      $region41: #{tower_encoder_forward.11} parent=39 // pred_check
        %p410 = pneg %p106
      $region42: #{tower_encoder_forward.11} parent=39 // pred_check_branch
        %412 = sbr.rel (%p410) target = $region44
      $region43: #{tower_encoder_forward.11} parent=39 // pred_region
        %s413 = smul.u32 2, %s15
        %p414 = scmp.lt.s32.totalorder %s413, 3
        %s415 = scalar_select %p414, %s413, 3
        %s416 = smul.addr %s415, 4
        %s417 = scalar_lea.vmem %s3, %s416
      $region44: #{tower_encoder_forward.11} parent=39 // pred_fallthru
        _
    $region40: #{tower_encoder_forward.11} parent=5 // pred_fallthru
      _
  $region6: #{tower_encoder_forward.11} parent=0 // loop_footer
    %s13 = sadd.s32 1, %s9
  $region7: #{tower_encoder_forward.11} parent=0 // loop_footer_branch
    %8 = sbr.rel target = $region3
  $region8: #{tower_encoder_forward.11} parent=0 // loop_exit
    _

// kernel: tower_encoder_forward.13
$region0: #{tower_encoder_forward.13}
  #allocation0 [shape = 'u32[]', space=smem, size = 0x4, offset = 0x4, fixed_abs, tag = 'smem constant byte address 0x4 - core index']
  #allocation1 [shape = 'u32[72,128]{1,0:T(1,128)}', space=vmem, size = 0x9000, scoped, tag = 'internal scratch']
  %s0 = inlined_call_operand.vmem [shape: bf16[32,144], index: 0, kind: input, shape index: {}]
  %s1 = inlined_call_operand.vmem [shape: bf16[32,32], index: 1, kind: input, shape index: {}]
  %s2 = inlined_call_operand.vmem [shape: bf16[144,32], index: 2, kind: input, shape index: {}]
  %s3 = inlined_call_operand.vmem [shape: f32[1,32], index: 3, kind: input, shape index: {}]
  %s4 = inlined_call_operand.vmem [shape: bf16[32,32], index: 4, kind: input, shape index: {}]
  %s5 = inlined_call_operand.vmem [shape: f32[1,32], index: 5, kind: input, shape index: {}]
  %s6 = inlined_call_operand.vmem [shape: bf16[32,32], index: 6, kind: input, shape index: {}]
  %s7 = inlined_call_operand.vmem [shape: f32[1,32], index: 7, kind: input, shape index: {}]
  %s8 = inlined_call_operand.hbm [shape: f32[32,32], index: 8, kind: output, shape index: {}]
  %s9 = sld [smem:[#allocation0]]
  $region65: #{tower_encoder_forward.13} parent=0
    _
  %s11 = ssub.s32 1, %s9
  %s12 = scalar_select 0, %s11, %s9
  $region1: #{tower_encoder_forward.13} parent=0
    #allocation2 [shape = 'u8[16384]{0}', space=vmem, size = 0x4000, scoped, tag = 'output window, operand 0']
    #allocation3 [shape = 's32[2]{0}', space=sflag, size = 0x8, scoped, tag = 'scoped memory for tower_encoder_forward.13']
    %13 = vsyncpa [#allocation3], 0
    %s14 = scalar_lea.sflag [#allocation3], 1
    %15 = vsyncpa %s14, 0
    loop: start=0, step=1, limit=4
    $region2: #{tower_encoder_forward.13} parent=1 // loop_pre_header
      _
    $region3: #{tower_encoder_forward.13} parent=1 // loop_header
      %s17 = sphi 0, %s21
      %p18 = scmp.ge.s32.totalorder %s17, 4
      %s27 = sphi 0, %s29
      %s30 = sphi 0, %s27
      %s31 = sphi 0, %s30
      %s47 = sphi 0, %s31
      %s53 = sphi 0, %s55
      %s56 = sphi 0, %s53
      %s57 = sphi 0, %s56
      %s73 = sphi 0, %s57
      %s77 = sphi 0, %s77
      %s79 = sphi 0, %s77
      %s80 = sphi 0, %s79
      %s94 = sphi 0, %s80
      %s98 = sphi 0, %s98
      %s100 = sphi 0, %s98
      %s101 = sphi 0, %s100
      %s115 = sphi 0, %s101
      %s119 = sphi 0, %s119
      %s121 = sphi 0, %s119
      %s122 = sphi 0, %s121
      %s136 = sphi 0, %s122
      %s140 = sphi 0, %s140
      %s142 = sphi 0, %s140
      %s143 = sphi 0, %s142
      %s157 = sphi 0, %s143
      %s161 = sphi 0, %s161
      %s163 = sphi 0, %s161
      %s164 = sphi 0, %s163
      %s178 = sphi 0, %s164
      %s182 = sphi 0, %s182
      %s184 = sphi 0, %s182
      %s185 = sphi 0, %s184
      %s199 = sphi 0, %s185
      %s205 = sphi 0, %s207
      %s208 = sphi 0, %s205
      %s209 = sphi 0, %s208
      %s225 = sphi 0, %s209
    $region4: #{tower_encoder_forward.13} parent=1 // loop_header_branch
      %20 = sbr.rel (%p18) target = $region8
    $region5: #{tower_encoder_forward.13} parent=1 // loop_body
      %s22 = ssub.s32 %s17, 1
      %s23 = ssub.s32 %s17, 2
      %s24 = sadd.s32 %s17, 1
      %s25 = ssub.s32 %s17, %s24
      %p26 = scmp.eq.s32.totalorder %s25, 0
      %s28 = sadd.s32 %s27, 1
      %s29 = scalar_select %p26, %s27, %s28
      %p32 = pneg %p26
      %p33 = scmp.eq.s32.totalorder %s17, 1
      %p34 = por %p32, %p33
      %p35 = scmp.ne.s32.totalorder %s27, %s30
      %p36 = scmp.eq.s32.totalorder %s17, 0
      %p37 = por %p35, %p36
      %p38 = scmp.ne.s32.totalorder %s27, %s30
      %p39 = scmp.eq.s32.totalorder %s22, 1
      %p40 = por %p38, %p39
      %p41 = scmp.ne.s32.totalorder %s30, %s31
      %p42 = scmp.eq.s32.totalorder %s22, 0
      %p43 = por %p41, %p42
      %p44 = scmp.ne.s32.totalorder %s30, %s31
      %p45 = scmp.eq.s32.totalorder %s23, 1
      %p46 = por %p44, %p45
      %p48 = scmp.ne.s32.totalorder %s31, %s47
      %p49 = scmp.eq.s32.totalorder %s23, 0
      %p50 = por %p48, %p49
      %s51 = ssub.s32 %s17, %s24
      %p52 = scmp.eq.s32.totalorder %s51, 0
      %s54 = sadd.s32 %s53, 1
      %s55 = scalar_select %p52, %s53, %s54
      %p58 = pneg %p52
      %p59 = scmp.eq.s32.totalorder %s17, 1
      %p60 = por %p58, %p59
      %p61 = scmp.ne.s32.totalorder %s53, %s56
      %p62 = scmp.eq.s32.totalorder %s17, 0
      %p63 = por %p61, %p62
      %p64 = scmp.ne.s32.totalorder %s53, %s56
      %p65 = scmp.eq.s32.totalorder %s22, 1
      %p66 = por %p64, %p65
      %p67 = scmp.ne.s32.totalorder %s56, %s57
      %p68 = scmp.eq.s32.totalorder %s22, 0
      %p69 = por %p67, %p68
      %p70 = scmp.ne.s32.totalorder %s56, %s57
      %p71 = scmp.eq.s32.totalorder %s23, 1
      %p72 = por %p70, %p71
      %p74 = scmp.ne.s32.totalorder %s57, %s73
      %p75 = scmp.eq.s32.totalorder %s23, 0
      %p76 = por %p74, %p75
      %s78 = sadd.s32 %s77, 1
      %p81 = scmp.eq.s32.totalorder %s17, 1
      %p82 = scmp.ne.s32.totalorder %s77, %s79
      %p83 = scmp.eq.s32.totalorder %s17, 0
      %p84 = por %p82, %p83
      %p85 = scmp.ne.s32.totalorder %s77, %s79
      %p86 = scmp.eq.s32.totalorder %s22, 1
      %p87 = por %p85, %p86
      %p88 = scmp.ne.s32.totalorder %s79, %s80
      %p89 = scmp.eq.s32.totalorder %s22, 0
      %p90 = por %p88, %p89
      %p91 = scmp.ne.s32.totalorder %s79, %s80
      %p92 = scmp.eq.s32.totalorder %s23, 1
      %p93 = por %p91, %p92
      %p95 = scmp.ne.s32.totalorder %s80, %s94
      %p96 = scmp.eq.s32.totalorder %s23, 0
      %p97 = por %p95, %p96
      %s99 = sadd.s32 %s98, 1
      %p102 = scmp.eq.s32.totalorder %s17, 1
      %p103 = scmp.ne.s32.totalorder %s98, %s100
      %p104 = scmp.eq.s32.totalorder %s17, 0
      %p105 = por %p103, %p104
      %p106 = scmp.ne.s32.totalorder %s98, %s100
      %p107 = scmp.eq.s32.totalorder %s22, 1
      %p108 = por %p106, %p107
      %p109 = scmp.ne.s32.totalorder %s100, %s101
      %p110 = scmp.eq.s32.totalorder %s22, 0
      %p111 = por %p109, %p110
      %p112 = scmp.ne.s32.totalorder %s100, %s101
      %p113 = scmp.eq.s32.totalorder %s23, 1
      %p114 = por %p112, %p113
      %p116 = scmp.ne.s32.totalorder %s101, %s115
      %p117 = scmp.eq.s32.totalorder %s23, 0
      %p118 = por %p116, %p117
      %s120 = sadd.s32 %s119, 1
      %p123 = scmp.eq.s32.totalorder %s17, 1
      %p124 = scmp.ne.s32.totalorder %s119, %s121
      %p125 = scmp.eq.s32.totalorder %s17, 0
      %p126 = por %p124, %p125
      %p127 = scmp.ne.s32.totalorder %s119, %s121
      %p128 = scmp.eq.s32.totalorder %s22, 1
      %p129 = por %p127, %p128
      %p130 = scmp.ne.s32.totalorder %s121, %s122
      %p131 = scmp.eq.s32.totalorder %s22, 0
      %p132 = por %p130, %p131
      %p133 = scmp.ne.s32.totalorder %s121, %s122
      %p134 = scmp.eq.s32.totalorder %s23, 1
      %p135 = por %p133, %p134
      %p137 = scmp.ne.s32.totalorder %s122, %s136
      %p138 = scmp.eq.s32.totalorder %s23, 0
      %p139 = por %p137, %p138
      %s141 = sadd.s32 %s140, 1
      %p144 = scmp.eq.s32.totalorder %s17, 1
      %p145 = scmp.ne.s32.totalorder %s140, %s142
      %p146 = scmp.eq.s32.totalorder %s17, 0
      %p147 = por %p145, %p146
      %p148 = scmp.ne.s32.totalorder %s140, %s142
      %p149 = scmp.eq.s32.totalorder %s22, 1
      %p150 = por %p148, %p149
      %p151 = scmp.ne.s32.totalorder %s142, %s143
      %p152 = scmp.eq.s32.totalorder %s22, 0
      %p153 = por %p151, %p152
      %p154 = scmp.ne.s32.totalorder %s142, %s143
      %p155 = scmp.eq.s32.totalorder %s23, 1
      %p156 = por %p154, %p155
      %p158 = scmp.ne.s32.totalorder %s143, %s157
      %p159 = scmp.eq.s32.totalorder %s23, 0
      %p160 = por %p158, %p159
      %s162 = sadd.s32 %s161, 1
      %p165 = scmp.eq.s32.totalorder %s17, 1
      %p166 = scmp.ne.s32.totalorder %s161, %s163
      %p167 = scmp.eq.s32.totalorder %s17, 0
      %p168 = por %p166, %p167
      %p169 = scmp.ne.s32.totalorder %s161, %s163
      %p170 = scmp.eq.s32.totalorder %s22, 1
      %p171 = por %p169, %p170
      %p172 = scmp.ne.s32.totalorder %s163, %s164
      %p173 = scmp.eq.s32.totalorder %s22, 0
      %p174 = por %p172, %p173
      %p175 = scmp.ne.s32.totalorder %s163, %s164
      %p176 = scmp.eq.s32.totalorder %s23, 1
      %p177 = por %p175, %p176
      %p179 = scmp.ne.s32.totalorder %s164, %s178
      %p180 = scmp.eq.s32.totalorder %s23, 0
      %p181 = por %p179, %p180
      %s183 = sadd.s32 %s182, 1
      %p186 = scmp.eq.s32.totalorder %s17, 1
      %p187 = scmp.ne.s32.totalorder %s182, %s184
      %p188 = scmp.eq.s32.totalorder %s17, 0
      %p189 = por %p187, %p188
      %p190 = scmp.ne.s32.totalorder %s182, %s184
      %p191 = scmp.eq.s32.totalorder %s22, 1
      %p192 = por %p190, %p191
      %p193 = scmp.ne.s32.totalorder %s184, %s185
      %p194 = scmp.eq.s32.totalorder %s22, 0
      %p195 = por %p193, %p194
      %p196 = scmp.ne.s32.totalorder %s184, %s185
      %p197 = scmp.eq.s32.totalorder %s23, 1
      %p198 = por %p196, %p197
      %p200 = scmp.ne.s32.totalorder %s185, %s199
      %p201 = scmp.eq.s32.totalorder %s23, 0
      %p202 = por %p200, %p201
      %s203 = ssub.s32 %s17, %s24
      %p204 = scmp.eq.s32.totalorder %s203, 0
      %s206 = sadd.s32 %s205, 1
      %s207 = scalar_select %p204, %s205, %s206
      %p210 = pneg %p204
      %p211 = scmp.eq.s32.totalorder %s17, 1
      %p212 = por %p210, %p211
      %p213 = scmp.ne.s32.totalorder %s205, %s208
      %p214 = scmp.eq.s32.totalorder %s17, 0
      %p215 = por %p213, %p214
      %p216 = scmp.ne.s32.totalorder %s205, %s208
      %p217 = scmp.eq.s32.totalorder %s22, 1
      %p218 = por %p216, %p217
      %p219 = scmp.ne.s32.totalorder %s208, %s209
      %p220 = scmp.eq.s32.totalorder %s22, 0
      %p221 = por %p219, %p220
      %p222 = scmp.ne.s32.totalorder %s208, %s209
      %p223 = scmp.eq.s32.totalorder %s23, 1
      %p224 = por %p222, %p223
      %p226 = scmp.ne.s32.totalorder %s209, %s225
      %p227 = scmp.eq.s32.totalorder %s23, 0
      %p228 = por %p226, %p227
      %p229 = scmp.le.s32.totalorder 1, %s17
      %p230 = scmp.lt.s32.totalorder %s17, 3
      %p231 = pnand %p229, %p230
      %p232 = pneg %p231
      // Predicated region
      $region9: #{tower_encoder_forward.13} parent=5 // pred_check
        _
      $region10: #{tower_encoder_forward.13} parent=5 // pred_check_branch
        %234 = sbr.rel (%p231) target = $region12
      $region11: #{tower_encoder_forward.13} parent=5 // pred_region
        %s235 = ssub.s32 %s17, 1
        // Predicated region
        $region13: #{tower_encoder_forward.13} parent=11 // pred_check
          %p236 = pneg %p90
        $region14: #{tower_encoder_forward.13} parent=11 // pred_check_branch
          %238 = sbr.rel (%p236) target = $region16
        $region15: #{tower_encoder_forward.13} parent=11 // pred_region
          _
        $region16: #{tower_encoder_forward.13} parent=11 // pred_fallthru
          _
        // Predicated region
        $region17: #{tower_encoder_forward.13} parent=11 // pred_check
          %p239 = pneg %p111
        $region18: #{tower_encoder_forward.13} parent=11 // pred_check_branch
          %241 = sbr.rel (%p239) target = $region20
        $region19: #{tower_encoder_forward.13} parent=11 // pred_region
          _
        $region20: #{tower_encoder_forward.13} parent=11 // pred_fallthru
          _
        // Predicated region
        $region21: #{tower_encoder_forward.13} parent=11 // pred_check
          %p242 = pneg %p132
        $region22: #{tower_encoder_forward.13} parent=11 // pred_check_branch
          %244 = sbr.rel (%p242) target = $region24
        $region23: #{tower_encoder_forward.13} parent=11 // pred_region
          _
        $region24: #{tower_encoder_forward.13} parent=11 // pred_fallthru
          _
        // Predicated region
        $region25: #{tower_encoder_forward.13} parent=11 // pred_check
          %p245 = pneg %p153
        $region26: #{tower_encoder_forward.13} parent=11 // pred_check_branch
          %247 = sbr.rel (%p245) target = $region28
        $region27: #{tower_encoder_forward.13} parent=11 // pred_region
          _
        $region28: #{tower_encoder_forward.13} parent=11 // pred_fallthru
          _
        // Predicated region
        $region29: #{tower_encoder_forward.13} parent=11 // pred_check
          %p248 = pneg %p174
        $region30: #{tower_encoder_forward.13} parent=11 // pred_check_branch
          %250 = sbr.rel (%p248) target = $region32
        $region31: #{tower_encoder_forward.13} parent=11 // pred_region
          _
        $region32: #{tower_encoder_forward.13} parent=11 // pred_fallthru
          _
        // Predicated region
        $region33: #{tower_encoder_forward.13} parent=11 // pred_check
          %p251 = pneg %p195
        $region34: #{tower_encoder_forward.13} parent=11 // pred_check_branch
          %253 = sbr.rel (%p251) target = $region36
        $region35: #{tower_encoder_forward.13} parent=11 // pred_region
          _
        $region36: #{tower_encoder_forward.13} parent=11 // pred_fallthru
          _
      $region12: #{tower_encoder_forward.13} parent=5 // pred_fallthru
        _
      %p254 = scmp.lt.s32.totalorder %s17, 2
      // Predicated region
      $region37: #{tower_encoder_forward.13} parent=5 // pred_check
        %p255 = pneg %p254
      $region38: #{tower_encoder_forward.13} parent=5 // pred_check_branch
        %257 = sbr.rel (%p255) target = $region40
      $region39: #{tower_encoder_forward.13} parent=5 // pred_region
        // Predicated region
        $region41: #{tower_encoder_forward.13} parent=39 // pred_check
          %p258 = pneg %p37
        $region42: #{tower_encoder_forward.13} parent=39 // pred_check_branch
          %260 = sbr.rel (%p258) target = $region44
        $region43: #{tower_encoder_forward.13} parent=39 // pred_region
          %s261 = smul.u32 2, %s17
          %p262 = scmp.lt.s32.totalorder %s261, 3
          %s263 = scalar_select %p262, %s261, 3
          %s264 = smul.addr %s263, 2
          %s265 = smul.addr %s264, 4
          %s266 = scalar_lea.vmem %s0, %s265
          %s267 = smul.u32 2, %s17
        $region44: #{tower_encoder_forward.13} parent=39 // pred_fallthru
          _
        // Predicated region
        $region45: #{tower_encoder_forward.13} parent=39 // pred_check
          %p268 = pneg %p63
        $region46: #{tower_encoder_forward.13} parent=39 // pred_check_branch
          %270 = sbr.rel (%p268) target = $region48
        $region47: #{tower_encoder_forward.13} parent=39 // pred_region
          %s271 = smul.u32 2, %s17
          %p272 = scmp.lt.s32.totalorder %s271, 3
          %s273 = scalar_select %p272, %s271, 3
          %s274 = smul.addr %s273, 4
          %s275 = scalar_lea.vmem %s1, %s274
          %s276 = smul.u32 2, %s17
        $region48: #{tower_encoder_forward.13} parent=39 // pred_fallthru
          _
      $region40: #{tower_encoder_forward.13} parent=5 // pred_fallthru
        _
      %p277 = scmp.le.s32.totalorder 1, %s17
      %p278 = scmp.lt.s32.totalorder %s17, 3
      %p279 = pnand %p277, %p278
      %p280 = pneg %p279
      // Predicated region
      $region49: #{tower_encoder_forward.13} parent=5 // pred_check
        _
      $region50: #{tower_encoder_forward.13} parent=5 // pred_check_branch
        %282 = sbr.rel (%p279) target = $region52
      $region51: #{tower_encoder_forward.13} parent=5 // pred_region
        %s283 = ssub.s32 %s17, 1
        %s284 = smul.u32 2, %s22
        %p285 = scmp.lt.s32.totalorder %s284, 3
        %s286 = scalar_select %p285, %s284, 3
        %s287 = smul.addr %s286, 2
        %s288 = smul.addr %s287, 4
        %s289 = scalar_lea.vmem %s0, %s288
        %p290 = pneg %p43
        %p291 = pneg %p40
        %s292 = smul.u32 2, %s22
        %p293 = scmp.lt.s32.totalorder %s292, 3
        %s294 = scalar_select %p293, %s292, 3
        %s295 = smul.addr %s294, 4
        %s296 = scalar_lea.vmem %s1, %s295
        %p297 = pneg %p69
        %p298 = pneg %p66
        %p299 = pneg %p90
        %p300 = pneg %p87
        %p301 = pneg %p111
        %p302 = pneg %p108
        %p303 = pneg %p132
        %p304 = pneg %p129
        %p305 = pneg %p153
        %p306 = pneg %p150
        %p307 = pneg %p174
        %p308 = pneg %p171
        %p309 = pneg %p195
        %p310 = pneg %p192
        %p311 = pneg %p221
        %p312 = pneg %p218
        %s313 = sand.u32 %s208, 1
        %s314 = scalar_lea.sflag [#allocation3], %s313
        %s315 = sand.u32 %s208, 1
        %s316 = smul.addr %s315, 16
        %s317 = scalar_lea.vmem [#allocation2], %s316
        %s318 = smul.u32 2, %s22
        %p319 = scmp.lt.s32.totalorder %s318, 3
        %s320 = scalar_select %p319, %s318, 3
        %s321 = smul.addr %s320, 2
        %s322 = smul.addr %s321, 4
        %s323 = scalar_lea.vmem %s0, %s322
        %s324 = smul.u32 2, %s22
        %s325 = smul.u32 2, %s22
        %p326 = scmp.lt.s32.totalorder %s325, 3
        %s327 = scalar_select %p326, %s325, 3
        %s328 = smul.addr %s327, 4
        %s329 = scalar_lea.vmem %s1, %s328
        %s330 = smul.u32 2, %s22
        %s331 = smul.u32 2, %s22
        %v333 = vld [vmem:[%s323] sm:$0xff]
        %v334 = vld [vmem:[%s323 + $0x8] sm:$0xff]
        %v335 = vld [vmem:[%s2] sm:$0xf]
        %v336 = vld [vmem:[%s2 + $0x4] sm:$0xf]
        %v337 = vld [vmem:[%s2 + $0x8] sm:$0xf]
        %v338 = vld [vmem:[%s2 + $0xc] sm:$0xf]
        %v339 = vld [vmem:[%s2 + $0x10] sm:$0xf]
        %v340 = vld [vmem:[%s2 + $0x14] sm:$0xf]
        %v341 = vld [vmem:[%s2 + $0x18] sm:$0xf]
        %v342 = vld [vmem:[%s2 + $0x1c] sm:$0xf]
        %v343 = vld [vmem:[%s2 + $0x20] sm:$0xf]
        %v344 = vld [vmem:[%s2 + $0x24] sm:$0xf]
        %v345 = vld [vmem:[%s2 + $0x28] sm:$0xf]
        %v346 = vld [vmem:[%s2 + $0x2c] sm:$0xf]
        %v347 = vld [vmem:[%s2 + $0x30] sm:$0xf]
        %v348 = vld [vmem:[%s2 + $0x34] sm:$0xf]
        %v349 = vld [vmem:[%s2 + $0x38] sm:$0xf]
        %v350 = vld [vmem:[%s2 + $0x3c] sm:$0xf]
        %v351 = vld [vmem:[%s2 + $0x40] sm:$0xf]
        %v352 = vld [vmem:[%s2 + $0x44] sm:$0xf]
        %v353 = vld [vmem:[%s3] sm:$0x1]
        %v355 = vperm.slane %v353, 0
        %v359 = vunpack.c.l.b16 %v333
        %v360 = vunpack.c.h.b16 %v333
        %v361 = vunpack.c.l.b16 %v334
        %v362 = vunpack.c.h.b16 %v334
        %v363 = vpack.c.b16 %v361, %v359
        %v364 = vpack.c.b16 %v362, %v360
        %v384 = vunpack.c.l.b16 %v335
        %v385 = vunpack.c.l.b16 %v336
        %v386 = vunpack.c.l.b16 %v337
        %v387 = vunpack.c.l.b16 %v338
        %v388 = vunpack.c.l.b16 %v339
        %v389 = vunpack.c.l.b16 %v340
        %v390 = vunpack.c.l.b16 %v341
        %v391 = vunpack.c.l.b16 %v342
        %v392 = vunpack.c.l.b16 %v343
        %v393 = vunpack.c.l.b16 %v344
        %v394 = vunpack.c.l.b16 %v345
        %v395 = vunpack.c.l.b16 %v346
        %v396 = vunpack.c.l.b16 %v347
        %v397 = vunpack.c.l.b16 %v348
        %v398 = vunpack.c.l.b16 %v349
        %v399 = vunpack.c.l.b16 %v350
        %v400 = vunpack.c.l.b16 %v351
        %v401 = vunpack.c.l.b16 %v352
        %v402 = vpack.c.b16 %v385, %v384
        %v403 = vpack.c.b16 %v387, %v386
        %v404 = vpack.c.b16 %v389, %v388
        %v405 = vpack.c.b16 %v391, %v390
        %v406 = vpack.c.b16 %v393, %v392
        %v407 = vpack.c.b16 %v395, %v394
        %v408 = vpack.c.b16 %v397, %v396
        %v409 = vpack.c.b16 %v399, %v398
        %v410 = vpack.c.b16 %v401, %v400
        %vm420 = vcmask 130048
        %v422 = vsel %vm420, %v364, 0
        %424 = vmatpush.bf16.msra.mxu0 %v409
        %425 = vmatpush.bf16.msra.mxu0 %v408
        %426 = vmatpush.bf16.msra.mxu0 %v407
        %427 = vmatpush.bf16.msra.mxu0 %v406
        %428 = vmatpush.bf16.msra.mxu0 %v405
        %429 = vmatpush.bf16.msra.mxu0 %v404
        %430 = vmatpush.bf16.msra.mxu0 %v403
        %431 = vmatpush.bf16.msra.mxu0 %v402
        %432 = vmatmul.bf16.gmra.mxu0 %v363
        %v433 = vpop.f32.mrf.mxu0
        %v434 = vadd.f32 %v355, %v433
        %v435 = vpop.f32.mrf.mxu0
        %v436 = vadd.f32 %v355, %v435
        %437 = vdwg.mxu0
        %438 = vmatpush.bf16.msra.mxu0 0
        %439 = vmatpush.bf16.msra.mxu0 0
        %440 = vmatpush.bf16.msra.mxu0 0
        %441 = vmatpush.bf16.msra.mxu0 0
        %442 = vmatpush.bf16.msra.mxu0 0
        %443 = vmatpush.bf16.msra.mxu0 0
        %444 = vmatpush.bf16.msra.mxu0 0
        %445 = vmatpush.bf16.msra.mxu0 %v410
        %446 = vmatmul.bf16.gmra.mxu0 %v422
        %v447 = vpop.f32.mrf.mxu0
        %v448 = vadd.f32 %v434, %v447
        %v449 = vpop.f32.mrf.mxu0
        %v450 = vadd.f32 %v436, %v449
        %451 = vdwg.mxu0
        %v452 = vld [vmem:[%s329] sm:$0xf]
        %v453 = vld [vmem:[%s329 + $0x4] sm:$0xf]
        %v454 = vunpack.c.l.bf16 %v452
        %v455 = vunpack.c.l.bf16 %v453
        %v456 = vadd.f32 %v448, %v454
        %v457 = vadd.f32 %v450, %v455
        %v458 = vmax.f32 %v456, 0.0
        %v459 = vmax.f32 %v457, 0.0
        %v460 = vpack.c.bf16 %v459, %v458
        %v461 = vld [vmem:[%s4] sm:$0xf]
        %v462 = vld [vmem:[%s4 + $0x4] sm:$0xf]
        %v463 = vld [vmem:[%s4 + $0x8] sm:$0xf]
        %v464 = vld [vmem:[%s4 + $0xc] sm:$0xf]
        %v465 = vld [vmem:[%s5] sm:$0x1]
        %v467 = vperm.slane %v465, 0
        %v473 = vunpack.c.l.b16 %v461
        %v474 = vunpack.c.l.b16 %v462
        %v475 = vunpack.c.l.b16 %v463
        %v476 = vunpack.c.l.b16 %v464
        %v477 = vpack.c.b16 %v474, %v473
        %v478 = vpack.c.b16 %v476, %v475
        %vm481 = vcmask 261120
        %v483 = vsel %vm481, %v460, 0
        %485 = vmatpush.bf16.msra.mxu0 0
        %486 = vmatpush.bf16.msra.mxu0 0
        %487 = vmatpush.bf16.msra.mxu0 0
        %488 = vmatpush.bf16.msra.mxu0 0
        %489 = vmatpush.bf16.msra.mxu0 0
        %490 = vmatpush.bf16.msra.mxu0 0
        %491 = vmatpush.bf16.msra.mxu0 %v478
        %492 = vmatpush.bf16.msra.mxu0 %v477
        %493 = vmatmul.bf16.gmra.mxu0 %v483
        %v494 = vpop.f32.mrf.mxu0
        %v495 = vadd.f32 %v467, %v494
        %v496 = vpop.f32.mrf.mxu0
        %v497 = vadd.f32 %v467, %v496
        %498 = vdwg.mxu0
        %v499 = vmax.f32 %v495, 0.0
        %v500 = vmax.f32 %v497, 0.0
        %v501 = vpack.c.bf16 %v500, %v499
        %v502 = vld [vmem:[%s6] sm:$0xf]
        %v503 = vld [vmem:[%s6 + $0x4] sm:$0xf]
        %v504 = vld [vmem:[%s6 + $0x8] sm:$0xf]
        %v505 = vld [vmem:[%s6 + $0xc] sm:$0xf]
        %v506 = vld [vmem:[%s7] sm:$0x1]
        %v508 = vperm.slane %v506, 0
        %v514 = vunpack.c.l.b16 %v502
        %v515 = vunpack.c.l.b16 %v503
        %v516 = vunpack.c.l.b16 %v504
        %v517 = vunpack.c.l.b16 %v505
        %v518 = vpack.c.b16 %v515, %v514
        %v519 = vpack.c.b16 %v517, %v516
        %v523 = vsel %vm481, %v501, 0
        %525 = vmatpush.bf16.msra.mxu0 0
        %526 = vmatpush.bf16.msra.mxu0 0
        %527 = vmatpush.bf16.msra.mxu0 0
        %528 = vmatpush.bf16.msra.mxu0 0
        %529 = vmatpush.bf16.msra.mxu0 0
        %530 = vmatpush.bf16.msra.mxu0 0
        %531 = vmatpush.bf16.msra.mxu0 %v519
        %532 = vmatpush.bf16.msra.mxu0 %v518
        %533 = vmatmul.bf16.gmra.mxu0 %v523
        %v534 = vpop.f32.mrf.mxu0
        %v535 = vadd.f32 %v508, %v534
        %v536 = vpop.f32.mrf.mxu0
        %v537 = vadd.f32 %v508, %v536
        %538 = vdwg.mxu0
        %v539 = vxor.u32 %v535, 2147483648
        %v540 = vxor.u32 %v537, 2147483648
        %v541 = vmul.f32 %v539, 1.442695
        %v542 = vpow.pop %v541
        %v543 = vmul.f32 %v540, 1.442695
        %v544 = vpow.pop %v543
        %v545 = vadd.f32 %v542, 1.0
        %v546 = vadd.f32 %v544, 1.0
        %v547 = vrcp.pop %v545
        %v548 = vmul.f32 %v545, %v547
        %v549 = vsub.f32 1.0, %v548
        %v550 = vmul.f32 %v547, %v549
        %v551 = vadd.f32 %v547, %v550
        %vm552 = vweird.f32 %v545
        %vm553 = vweird.f32 %v547
        %vm554 = vmor %vm552, %vm553
        %v555 = vsel %vm554, %v547, %v551
        %v556 = vand.u32 2147483647, %v545
        %vm557 = vcmp.eq.f32.partialorder %v556, 8.507059e+37
        %v558 = vand.u32 %v545, 2147483648
        %v559 = vor.u32 1.1754944e-38, %v558
        %v560 = vsel %vm557, %v559, %v555
        %v561 = vmul.f32 1.0, %v560
        %v562 = vrcp.pop %v546
        %v563 = vmul.f32 %v546, %v562
        %v564 = vsub.f32 1.0, %v563
        %v565 = vmul.f32 %v562, %v564
        %v566 = vadd.f32 %v562, %v565
        %vm567 = vweird.f32 %v546
        %vm568 = vweird.f32 %v562
        %vm569 = vmor %vm567, %vm568
        %v570 = vsel %vm569, %v562, %v566
        %v571 = vand.u32 2147483647, %v546
        %vm572 = vcmp.eq.f32.partialorder %v571, 8.507059e+37
        %v573 = vand.u32 %v546, 2147483648
        %v574 = vor.u32 1.1754944e-38, %v573
        %v575 = vsel %vm572, %v574, %v570
        %v576 = vmul.f32 1.0, %v575
        %577 = vst.msk [vmem:[%s317] sm:$0xff] %vm481, %v561
        %578 = vst.msk [vmem:[%s317 + $0x8] sm:$0xff] %vm481, %v576
        %s579 = sand.u32 %s208, 1
        %s580 = scalar_lea.sflag [#allocation3], %s579
        %s581 = sand.u32 %s208, 1
        %s582 = smul.addr %s581, 16
        %s583 = scalar_lea.vmem [#allocation2], %s582
        // Predicated region
        $region53: #{tower_encoder_forward.13} parent=51 // pred_check
          %p584 = pneg %p218
        $region54: #{tower_encoder_forward.13} parent=51 // pred_check_branch
          %586 = sbr.rel (%p584) target = $region56
        $region55: #{tower_encoder_forward.13} parent=51 // pred_region
          %s587 = smul.u32 2, %s22
          %589 = vsyncadd %s580, 0
          %s590 = smul.addr %s587, 8
          %s591 = scalar_lea.hbm %s8, %s590
          %s592 = sshll.u32 %s583, 4
          %s593 = int_to_ptr.vmem [resolvable:$true] %s592
          %s594 = sshll.u32 %s591, 4
          %s595 = int_to_ptr.hbm [resolvable:$true] %s594
          %600 = dma.vmem_to_hbm [thread:$0]  %s593, 256, %s595, %s580, 128, 128, 8
        $region56: #{tower_encoder_forward.13} parent=51 // pred_fallthru
          _
      $region52: #{tower_encoder_forward.13} parent=5 // pred_fallthru
        _
      %p601 = scmp.le.s32.totalorder 2, %s17
      // Predicated region
      $region57: #{tower_encoder_forward.13} parent=5 // pred_check
        %p602 = pneg %p601
      $region58: #{tower_encoder_forward.13} parent=5 // pred_check_branch
        %604 = sbr.rel (%p602) target = $region60
      $region59: #{tower_encoder_forward.13} parent=5 // pred_region
        %s605 = ssub.s32 %s17, 2
        // Predicated region
        $region61: #{tower_encoder_forward.13} parent=59 // pred_check
          %p606 = pneg %p224
        $region62: #{tower_encoder_forward.13} parent=59 // pred_check_branch
          %608 = sbr.rel (%p606) target = $region64
        $region63: #{tower_encoder_forward.13} parent=59 // pred_region
          %s609 = sand.u32 %s209, 1
          %s610 = scalar_lea.sflag [#allocation3], %s609
          %s611 = sand.u32 %s209, 1
          %s612 = smul.addr %s611, 16
          %s613 = scalar_lea.vmem [#allocation2], %s612
          %615 = dma.done %s610, 256
        $region64: #{tower_encoder_forward.13} parent=59 // pred_fallthru
          _
      $region60: #{tower_encoder_forward.13} parent=5 // pred_fallthru
        _
    $region6: #{tower_encoder_forward.13} parent=1 // loop_footer
      %s21 = sadd.s32 1, %s17
    $region7: #{tower_encoder_forward.13} parent=1 // loop_footer_branch
      %16 = sbr.rel target = $region3
    $region8: #{tower_encoder_forward.13} parent=1 // loop_exit
      _
    %616 = vsyncpa [#allocation3], 1
    %s617 = scalar_lea.sflag [#allocation3], 1
    %618 = vsyncpa %s617, 1

</llo_original>
